<compile_context>
chip_gen: v5e
topology: v5e:2x2
jax: 0.10.0
libtpu: 0.0.40
codegen_flags: <defaults>
</compile_context>

<pallas_src>
import numpy as np

import jax
import jax.numpy as jnp
from jax.experimental import pallas as pl
from jax.experimental.pallas import tpu as pltpu


# ----------------------------------------------------------------------------
# Host-side constant selection matrices (spatial gathers as 0/1 matmuls)
# ----------------------------------------------------------------------------
def _conv3x3_tap_mats(H, W):
    """[9, H*W, H*W]: mats[k] @ x_flat == x shifted for tap k (zero padded)."""
    mats = np.zeros((9, H * W, H * W), np.float32)
    for ki in range(3):
        for kj in range(3):
            k = ki * 3 + kj
            for h in range(H):
                for w in range(W):
                    hs, ws = h + ki - 1, w + kj - 1
                    if 0 <= hs < H and 0 <= ws < W:
                        mats[k, h * W + w, hs * W + ws] = 1.0
    return mats


def _maxpool_sel_mats(Hin, Win):
    """3x3/s2/p1 maxpool window taps as [9, Ho*Wo, Hin*Win] selections."""
    Ho = (Hin + 2 - 3) // 2 + 1
    Wo = (Win + 2 - 3) // 2 + 1
    mats = np.zeros((9, Ho * Wo, Hin * Win), np.float32)
    for di in range(3):
        for dj in range(3):
            k = di * 3 + dj
            for ho in range(Ho):
                for wo in range(Wo):
                    hs, ws = 2 * ho + di - 1, 2 * wo + dj - 1
                    if 0 <= hs < Hin and 0 <= ws < Win:
                        mats[k, ho * Wo + wo, hs * Win + ws] = 1.0
    return mats, (Ho, Wo)


# ----------------------------------------------------------------------------
# Fused Pallas kernel: conv1+bn1+relu -> maxpool -> layer1 (2 BasicBlocks)
# Processes one sample per grid step; all intermediates stay in VMEM/vregs.
# ----------------------------------------------------------------------------
def _res_bottom_kernel(patches_ref, w1_ref, wl_ref, b_ref, pool_ref, tap_ref,
                       o_ref):
    # ---- stem: conv1 (7x7/s2, BN scale folded into weights) + bias + ReLU ----
    y = jnp.dot(patches_ref[...], w1_ref[...],
                preferred_element_type=jnp.float32)            # [Hc*Wc, C] f32
    y = jnp.maximum(y + b_ref[0], 0.0)

    # ---- maxpool 3x3/s2/p1: gather the 9 window taps via selection matmuls.
    # Out-of-range taps select 0, a valid pad value because y >= 0 post-ReLU.
    act = None
    for k in range(pool_ref.shape[0]):
        tap = jnp.dot(pool_ref[k], y, preferred_element_type=jnp.float32)
        act = tap if act is None else jnp.maximum(act, tap)    # [Ho*Wo, C] f32

    # ---- layer1: 2 BasicBlocks (conv3x3+bn+relu, conv3x3+bn, +id, relu) ----
    n_taps = tap_ref.shape[0]
    center = n_taps // 2

    def conv3x3(x, conv_idx):
        xb = x.astype(jnp.bfloat16)
        acc = jnp.zeros(x.shape, jnp.float32)
        for k in range(n_taps):
            if k == center:
                shifted = xb                                   # identity tap
            else:
                shifted = jnp.dot(
                    tap_ref[k], xb,
                    preferred_element_type=jnp.float32).astype(jnp.bfloat16)
            acc = acc + jnp.dot(shifted, wl_ref[conv_idx, k],
                                preferred_element_type=jnp.float32)
        return acc

    n_blocks = wl_ref.shape[0] // 2
    for blk in range(n_blocks):
        identity = act
        h1 = jnp.maximum(conv3x3(act, 2 * blk) + b_ref[1 + 2 * blk], 0.0)
        h2 = conv3x3(h1, 2 * blk + 1) + b_ref[2 + 2 * blk] + identity
        act = jnp.maximum(h2, 0.0)

    o_ref[...] = act.astype(o_ref.dtype)


# ----------------------------------------------------------------------------
# Wrapper: parameter folding, conv1 im2col, single pallas_call, NCHW I/O
# ----------------------------------------------------------------------------
def res_bottom_forward(x_nchw, params):
    eps = 1e-5
    N, Cin, H, W = x_nchw.shape
    width = params["conv1_w"].shape[0]

    # Fold BN (inference) into per-output-channel scale (into weights) + bias.
    def fold(w_oihw, bn):
        gamma, beta, mean, var = bn
        scale = gamma * jax.lax.rsqrt(var + eps)
        return w_oihw * scale[:, None, None, None], beta - mean * scale

    w1f, b1 = fold(params["conv1_w"], params["bn1"])
    kh1, kw1 = w1f.shape[2], w1f.shape[3]
    K1 = kh1 * kw1 * Cin
    w1_mat = jnp.transpose(w1f, (2, 3, 1, 0)).reshape(K1, width)
    w1_mat = w1_mat.astype(jnp.bfloat16)

    wl_list, bias_list = [], [b1]
    for blk in params["blocks"]:
        for wkey, bnkey in (("conv1_w", "bn1"), ("conv2_w", "bn2")):
            wf, bb = fold(blk[wkey], blk[bnkey])
            wl_list.append(jnp.transpose(wf, (2, 3, 1, 0)).reshape(9, width,
                                                                   width))
            bias_list.append(bb)
    wl = jnp.stack(wl_list).astype(jnp.bfloat16)               # [4, 9, C, C]
    biases = jnp.stack(bias_list).reshape(-1, 1, width)        # [5, 1, C] f32

    # im2col for conv1 only (7x7/s2/p3), channels-last, bf16 DMA.
    x = jnp.transpose(x_nchw, (0, 2, 3, 1))                    # NCHW -> NHWC
    Hc = (H + 2 * 3 - kh1) // 2 + 1
    Wc = (W + 2 * 3 - kw1) // 2 + 1
    xp = jnp.pad(x, ((0, 0), (3, 3), (3, 3), (0, 0)))
    cols = []
    for ki in range(kh1):
        for kj in range(kw1):
            cols.append(xp[:, ki:ki + 2 * Hc:2, kj:kj + 2 * Wc:2, :])
    patches = jnp.stack(cols, axis=3).reshape(N, Hc * Wc, K1)
    patches = patches.astype(jnp.bfloat16)

    # Constant spatial-gather matrices (VMEM resident, applied on the MXU).
    pool_np, (Ho, Wo) = _maxpool_sel_mats(Hc, Wc)
    pool_sel = jnp.asarray(pool_np, jnp.float32)               # [9, Ho*Wo, Hc*Wc]
    tap_sel = jnp.asarray(_conv3x3_tap_mats(Ho, Wo), jnp.bfloat16)

    out = pl.pallas_call(
        _res_bottom_kernel,
        out_shape=jax.ShapeDtypeStruct((N, Ho * Wo, width), jnp.float32),
        grid_spec=pltpu.PrefetchScalarGridSpec(
            num_scalar_prefetch=0,
            grid=(N,),
            in_specs=[
                pl.BlockSpec((None, Hc * Wc, K1), lambda i: (i, 0, 0)),
                pl.BlockSpec((K1, width), lambda i: (0, 0)),
                pl.BlockSpec(wl.shape, lambda i: (0, 0, 0, 0)),
                pl.BlockSpec(biases.shape, lambda i: (0, 0, 0)),
                pl.BlockSpec(pool_sel.shape, lambda i: (0, 0, 0)),
                pl.BlockSpec(tap_sel.shape, lambda i: (0, 0, 0)),
            ],
            out_specs=pl.BlockSpec((None, Ho * Wo, width), lambda i: (i, 0, 0)),
        ),
        compiler_params=pltpu.CompilerParams(
            dimension_semantics=("parallel",)),
    )(patches, w1_mat, wl, biases, pool_sel, tap_sel)

    out = out.reshape(N, Ho, Wo, width)
    return jnp.transpose(out, (0, 3, 1, 2))                    # NHWC -> NCHW


# ----------------------------------------------------------------------------
# Pure-JAX f32 reference (for a numerical sanity check)
# ----------------------------------------------------------------------------
def res_bottom_reference(x_nchw, params, eps=1e-5):
    def conv(x, w, stride, pad):
        return jax.lax.conv_general_dilated(
            x, w, (stride, stride), ((pad, pad), (pad, pad)),
            dimension_numbers=("NCHW", "OIHW", "NCHW"))

    def bn(x, p):
        g, b, m, v = p
        s = g * jax.lax.rsqrt(v + eps)
        return x * s[None, :, None, None] + (b - m * s)[None, :, None, None]

    x = jax.nn.relu(bn(conv(x_nchw, params["conv1_w"], 2, 3), params["bn1"]))
    x = jax.lax.reduce_window(x, -jnp.inf, jax.lax.max, (1, 1, 3, 3),
                              (1, 1, 2, 2), ((0, 0), (0, 0), (1, 1), (1, 1)))
    for blk in params["blocks"]:
        identity = x
        y = jax.nn.relu(bn(conv(x, blk["conv1_w"], 1, 1), blk["bn1"]))
        x = jax.nn.relu(bn(conv(y, blk["conv2_w"], 1, 1), blk["bn2"]) + identity)
    return x


# ----------------------------------------------------------------------------
# Deterministic synthetic parameters
# ----------------------------------------------------------------------------
def init_params(key, cin=3, width=16, num_blocks=2):
    ks = jax.random.split(key, 2 + 4 * num_blocks)

    def conv_w(k, cout, cin_, kh, kw):
        fan_in = cin_ * kh * kw
        return jax.random.normal(k, (cout, cin_, kh, kw),
                                 jnp.float32) * (2.0 / fan_in) ** 0.5

    def bn_p(k, c):
        k1, k2, k3 = jax.random.split(k, 3)
        gamma = 1.0 + 0.1 * jax.random.normal(k1, (c,), jnp.float32)
        beta = 0.1 * jax.random.normal(k2, (c,), jnp.float32)
        mean = 0.1 * jax.random.normal(k3, (c,), jnp.float32)
        var = jnp.ones((c,), jnp.float32)
        return (gamma, beta, mean, var)

    params = {
        "conv1_w": conv_w(ks[0], width, cin, 7, 7),
        "bn1": bn_p(ks[1], width),
        "blocks": [],
    }
    for b in range(num_blocks):
        params["blocks"].append({
            "conv1_w": conv_w(ks[2 + 4 * b], width, width, 3, 3),
            "bn1": bn_p(ks[3 + 4 * b], width),
            "conv2_w": conv_w(ks[4 + 4 * b], width, width, 3, 3),
            "bn2": bn_p(ks[5 + 4 * b], width),
        })
    return params


if __name__ == "__main__":
    key = jax.random.PRNGKey(0)
    kx, kp = jax.random.split(key)
    x = jax.random.normal(kx, (2, 3, 32, 32), jnp.float32)  # NCHW input
    params = init_params(kp, cin=3, width=16, num_blocks=2)

    fwd = jax.jit(res_bottom_forward)
    out = jax.block_until_ready(fwd(x, params))

    assert out.shape == (2, 16, 8, 8), out.shape
    assert bool(jnp.all(jnp.isfinite(out)))

    # Loose numerical check vs a pure-JAX f32 reference (kernel uses bf16
    # matmul inputs with f32 accumulation, so a few-percent deviation is
    # expected; structural bugs would be orders of magnitude larger).
    ref = jax.jit(res_bottom_reference)(x, params)
    rel = float(jnp.linalg.norm(out - ref) / (jnp.linalg.norm(ref) + 1e-12))
    assert rel < 0.05, f"relative error vs reference too large: {rel}"

    print("KERNEL_OK")
</pallas_src>

<mosaic_0001>
module attributes {stable_mosaic.version = 11 : i64} {
  func.func @_res_bottom_kernel(%arg0: i32, %arg1: memref<1x256x147xbf16, #tpu.memory_space<vmem>>, %arg2: memref<147x16xbf16, #tpu.memory_space<vmem>>, %arg3: memref<4x9x16x16xbf16, #tpu.memory_space<vmem>>, %arg4: memref<5x1x16xf32, #tpu.memory_space<vmem>>, %arg5: memref<9x64x256xf32, #tpu.memory_space<vmem>>, %arg6: memref<9x64x64xbf16, #tpu.memory_space<vmem>>, %arg7: memref<1x64x16xf32, #tpu.memory_space<vmem>>) attributes {dimension_semantics = [#tpu.dimension_semantics<parallel>], iteration_bounds = array<i64: 2>, scalar_prefetch = 0 : i64, scratch_operands = 0 : i64, tpu.core_type = #tpu.core_type<tc>, window_params = [{transform_indices = @transform_0, window_bounds = array<i64: 1, 256, 147>}, {pipeline_mode = #tpu.pipeline_mode<synchronous>, transform_indices = @transform_1, window_bounds = array<i64: 147, 16>}, {pipeline_mode = #tpu.pipeline_mode<synchronous>, transform_indices = @transform_2, window_bounds = array<i64: 4, 9, 16, 16>}, {pipeline_mode = #tpu.pipeline_mode<synchronous>, transform_indices = @transform_3, window_bounds = array<i64: 5, 1, 16>}, {pipeline_mode = #tpu.pipeline_mode<synchronous>, transform_indices = @transform_4, window_bounds = array<i64: 9, 64, 256>}, {pipeline_mode = #tpu.pipeline_mode<synchronous>, transform_indices = @transform_5, window_bounds = array<i64: 9, 64, 64>}, {transform_indices = @transform_6, window_bounds = array<i64: 1, 64, 16>}]} {
    %c0 = arith.constant 0 : index
    %c0_0 = arith.constant 0 : index
    %c0_1 = arith.constant 0 : index
    %0 = vector.load %arg1[%c0, %c0_0, %c0_1] : memref<1x256x147xbf16, #tpu.memory_space<vmem>>, vector<1x256x147xbf16>
    %1 = vector.shape_cast %0 : vector<1x256x147xbf16> to vector<256x147xbf16>
    %c0_2 = arith.constant 0 : index
    %c0_3 = arith.constant 0 : index
    %2 = vector.load %arg2[%c0_2, %c0_3] : memref<147x16xbf16, #tpu.memory_space<vmem>>, vector<147x16xbf16>
    %cst = arith.constant dense<0.000000e+00> : vector<256x16xf32>
    %3 = tpu.matmul %1, %2, %cst {dimension_numbers = #tpu.dot_dimension_numbers<[1], [0], [0], [1], [0, 0, 1, 1], [], []>} : vector<256x147xbf16>, vector<147x16xbf16>, vector<256x16xf32> -> vector<256x16xf32>
    %c0_4 = arith.constant 0 : index
    %c0_5 = arith.constant 0 : index
    %c0_6 = arith.constant 0 : index
    %4 = vector.load %arg4[%c0_4, %c0_5, %c0_6] : memref<5x1x16xf32, #tpu.memory_space<vmem>>, vector<1x1x16xf32>
    %5 = vector.shape_cast %4 : vector<1x1x16xf32> to vector<1x16xf32>
    %6 = vector.broadcast %5 : vector<1x16xf32> to vector<256x16xf32>
    %7 = arith.addf %3, %6 : vector<256x16xf32>
    %cst_7 = arith.constant 0.000000e+00 : f32
    %8 = vector.broadcast %cst_7 : f32 to vector<256x16xf32>
    %9 = arith.maximumf %7, %8 : vector<256x16xf32>
    %c0_8 = arith.constant 0 : index
    %c0_9 = arith.constant 0 : index
    %c0_10 = arith.constant 0 : index
    %10 = vector.load %arg5[%c0_8, %c0_9, %c0_10] : memref<9x64x256xf32, #tpu.memory_space<vmem>>, vector<1x64x256xf32>
    %11 = vector.shape_cast %10 : vector<1x64x256xf32> to vector<64x256xf32>
    %cst_11 = arith.constant dense<0.000000e+00> : vector<64x16xf32>
    %12 = tpu.matmul %11, %9, %cst_11 {dimension_numbers = #tpu.dot_dimension_numbers<[1], [0], [0], [1], [0, 0, 1, 1], [], []>} : vector<64x256xf32>, vector<256x16xf32>, vector<64x16xf32> -> vector<64x16xf32>
    %c1 = arith.constant 1 : index
    %c0_12 = arith.constant 0 : index
    %c0_13 = arith.constant 0 : index
    %13 = vector.load %arg5[%c1, %c0_12, %c0_13] : memref<9x64x256xf32, #tpu.memory_space<vmem>>, vector<1x64x256xf32>
    %14 = vector.shape_cast %13 : vector<1x64x256xf32> to vector<64x256xf32>
    %cst_14 = arith.constant dense<0.000000e+00> : vector<64x16xf32>
    %15 = tpu.matmul %14, %9, %cst_14 {dimension_numbers = #tpu.dot_dimension_numbers<[1], [0], [0], [1], [0, 0, 1, 1], [], []>} : vector<64x256xf32>, vector<256x16xf32>, vector<64x16xf32> -> vector<64x16xf32>
    %16 = arith.maximumf %12, %15 : vector<64x16xf32>
    %c2 = arith.constant 2 : index
    %c0_15 = arith.constant 0 : index
    %c0_16 = arith.constant 0 : index
    %17 = vector.load %arg5[%c2, %c0_15, %c0_16] : memref<9x64x256xf32, #tpu.memory_space<vmem>>, vector<1x64x256xf32>
    %18 = vector.shape_cast %17 : vector<1x64x256xf32> to vector<64x256xf32>
    %cst_17 = arith.constant dense<0.000000e+00> : vector<64x16xf32>
    %19 = tpu.matmul %18, %9, %cst_17 {dimension_numbers = #tpu.dot_dimension_numbers<[1], [0], [0], [1], [0, 0, 1, 1], [], []>} : vector<64x256xf32>, vector<256x16xf32>, vector<64x16xf32> -> vector<64x16xf32>
    %20 = arith.maximumf %16, %19 : vector<64x16xf32>
    %c3 = arith.constant 3 : index
    %c0_18 = arith.constant 0 : index
    %c0_19 = arith.constant 0 : index
    %21 = vector.load %arg5[%c3, %c0_18, %c0_19] : memref<9x64x256xf32, #tpu.memory_space<vmem>>, vector<1x64x256xf32>
    %22 = vector.shape_cast %21 : vector<1x64x256xf32> to vector<64x256xf32>
    %cst_20 = arith.constant dense<0.000000e+00> : vector<64x16xf32>
    %23 = tpu.matmul %22, %9, %cst_20 {dimension_numbers = #tpu.dot_dimension_numbers<[1], [0], [0], [1], [0, 0, 1, 1], [], []>} : vector<64x256xf32>, vector<256x16xf32>, vector<64x16xf32> -> vector<64x16xf32>
    %24 = arith.maximumf %20, %23 : vector<64x16xf32>
    %c4 = arith.constant 4 : index
    %c0_21 = arith.constant 0 : index
    %c0_22 = arith.constant 0 : index
    %25 = vector.load %arg5[%c4, %c0_21, %c0_22] : memref<9x64x256xf32, #tpu.memory_space<vmem>>, vector<1x64x256xf32>
    %26 = vector.shape_cast %25 : vector<1x64x256xf32> to vector<64x256xf32>
    %cst_23 = arith.constant dense<0.000000e+00> : vector<64x16xf32>
    %27 = tpu.matmul %26, %9, %cst_23 {dimension_numbers = #tpu.dot_dimension_numbers<[1], [0], [0], [1], [0, 0, 1, 1], [], []>} : vector<64x256xf32>, vector<256x16xf32>, vector<64x16xf32> -> vector<64x16xf32>
    %28 = arith.maximumf %24, %27 : vector<64x16xf32>
    %c5 = arith.constant 5 : index
    %c0_24 = arith.constant 0 : index
    %c0_25 = arith.constant 0 : index
    %29 = vector.load %arg5[%c5, %c0_24, %c0_25] : memref<9x64x256xf32, #tpu.memory_space<vmem>>, vector<1x64x256xf32>
    %30 = vector.shape_cast %29 : vector<1x64x256xf32> to vector<64x256xf32>
    %cst_26 = arith.constant dense<0.000000e+00> : vector<64x16xf32>
    %31 = tpu.matmul %30, %9, %cst_26 {dimension_numbers = #tpu.dot_dimension_numbers<[1], [0], [0], [1], [0, 0, 1, 1], [], []>} : vector<64x256xf32>, vector<256x16xf32>, vector<64x16xf32> -> vector<64x16xf32>
    %32 = arith.maximumf %28, %31 : vector<64x16xf32>
    %c6 = arith.constant 6 : index
    %c0_27 = arith.constant 0 : index
    %c0_28 = arith.constant 0 : index
    %33 = vector.load %arg5[%c6, %c0_27, %c0_28] : memref<9x64x256xf32, #tpu.memory_space<vmem>>, vector<1x64x256xf32>
    %34 = vector.shape_cast %33 : vector<1x64x256xf32> to vector<64x256xf32>
    %cst_29 = arith.constant dense<0.000000e+00> : vector<64x16xf32>
    %35 = tpu.matmul %34, %9, %cst_29 {dimension_numbers = #tpu.dot_dimension_numbers<[1], [0], [0], [1], [0, 0, 1, 1], [], []>} : vector<64x256xf32>, vector<256x16xf32>, vector<64x16xf32> -> vector<64x16xf32>
    %36 = arith.maximumf %32, %35 : vector<64x16xf32>
    %c7 = arith.constant 7 : index
    %c0_30 = arith.constant 0 : index
    %c0_31 = arith.constant 0 : index
    %37 = vector.load %arg5[%c7, %c0_30, %c0_31] : memref<9x64x256xf32, #tpu.memory_space<vmem>>, vector<1x64x256xf32>
    %38 = vector.shape_cast %37 : vector<1x64x256xf32> to vector<64x256xf32>
    %cst_32 = arith.constant dense<0.000000e+00> : vector<64x16xf32>
    %39 = tpu.matmul %38, %9, %cst_32 {dimension_numbers = #tpu.dot_dimension_numbers<[1], [0], [0], [1], [0, 0, 1, 1], [], []>} : vector<64x256xf32>, vector<256x16xf32>, vector<64x16xf32> -> vector<64x16xf32>
    %40 = arith.maximumf %36, %39 : vector<64x16xf32>
    %c8 = arith.constant 8 : index
    %c0_33 = arith.constant 0 : index
    %c0_34 = arith.constant 0 : index
    %41 = vector.load %arg5[%c8, %c0_33, %c0_34] : memref<9x64x256xf32, #tpu.memory_space<vmem>>, vector<1x64x256xf32>
    %42 = vector.shape_cast %41 : vector<1x64x256xf32> to vector<64x256xf32>
    %cst_35 = arith.constant dense<0.000000e+00> : vector<64x16xf32>
    %43 = tpu.matmul %42, %9, %cst_35 {dimension_numbers = #tpu.dot_dimension_numbers<[1], [0], [0], [1], [0, 0, 1, 1], [], []>} : vector<64x256xf32>, vector<256x16xf32>, vector<64x16xf32> -> vector<64x16xf32>
    %44 = arith.maximumf %40, %43 : vector<64x16xf32>
    %45 = arith.truncf %44 : vector<64x16xf32> to vector<64x16xbf16>
    %cst_36 = arith.constant 0.000000e+00 : f32
    %46 = vector.broadcast %cst_36 : f32 to vector<64x16xf32>
    %c0_37 = arith.constant 0 : index
    %c0_38 = arith.constant 0 : index
    %c0_39 = arith.constant 0 : index
    %47 = vector.load %arg6[%c0_37, %c0_38, %c0_39] : memref<9x64x64xbf16, #tpu.memory_space<vmem>>, vector<1x64x64xbf16>
    %48 = vector.shape_cast %47 : vector<1x64x64xbf16> to vector<64x64xbf16>
    %cst_40 = arith.constant dense<0.000000e+00> : vector<64x16xf32>
    %49 = tpu.matmul %48, %45, %cst_40 {dimension_numbers = #tpu.dot_dimension_numbers<[1], [0], [0], [1], [0, 0, 1, 1], [], []>} : vector<64x64xbf16>, vector<64x16xbf16>, vector<64x16xf32> -> vector<64x16xf32>
    %50 = arith.truncf %49 : vector<64x16xf32> to vector<64x16xbf16>
    %c0_41 = arith.constant 0 : index
    %c0_42 = arith.constant 0 : index
    %c0_43 = arith.constant 0 : index
    %c0_44 = arith.constant 0 : index
    %51 = vector.load %arg3[%c0_41, %c0_42, %c0_43, %c0_44] : memref<4x9x16x16xbf16, #tpu.memory_space<vmem>>, vector<1x1x16x16xbf16>
    %52 = vector.shape_cast %51 : vector<1x1x16x16xbf16> to vector<16x16xbf16>
    %cst_45 = arith.constant dense<0.000000e+00> : vector<64x16xf32>
    %53 = tpu.matmul %50, %52, %cst_45 {dimension_numbers = #tpu.dot_dimension_numbers<[1], [0], [0], [1], [0, 0, 1, 1], [], []>} : vector<64x16xbf16>, vector<16x16xbf16>, vector<64x16xf32> -> vector<64x16xf32>
    %54 = arith.addf %46, %53 : vector<64x16xf32>
    %c1_46 = arith.constant 1 : index
    %c0_47 = arith.constant 0 : index
    %c0_48 = arith.constant 0 : index
    %55 = vector.load %arg6[%c1_46, %c0_47, %c0_48] : memref<9x64x64xbf16, #tpu.memory_space<vmem>>, vector<1x64x64xbf16>
    %56 = vector.shape_cast %55 : vector<1x64x64xbf16> to vector<64x64xbf16>
    %cst_49 = arith.constant dense<0.000000e+00> : vector<64x16xf32>
    %57 = tpu.matmul %56, %45, %cst_49 {dimension_numbers = #tpu.dot_dimension_numbers<[1], [0], [0], [1], [0, 0, 1, 1], [], []>} : vector<64x64xbf16>, vector<64x16xbf16>, vector<64x16xf32> -> vector<64x16xf32>
    %58 = arith.truncf %57 : vector<64x16xf32> to vector<64x16xbf16>
    %c0_50 = arith.constant 0 : index
    %c1_51 = arith.constant 1 : index
    %c0_52 = arith.constant 0 : index
    %c0_53 = arith.constant 0 : index
    %59 = vector.load %arg3[%c0_50, %c1_51, %c0_52, %c0_53] : memref<4x9x16x16xbf16, #tpu.memory_space<vmem>>, vector<1x1x16x16xbf16>
    %60 = vector.shape_cast %59 : vector<1x1x16x16xbf16> to vector<16x16xbf16>
    %cst_54 = arith.constant dense<0.000000e+00> : vector<64x16xf32>
    %61 = tpu.matmul %58, %60, %cst_54 {dimension_numbers = #tpu.dot_dimension_numbers<[1], [0], [0], [1], [0, 0, 1, 1], [], []>} : vector<64x16xbf16>, vector<16x16xbf16>, vector<64x16xf32> -> vector<64x16xf32>
    %62 = arith.addf %54, %61 : vector<64x16xf32>
    %c2_55 = arith.constant 2 : index
    %c0_56 = arith.constant 0 : index
    %c0_57 = arith.constant 0 : index
    %63 = vector.load %arg6[%c2_55, %c0_56, %c0_57] : memref<9x64x64xbf16, #tpu.memory_space<vmem>>, vector<1x64x64xbf16>
    %64 = vector.shape_cast %63 : vector<1x64x64xbf16> to vector<64x64xbf16>
    %cst_58 = arith.constant dense<0.000000e+00> : vector<64x16xf32>
    %65 = tpu.matmul %64, %45, %cst_58 {dimension_numbers = #tpu.dot_dimension_numbers<[1], [0], [0], [1], [0, 0, 1, 1], [], []>} : vector<64x64xbf16>, vector<64x16xbf16>, vector<64x16xf32> -> vector<64x16xf32>
    %66 = arith.truncf %65 : vector<64x16xf32> to vector<64x16xbf16>
    %c0_59 = arith.constant 0 : index
    %c2_60 = arith.constant 2 : index
    %c0_61 = arith.constant 0 : index
    %c0_62 = arith.constant 0 : index
    %67 = vector.load %arg3[%c0_59, %c2_60, %c0_61, %c0_62] : memref<4x9x16x16xbf16, #tpu.memory_space<vmem>>, vector<1x1x16x16xbf16>
    %68 = vector.shape_cast %67 : vector<1x1x16x16xbf16> to vector<16x16xbf16>
    %cst_63 = arith.constant dense<0.000000e+00> : vector<64x16xf32>
    %69 = tpu.matmul %66, %68, %cst_63 {dimension_numbers = #tpu.dot_dimension_numbers<[1], [0], [0], [1], [0, 0, 1, 1], [], []>} : vector<64x16xbf16>, vector<16x16xbf16>, vector<64x16xf32> -> vector<64x16xf32>
    %70 = arith.addf %62, %69 : vector<64x16xf32>
    %c3_64 = arith.constant 3 : index
    %c0_65 = arith.constant 0 : index
    %c0_66 = arith.constant 0 : index
    %71 = vector.load %arg6[%c3_64, %c0_65, %c0_66] : memref<9x64x64xbf16, #tpu.memory_space<vmem>>, vector<1x64x64xbf16>
    %72 = vector.shape_cast %71 : vector<1x64x64xbf16> to vector<64x64xbf16>
    %cst_67 = arith.constant dense<0.000000e+00> : vector<64x16xf32>
    %73 = tpu.matmul %72, %45, %cst_67 {dimension_numbers = #tpu.dot_dimension_numbers<[1], [0], [0], [1], [0, 0, 1, 1], [], []>} : vector<64x64xbf16>, vector<64x16xbf16>, vector<64x16xf32> -> vector<64x16xf32>
    %74 = arith.truncf %73 : vector<64x16xf32> to vector<64x16xbf16>
    %c0_68 = arith.constant 0 : index
    %c3_69 = arith.constant 3 : index
    %c0_70 = arith.constant 0 : index
    %c0_71 = arith.constant 0 : index
    %75 = vector.load %arg3[%c0_68, %c3_69, %c0_70, %c0_71] : memref<4x9x16x16xbf16, #tpu.memory_space<vmem>>, vector<1x1x16x16xbf16>
    %76 = vector.shape_cast %75 : vector<1x1x16x16xbf16> to vector<16x16xbf16>
    %cst_72 = arith.constant dense<0.000000e+00> : vector<64x16xf32>
    %77 = tpu.matmul %74, %76, %cst_72 {dimension_numbers = #tpu.dot_dimension_numbers<[1], [0], [0], [1], [0, 0, 1, 1], [], []>} : vector<64x16xbf16>, vector<16x16xbf16>, vector<64x16xf32> -> vector<64x16xf32>
    %78 = arith.addf %70, %77 : vector<64x16xf32>
    %c0_73 = arith.constant 0 : index
    %c4_74 = arith.constant 4 : index
    %c0_75 = arith.constant 0 : index
    %c0_76 = arith.constant 0 : index
    %79 = vector.load %arg3[%c0_73, %c4_74, %c0_75, %c0_76] : memref<4x9x16x16xbf16, #tpu.memory_space<vmem>>, vector<1x1x16x16xbf16>
    %80 = vector.shape_cast %79 : vector<1x1x16x16xbf16> to vector<16x16xbf16>
    %cst_77 = arith.constant dense<0.000000e+00> : vector<64x16xf32>
    %81 = tpu.matmul %45, %80, %cst_77 {dimension_numbers = #tpu.dot_dimension_numbers<[1], [0], [0], [1], [0, 0, 1, 1], [], []>} : vector<64x16xbf16>, vector<16x16xbf16>, vector<64x16xf32> -> vector<64x16xf32>
    %82 = arith.addf %78, %81 : vector<64x16xf32>
    %c5_78 = arith.constant 5 : index
    %c0_79 = arith.constant 0 : index
    %c0_80 = arith.constant 0 : index
    %83 = vector.load %arg6[%c5_78, %c0_79, %c0_80] : memref<9x64x64xbf16, #tpu.memory_space<vmem>>, vector<1x64x64xbf16>
    %84 = vector.shape_cast %83 : vector<1x64x64xbf16> to vector<64x64xbf16>
    %cst_81 = arith.constant dense<0.000000e+00> : vector<64x16xf32>
    %85 = tpu.matmul %84, %45, %cst_81 {dimension_numbers = #tpu.dot_dimension_numbers<[1], [0], [0], [1], [0, 0, 1, 1], [], []>} : vector<64x64xbf16>, vector<64x16xbf16>, vector<64x16xf32> -> vector<64x16xf32>
    %86 = arith.truncf %85 : vector<64x16xf32> to vector<64x16xbf16>
    %c0_82 = arith.constant 0 : index
    %c5_83 = arith.constant 5 : index
    %c0_84 = arith.constant 0 : index
    %c0_85 = arith.constant 0 : index
    %87 = vector.load %arg3[%c0_82, %c5_83, %c0_84, %c0_85] : memref<4x9x16x16xbf16, #tpu.memory_space<vmem>>, vector<1x1x16x16xbf16>
    %88 = vector.shape_cast %87 : vector<1x1x16x16xbf16> to vector<16x16xbf16>
    %cst_86 = arith.constant dense<0.000000e+00> : vector<64x16xf32>
    %89 = tpu.matmul %86, %88, %cst_86 {dimension_numbers = #tpu.dot_dimension_numbers<[1], [0], [0], [1], [0, 0, 1, 1], [], []>} : vector<64x16xbf16>, vector<16x16xbf16>, vector<64x16xf32> -> vector<64x16xf32>
    %90 = arith.addf %82, %89 : vector<64x16xf32>
    %c6_87 = arith.constant 6 : index
    %c0_88 = arith.constant 0 : index
    %c0_89 = arith.constant 0 : index
    %91 = vector.load %arg6[%c6_87, %c0_88, %c0_89] : memref<9x64x64xbf16, #tpu.memory_space<vmem>>, vector<1x64x64xbf16>
    %92 = vector.shape_cast %91 : vector<1x64x64xbf16> to vector<64x64xbf16>
    %cst_90 = arith.constant dense<0.000000e+00> : vector<64x16xf32>
    %93 = tpu.matmul %92, %45, %cst_90 {dimension_numbers = #tpu.dot_dimension_numbers<[1], [0], [0], [1], [0, 0, 1, 1], [], []>} : vector<64x64xbf16>, vector<64x16xbf16>, vector<64x16xf32> -> vector<64x16xf32>
    %94 = arith.truncf %93 : vector<64x16xf32> to vector<64x16xbf16>
    %c0_91 = arith.constant 0 : index
    %c6_92 = arith.constant 6 : index
    %c0_93 = arith.constant 0 : index
    %c0_94 = arith.constant 0 : index
    %95 = vector.load %arg3[%c0_91, %c6_92, %c0_93, %c0_94] : memref<4x9x16x16xbf16, #tpu.memory_space<vmem>>, vector<1x1x16x16xbf16>
    %96 = vector.shape_cast %95 : vector<1x1x16x16xbf16> to vector<16x16xbf16>
    %cst_95 = arith.constant dense<0.000000e+00> : vector<64x16xf32>
    %97 = tpu.matmul %94, %96, %cst_95 {dimension_numbers = #tpu.dot_dimension_numbers<[1], [0], [0], [1], [0, 0, 1, 1], [], []>} : vector<64x16xbf16>, vector<16x16xbf16>, vector<64x16xf32> -> vector<64x16xf32>
    %98 = arith.addf %90, %97 : vector<64x16xf32>
    %c7_96 = arith.constant 7 : index
    %c0_97 = arith.constant 0 : index
    %c0_98 = arith.constant 0 : index
    %99 = vector.load %arg6[%c7_96, %c0_97, %c0_98] : memref<9x64x64xbf16, #tpu.memory_space<vmem>>, vector<1x64x64xbf16>
    %100 = vector.shape_cast %99 : vector<1x64x64xbf16> to vector<64x64xbf16>
    %cst_99 = arith.constant dense<0.000000e+00> : vector<64x16xf32>
    %101 = tpu.matmul %100, %45, %cst_99 {dimension_numbers = #tpu.dot_dimension_numbers<[1], [0], [0], [1], [0, 0, 1, 1], [], []>} : vector<64x64xbf16>, vector<64x16xbf16>, vector<64x16xf32> -> vector<64x16xf32>
    %102 = arith.truncf %101 : vector<64x16xf32> to vector<64x16xbf16>
    %c0_100 = arith.constant 0 : index
    %c7_101 = arith.constant 7 : index
    %c0_102 = arith.constant 0 : index
    %c0_103 = arith.constant 0 : index
    %103 = vector.load %arg3[%c0_100, %c7_101, %c0_102, %c0_103] : memref<4x9x16x16xbf16, #tpu.memory_space<vmem>>, vector<1x1x16x16xbf16>
    %104 = vector.shape_cast %103 : vector<1x1x16x16xbf16> to vector<16x16xbf16>
    %cst_104 = arith.constant dense<0.000000e+00> : vector<64x16xf32>
    %105 = tpu.matmul %102, %104, %cst_104 {dimension_numbers = #tpu.dot_dimension_numbers<[1], [0], [0], [1], [0, 0, 1, 1], [], []>} : vector<64x16xbf16>, vector<16x16xbf16>, vector<64x16xf32> -> vector<64x16xf32>
    %106 = arith.addf %98, %105 : vector<64x16xf32>
    %c8_105 = arith.constant 8 : index
    %c0_106 = arith.constant 0 : index
    %c0_107 = arith.constant 0 : index
    %107 = vector.load %arg6[%c8_105, %c0_106, %c0_107] : memref<9x64x64xbf16, #tpu.memory_space<vmem>>, vector<1x64x64xbf16>
    %108 = vector.shape_cast %107 : vector<1x64x64xbf16> to vector<64x64xbf16>
    %cst_108 = arith.constant dense<0.000000e+00> : vector<64x16xf32>
    %109 = tpu.matmul %108, %45, %cst_108 {dimension_numbers = #tpu.dot_dimension_numbers<[1], [0], [0], [1], [0, 0, 1, 1], [], []>} : vector<64x64xbf16>, vector<64x16xbf16>, vector<64x16xf32> -> vector<64x16xf32>
    %110 = arith.truncf %109 : vector<64x16xf32> to vector<64x16xbf16>
    %c0_109 = arith.constant 0 : index
    %c8_110 = arith.constant 8 : index
    %c0_111 = arith.constant 0 : index
    %c0_112 = arith.constant 0 : index
    %111 = vector.load %arg3[%c0_109, %c8_110, %c0_111, %c0_112] : memref<4x9x16x16xbf16, #tpu.memory_space<vmem>>, vector<1x1x16x16xbf16>
    %112 = vector.shape_cast %111 : vector<1x1x16x16xbf16> to vector<16x16xbf16>
    %cst_113 = arith.constant dense<0.000000e+00> : vector<64x16xf32>
    %113 = tpu.matmul %110, %112, %cst_113 {dimension_numbers = #tpu.dot_dimension_numbers<[1], [0], [0], [1], [0, 0, 1, 1], [], []>} : vector<64x16xbf16>, vector<16x16xbf16>, vector<64x16xf32> -> vector<64x16xf32>
    %114 = arith.addf %106, %113 : vector<64x16xf32>
    %c1_114 = arith.constant 1 : index
    %c0_115 = arith.constant 0 : index
    %c0_116 = arith.constant 0 : index
    %115 = vector.load %arg4[%c1_114, %c0_115, %c0_116] : memref<5x1x16xf32, #tpu.memory_space<vmem>>, vector<1x1x16xf32>
    %116 = vector.shape_cast %115 : vector<1x1x16xf32> to vector<1x16xf32>
    %117 = vector.broadcast %116 : vector<1x16xf32> to vector<64x16xf32>
    %118 = arith.addf %114, %117 : vector<64x16xf32>
    %cst_117 = arith.constant 0.000000e+00 : f32
    %119 = vector.broadcast %cst_117 : f32 to vector<64x16xf32>
    %120 = arith.maximumf %118, %119 : vector<64x16xf32>
    %121 = arith.truncf %120 : vector<64x16xf32> to vector<64x16xbf16>
    %cst_118 = arith.constant 0.000000e+00 : f32
    %122 = vector.broadcast %cst_118 : f32 to vector<64x16xf32>
    %c0_119 = arith.constant 0 : index
    %c0_120 = arith.constant 0 : index
    %c0_121 = arith.constant 0 : index
    %123 = vector.load %arg6[%c0_119, %c0_120, %c0_121] : memref<9x64x64xbf16, #tpu.memory_space<vmem>>, vector<1x64x64xbf16>
    %124 = vector.shape_cast %123 : vector<1x64x64xbf16> to vector<64x64xbf16>
    %cst_122 = arith.constant dense<0.000000e+00> : vector<64x16xf32>
    %125 = tpu.matmul %124, %121, %cst_122 {dimension_numbers = #tpu.dot_dimension_numbers<[1], [0], [0], [1], [0, 0, 1, 1], [], []>} : vector<64x64xbf16>, vector<64x16xbf16>, vector<64x16xf32> -> vector<64x16xf32>
    %126 = arith.truncf %125 : vector<64x16xf32> to vector<64x16xbf16>
    %c1_123 = arith.constant 1 : index
    %c0_124 = arith.constant 0 : index
    %c0_125 = arith.constant 0 : index
    %c0_126 = arith.constant 0 : index
    %127 = vector.load %arg3[%c1_123, %c0_124, %c0_125, %c0_126] : memref<4x9x16x16xbf16, #tpu.memory_space<vmem>>, vector<1x1x16x16xbf16>
    %128 = vector.shape_cast %127 : vector<1x1x16x16xbf16> to vector<16x16xbf16>
    %cst_127 = arith.constant dense<0.000000e+00> : vector<64x16xf32>
    %129 = tpu.matmul %126, %128, %cst_127 {dimension_numbers = #tpu.dot_dimension_numbers<[1], [0], [0], [1], [0, 0, 1, 1], [], []>} : vector<64x16xbf16>, vector<16x16xbf16>, vector<64x16xf32> -> vector<64x16xf32>
    %130 = arith.addf %122, %129 : vector<64x16xf32>
    %c1_128 = arith.constant 1 : index
    %c0_129 = arith.constant 0 : index
    %c0_130 = arith.constant 0 : index
    %131 = vector.load %arg6[%c1_128, %c0_129, %c0_130] : memref<9x64x64xbf16, #tpu.memory_space<vmem>>, vector<1x64x64xbf16>
    %132 = vector.shape_cast %131 : vector<1x64x64xbf16> to vector<64x64xbf16>
    %cst_131 = arith.constant dense<0.000000e+00> : vector<64x16xf32>
    %133 = tpu.matmul %132, %121, %cst_131 {dimension_numbers = #tpu.dot_dimension_numbers<[1], [0], [0], [1], [0, 0, 1, 1], [], []>} : vector<64x64xbf16>, vector<64x16xbf16>, vector<64x16xf32> -> vector<64x16xf32>
    %134 = arith.truncf %133 : vector<64x16xf32> to vector<64x16xbf16>
    %c1_132 = arith.constant 1 : index
    %c1_133 = arith.constant 1 : index
    %c0_134 = arith.constant 0 : index
    %c0_135 = arith.constant 0 : index
    %135 = vector.load %arg3[%c1_132, %c1_133, %c0_134, %c0_135] : memref<4x9x16x16xbf16, #tpu.memory_space<vmem>>, vector<1x1x16x16xbf16>
    %136 = vector.shape_cast %135 : vector<1x1x16x16xbf16> to vector<16x16xbf16>
    %cst_136 = arith.constant dense<0.000000e+00> : vector<64x16xf32>
    %137 = tpu.matmul %134, %136, %cst_136 {dimension_numbers = #tpu.dot_dimension_numbers<[1], [0], [0], [1], [0, 0, 1, 1], [], []>} : vector<64x16xbf16>, vector<16x16xbf16>, vector<64x16xf32> -> vector<64x16xf32>
    %138 = arith.addf %130, %137 : vector<64x16xf32>
    %c2_137 = arith.constant 2 : index
    %c0_138 = arith.constant 0 : index
    %c0_139 = arith.constant 0 : index
    %139 = vector.load %arg6[%c2_137, %c0_138, %c0_139] : memref<9x64x64xbf16, #tpu.memory_space<vmem>>, vector<1x64x64xbf16>
    %140 = vector.shape_cast %139 : vector<1x64x64xbf16> to vector<64x64xbf16>
    %cst_140 = arith.constant dense<0.000000e+00> : vector<64x16xf32>
    %141 = tpu.matmul %140, %121, %cst_140 {dimension_numbers = #tpu.dot_dimension_numbers<[1], [0], [0], [1], [0, 0, 1, 1], [], []>} : vector<64x64xbf16>, vector<64x16xbf16>, vector<64x16xf32> -> vector<64x16xf32>
    %142 = arith.truncf %141 : vector<64x16xf32> to vector<64x16xbf16>
    %c1_141 = arith.constant 1 : index
    %c2_142 = arith.constant 2 : index
    %c0_143 = arith.constant 0 : index
    %c0_144 = arith.constant 0 : index
    %143 = vector.load %arg3[%c1_141, %c2_142, %c0_143, %c0_144] : memref<4x9x16x16xbf16, #tpu.memory_space<vmem>>, vector<1x1x16x16xbf16>
    %144 = vector.shape_cast %143 : vector<1x1x16x16xbf16> to vector<16x16xbf16>
    %cst_145 = arith.constant dense<0.000000e+00> : vector<64x16xf32>
    %145 = tpu.matmul %142, %144, %cst_145 {dimension_numbers = #tpu.dot_dimension_numbers<[1], [0], [0], [1], [0, 0, 1, 1], [], []>} : vector<64x16xbf16>, vector<16x16xbf16>, vector<64x16xf32> -> vector<64x16xf32>
    %146 = arith.addf %138, %145 : vector<64x16xf32>
    %c3_146 = arith.constant 3 : index
    %c0_147 = arith.constant 0 : index
    %c0_148 = arith.constant 0 : index
    %147 = vector.load %arg6[%c3_146, %c0_147, %c0_148] : memref<9x64x64xbf16, #tpu.memory_space<vmem>>, vector<1x64x64xbf16>
    %148 = vector.shape_cast %147 : vector<1x64x64xbf16> to vector<64x64xbf16>
    %cst_149 = arith.constant dense<0.000000e+00> : vector<64x16xf32>
    %149 = tpu.matmul %148, %121, %cst_149 {dimension_numbers = #tpu.dot_dimension_numbers<[1], [0], [0], [1], [0, 0, 1, 1], [], []>} : vector<64x64xbf16>, vector<64x16xbf16>, vector<64x16xf32> -> vector<64x16xf32>
    %150 = arith.truncf %149 : vector<64x16xf32> to vector<64x16xbf16>
    %c1_150 = arith.constant 1 : index
    %c3_151 = arith.constant 3 : index
    %c0_152 = arith.constant 0 : index
    %c0_153 = arith.constant 0 : index
    %151 = vector.load %arg3[%c1_150, %c3_151, %c0_152, %c0_153] : memref<4x9x16x16xbf16, #tpu.memory_space<vmem>>, vector<1x1x16x16xbf16>
    %152 = vector.shape_cast %151 : vector<1x1x16x16xbf16> to vector<16x16xbf16>
    %cst_154 = arith.constant dense<0.000000e+00> : vector<64x16xf32>
    %153 = tpu.matmul %150, %152, %cst_154 {dimension_numbers = #tpu.dot_dimension_numbers<[1], [0], [0], [1], [0, 0, 1, 1], [], []>} : vector<64x16xbf16>, vector<16x16xbf16>, vector<64x16xf32> -> vector<64x16xf32>
    %154 = arith.addf %146, %153 : vector<64x16xf32>
    %c1_155 = arith.constant 1 : index
    %c4_156 = arith.constant 4 : index
    %c0_157 = arith.constant 0 : index
    %c0_158 = arith.constant 0 : index
    %155 = vector.load %arg3[%c1_155, %c4_156, %c0_157, %c0_158] : memref<4x9x16x16xbf16, #tpu.memory_space<vmem>>, vector<1x1x16x16xbf16>
    %156 = vector.shape_cast %155 : vector<1x1x16x16xbf16> to vector<16x16xbf16>
    %cst_159 = arith.constant dense<0.000000e+00> : vector<64x16xf32>
    %157 = tpu.matmul %121, %156, %cst_159 {dimension_numbers = #tpu.dot_dimension_numbers<[1], [0], [0], [1], [0, 0, 1, 1], [], []>} : vector<64x16xbf16>, vector<16x16xbf16>, vector<64x16xf32> -> vector<64x16xf32>
    %158 = arith.addf %154, %157 : vector<64x16xf32>
    %c5_160 = arith.constant 5 : index
    %c0_161 = arith.constant 0 : index
    %c0_162 = arith.constant 0 : index
    %159 = vector.load %arg6[%c5_160, %c0_161, %c0_162] : memref<9x64x64xbf16, #tpu.memory_space<vmem>>, vector<1x64x64xbf16>
    %160 = vector.shape_cast %159 : vector<1x64x64xbf16> to vector<64x64xbf16>
    %cst_163 = arith.constant dense<0.000000e+00> : vector<64x16xf32>
    %161 = tpu.matmul %160, %121, %cst_163 {dimension_numbers = #tpu.dot_dimension_numbers<[1], [0], [0], [1], [0, 0, 1, 1], [], []>} : vector<64x64xbf16>, vector<64x16xbf16>, vector<64x16xf32> -> vector<64x16xf32>
    %162 = arith.truncf %161 : vector<64x16xf32> to vector<64x16xbf16>
    %c1_164 = arith.constant 1 : index
    %c5_165 = arith.constant 5 : index
    %c0_166 = arith.constant 0 : index
    %c0_167 = arith.constant 0 : index
    %163 = vector.load %arg3[%c1_164, %c5_165, %c0_166, %c0_167] : memref<4x9x16x16xbf16, #tpu.memory_space<vmem>>, vector<1x1x16x16xbf16>
    %164 = vector.shape_cast %163 : vector<1x1x16x16xbf16> to vector<16x16xbf16>
    %cst_168 = arith.constant dense<0.000000e+00> : vector<64x16xf32>
    %165 = tpu.matmul %162, %164, %cst_168 {dimension_numbers = #tpu.dot_dimension_numbers<[1], [0], [0], [1], [0, 0, 1, 1], [], []>} : vector<64x16xbf16>, vector<16x16xbf16>, vector<64x16xf32> -> vector<64x16xf32>
    %166 = arith.addf %158, %165 : vector<64x16xf32>
    %c6_169 = arith.constant 6 : index
    %c0_170 = arith.constant 0 : index
    %c0_171 = arith.constant 0 : index
    %167 = vector.load %arg6[%c6_169, %c0_170, %c0_171] : memref<9x64x64xbf16, #tpu.memory_space<vmem>>, vector<1x64x64xbf16>
    %168 = vector.shape_cast %167 : vector<1x64x64xbf16> to vector<64x64xbf16>
    %cst_172 = arith.constant dense<0.000000e+00> : vector<64x16xf32>
    %169 = tpu.matmul %168, %121, %cst_172 {dimension_numbers = #tpu.dot_dimension_numbers<[1], [0], [0], [1], [0, 0, 1, 1], [], []>} : vector<64x64xbf16>, vector<64x16xbf16>, vector<64x16xf32> -> vector<64x16xf32>
    %170 = arith.truncf %169 : vector<64x16xf32> to vector<64x16xbf16>
    %c1_173 = arith.constant 1 : index
    %c6_174 = arith.constant 6 : index
    %c0_175 = arith.constant 0 : index
    %c0_176 = arith.constant 0 : index
    %171 = vector.load %arg3[%c1_173, %c6_174, %c0_175, %c0_176] : memref<4x9x16x16xbf16, #tpu.memory_space<vmem>>, vector<1x1x16x16xbf16>
    %172 = vector.shape_cast %171 : vector<1x1x16x16xbf16> to vector<16x16xbf16>
    %cst_177 = arith.constant dense<0.000000e+00> : vector<64x16xf32>
    %173 = tpu.matmul %170, %172, %cst_177 {dimension_numbers = #tpu.dot_dimension_numbers<[1], [0], [0], [1], [0, 0, 1, 1], [], []>} : vector<64x16xbf16>, vector<16x16xbf16>, vector<64x16xf32> -> vector<64x16xf32>
    %174 = arith.addf %166, %173 : vector<64x16xf32>
    %c7_178 = arith.constant 7 : index
    %c0_179 = arith.constant 0 : index
    %c0_180 = arith.constant 0 : index
    %175 = vector.load %arg6[%c7_178, %c0_179, %c0_180] : memref<9x64x64xbf16, #tpu.memory_space<vmem>>, vector<1x64x64xbf16>
    %176 = vector.shape_cast %175 : vector<1x64x64xbf16> to vector<64x64xbf16>
    %cst_181 = arith.constant dense<0.000000e+00> : vector<64x16xf32>
    %177 = tpu.matmul %176, %121, %cst_181 {dimension_numbers = #tpu.dot_dimension_numbers<[1], [0], [0], [1], [0, 0, 1, 1], [], []>} : vector<64x64xbf16>, vector<64x16xbf16>, vector<64x16xf32> -> vector<64x16xf32>
    %178 = arith.truncf %177 : vector<64x16xf32> to vector<64x16xbf16>
    %c1_182 = arith.constant 1 : index
    %c7_183 = arith.constant 7 : index
    %c0_184 = arith.constant 0 : index
    %c0_185 = arith.constant 0 : index
    %179 = vector.load %arg3[%c1_182, %c7_183, %c0_184, %c0_185] : memref<4x9x16x16xbf16, #tpu.memory_space<vmem>>, vector<1x1x16x16xbf16>
    %180 = vector.shape_cast %179 : vector<1x1x16x16xbf16> to vector<16x16xbf16>
    %cst_186 = arith.constant dense<0.000000e+00> : vector<64x16xf32>
    %181 = tpu.matmul %178, %180, %cst_186 {dimension_numbers = #tpu.dot_dimension_numbers<[1], [0], [0], [1], [0, 0, 1, 1], [], []>} : vector<64x16xbf16>, vector<16x16xbf16>, vector<64x16xf32> -> vector<64x16xf32>
    %182 = arith.addf %174, %181 : vector<64x16xf32>
    %c8_187 = arith.constant 8 : index
    %c0_188 = arith.constant 0 : index
    %c0_189 = arith.constant 0 : index
    %183 = vector.load %arg6[%c8_187, %c0_188, %c0_189] : memref<9x64x64xbf16, #tpu.memory_space<vmem>>, vector<1x64x64xbf16>
    %184 = vector.shape_cast %183 : vector<1x64x64xbf16> to vector<64x64xbf16>
    %cst_190 = arith.constant dense<0.000000e+00> : vector<64x16xf32>
    %185 = tpu.matmul %184, %121, %cst_190 {dimension_numbers = #tpu.dot_dimension_numbers<[1], [0], [0], [1], [0, 0, 1, 1], [], []>} : vector<64x64xbf16>, vector<64x16xbf16>, vector<64x16xf32> -> vector<64x16xf32>
    %186 = arith.truncf %185 : vector<64x16xf32> to vector<64x16xbf16>
    %c1_191 = arith.constant 1 : index
    %c8_192 = arith.constant 8 : index
    %c0_193 = arith.constant 0 : index
    %c0_194 = arith.constant 0 : index
    %187 = vector.load %arg3[%c1_191, %c8_192, %c0_193, %c0_194] : memref<4x9x16x16xbf16, #tpu.memory_space<vmem>>, vector<1x1x16x16xbf16>
    %188 = vector.shape_cast %187 : vector<1x1x16x16xbf16> to vector<16x16xbf16>
    %cst_195 = arith.constant dense<0.000000e+00> : vector<64x16xf32>
    %189 = tpu.matmul %186, %188, %cst_195 {dimension_numbers = #tpu.dot_dimension_numbers<[1], [0], [0], [1], [0, 0, 1, 1], [], []>} : vector<64x16xbf16>, vector<16x16xbf16>, vector<64x16xf32> -> vector<64x16xf32>
    %190 = arith.addf %182, %189 : vector<64x16xf32>
    %c2_196 = arith.constant 2 : index
    %c0_197 = arith.constant 0 : index
    %c0_198 = arith.constant 0 : index
    %191 = vector.load %arg4[%c2_196, %c0_197, %c0_198] : memref<5x1x16xf32, #tpu.memory_space<vmem>>, vector<1x1x16xf32>
    %192 = vector.shape_cast %191 : vector<1x1x16xf32> to vector<1x16xf32>
    %193 = vector.broadcast %192 : vector<1x16xf32> to vector<64x16xf32>
    %194 = arith.addf %190, %193 : vector<64x16xf32>
    %195 = arith.addf %194, %44 : vector<64x16xf32>
    %cst_199 = arith.constant 0.000000e+00 : f32
    %196 = vector.broadcast %cst_199 : f32 to vector<64x16xf32>
    %197 = arith.maximumf %195, %196 : vector<64x16xf32>
    %198 = arith.truncf %197 : vector<64x16xf32> to vector<64x16xbf16>
    %cst_200 = arith.constant 0.000000e+00 : f32
    %199 = vector.broadcast %cst_200 : f32 to vector<64x16xf32>
    %c0_201 = arith.constant 0 : index
    %c0_202 = arith.constant 0 : index
    %c0_203 = arith.constant 0 : index
    %200 = vector.load %arg6[%c0_201, %c0_202, %c0_203] : memref<9x64x64xbf16, #tpu.memory_space<vmem>>, vector<1x64x64xbf16>
    %201 = vector.shape_cast %200 : vector<1x64x64xbf16> to vector<64x64xbf16>
    %cst_204 = arith.constant dense<0.000000e+00> : vector<64x16xf32>
    %202 = tpu.matmul %201, %198, %cst_204 {dimension_numbers = #tpu.dot_dimension_numbers<[1], [0], [0], [1], [0, 0, 1, 1], [], []>} : vector<64x64xbf16>, vector<64x16xbf16>, vector<64x16xf32> -> vector<64x16xf32>
    %203 = arith.truncf %202 : vector<64x16xf32> to vector<64x16xbf16>
    %c2_205 = arith.constant 2 : index
    %c0_206 = arith.constant 0 : index
    %c0_207 = arith.constant 0 : index
    %c0_208 = arith.constant 0 : index
    %204 = vector.load %arg3[%c2_205, %c0_206, %c0_207, %c0_208] : memref<4x9x16x16xbf16, #tpu.memory_space<vmem>>, vector<1x1x16x16xbf16>
    %205 = vector.shape_cast %204 : vector<1x1x16x16xbf16> to vector<16x16xbf16>
    %cst_209 = arith.constant dense<0.000000e+00> : vector<64x16xf32>
    %206 = tpu.matmul %203, %205, %cst_209 {dimension_numbers = #tpu.dot_dimension_numbers<[1], [0], [0], [1], [0, 0, 1, 1], [], []>} : vector<64x16xbf16>, vector<16x16xbf16>, vector<64x16xf32> -> vector<64x16xf32>
    %207 = arith.addf %199, %206 : vector<64x16xf32>
    %c1_210 = arith.constant 1 : index
    %c0_211 = arith.constant 0 : index
    %c0_212 = arith.constant 0 : index
    %208 = vector.load %arg6[%c1_210, %c0_211, %c0_212] : memref<9x64x64xbf16, #tpu.memory_space<vmem>>, vector<1x64x64xbf16>
    %209 = vector.shape_cast %208 : vector<1x64x64xbf16> to vector<64x64xbf16>
    %cst_213 = arith.constant dense<0.000000e+00> : vector<64x16xf32>
    %210 = tpu.matmul %209, %198, %cst_213 {dimension_numbers = #tpu.dot_dimension_numbers<[1], [0], [0], [1], [0, 0, 1, 1], [], []>} : vector<64x64xbf16>, vector<64x16xbf16>, vector<64x16xf32> -> vector<64x16xf32>
    %211 = arith.truncf %210 : vector<64x16xf32> to vector<64x16xbf16>
    %c2_214 = arith.constant 2 : index
    %c1_215 = arith.constant 1 : index
    %c0_216 = arith.constant 0 : index
    %c0_217 = arith.constant 0 : index
    %212 = vector.load %arg3[%c2_214, %c1_215, %c0_216, %c0_217] : memref<4x9x16x16xbf16, #tpu.memory_space<vmem>>, vector<1x1x16x16xbf16>
    %213 = vector.shape_cast %212 : vector<1x1x16x16xbf16> to vector<16x16xbf16>
    %cst_218 = arith.constant dense<0.000000e+00> : vector<64x16xf32>
    %214 = tpu.matmul %211, %213, %cst_218 {dimension_numbers = #tpu.dot_dimension_numbers<[1], [0], [0], [1], [0, 0, 1, 1], [], []>} : vector<64x16xbf16>, vector<16x16xbf16>, vector<64x16xf32> -> vector<64x16xf32>
    %215 = arith.addf %207, %214 : vector<64x16xf32>
    %c2_219 = arith.constant 2 : index
    %c0_220 = arith.constant 0 : index
    %c0_221 = arith.constant 0 : index
    %216 = vector.load %arg6[%c2_219, %c0_220, %c0_221] : memref<9x64x64xbf16, #tpu.memory_space<vmem>>, vector<1x64x64xbf16>
    %217 = vector.shape_cast %216 : vector<1x64x64xbf16> to vector<64x64xbf16>
    %cst_222 = arith.constant dense<0.000000e+00> : vector<64x16xf32>
    %218 = tpu.matmul %217, %198, %cst_222 {dimension_numbers = #tpu.dot_dimension_numbers<[1], [0], [0], [1], [0, 0, 1, 1], [], []>} : vector<64x64xbf16>, vector<64x16xbf16>, vector<64x16xf32> -> vector<64x16xf32>
    %219 = arith.truncf %218 : vector<64x16xf32> to vector<64x16xbf16>
    %c2_223 = arith.constant 2 : index
    %c2_224 = arith.constant 2 : index
    %c0_225 = arith.constant 0 : index
    %c0_226 = arith.constant 0 : index
    %220 = vector.load %arg3[%c2_223, %c2_224, %c0_225, %c0_226] : memref<4x9x16x16xbf16, #tpu.memory_space<vmem>>, vector<1x1x16x16xbf16>
    %221 = vector.shape_cast %220 : vector<1x1x16x16xbf16> to vector<16x16xbf16>
    %cst_227 = arith.constant dense<0.000000e+00> : vector<64x16xf32>
    %222 = tpu.matmul %219, %221, %cst_227 {dimension_numbers = #tpu.dot_dimension_numbers<[1], [0], [0], [1], [0, 0, 1, 1], [], []>} : vector<64x16xbf16>, vector<16x16xbf16>, vector<64x16xf32> -> vector<64x16xf32>
    %223 = arith.addf %215, %222 : vector<64x16xf32>
    %c3_228 = arith.constant 3 : index
    %c0_229 = arith.constant 0 : index
    %c0_230 = arith.constant 0 : index
    %224 = vector.load %arg6[%c3_228, %c0_229, %c0_230] : memref<9x64x64xbf16, #tpu.memory_space<vmem>>, vector<1x64x64xbf16>
    %225 = vector.shape_cast %224 : vector<1x64x64xbf16> to vector<64x64xbf16>
    %cst_231 = arith.constant dense<0.000000e+00> : vector<64x16xf32>
    %226 = tpu.matmul %225, %198, %cst_231 {dimension_numbers = #tpu.dot_dimension_numbers<[1], [0], [0], [1], [0, 0, 1, 1], [], []>} : vector<64x64xbf16>, vector<64x16xbf16>, vector<64x16xf32> -> vector<64x16xf32>
    %227 = arith.truncf %226 : vector<64x16xf32> to vector<64x16xbf16>
    %c2_232 = arith.constant 2 : index
    %c3_233 = arith.constant 3 : index
    %c0_234 = arith.constant 0 : index
    %c0_235 = arith.constant 0 : index
    %228 = vector.load %arg3[%c2_232, %c3_233, %c0_234, %c0_235] : memref<4x9x16x16xbf16, #tpu.memory_space<vmem>>, vector<1x1x16x16xbf16>
    %229 = vector.shape_cast %228 : vector<1x1x16x16xbf16> to vector<16x16xbf16>
    %cst_236 = arith.constant dense<0.000000e+00> : vector<64x16xf32>
    %230 = tpu.matmul %227, %229, %cst_236 {dimension_numbers = #tpu.dot_dimension_numbers<[1], [0], [0], [1], [0, 0, 1, 1], [], []>} : vector<64x16xbf16>, vector<16x16xbf16>, vector<64x16xf32> -> vector<64x16xf32>
    %231 = arith.addf %223, %230 : vector<64x16xf32>
    %c2_237 = arith.constant 2 : index
    %c4_238 = arith.constant 4 : index
    %c0_239 = arith.constant 0 : index
    %c0_240 = arith.constant 0 : index
    %232 = vector.load %arg3[%c2_237, %c4_238, %c0_239, %c0_240] : memref<4x9x16x16xbf16, #tpu.memory_space<vmem>>, vector<1x1x16x16xbf16>
    %233 = vector.shape_cast %232 : vector<1x1x16x16xbf16> to vector<16x16xbf16>
    %cst_241 = arith.constant dense<0.000000e+00> : vector<64x16xf32>
    %234 = tpu.matmul %198, %233, %cst_241 {dimension_numbers = #tpu.dot_dimension_numbers<[1], [0], [0], [1], [0, 0, 1, 1], [], []>} : vector<64x16xbf16>, vector<16x16xbf16>, vector<64x16xf32> -> vector<64x16xf32>
    %235 = arith.addf %231, %234 : vector<64x16xf32>
    %c5_242 = arith.constant 5 : index
    %c0_243 = arith.constant 0 : index
    %c0_244 = arith.constant 0 : index
    %236 = vector.load %arg6[%c5_242, %c0_243, %c0_244] : memref<9x64x64xbf16, #tpu.memory_space<vmem>>, vector<1x64x64xbf16>
    %237 = vector.shape_cast %236 : vector<1x64x64xbf16> to vector<64x64xbf16>
    %cst_245 = arith.constant dense<0.000000e+00> : vector<64x16xf32>
    %238 = tpu.matmul %237, %198, %cst_245 {dimension_numbers = #tpu.dot_dimension_numbers<[1], [0], [0], [1], [0, 0, 1, 1], [], []>} : vector<64x64xbf16>, vector<64x16xbf16>, vector<64x16xf32> -> vector<64x16xf32>
    %239 = arith.truncf %238 : vector<64x16xf32> to vector<64x16xbf16>
    %c2_246 = arith.constant 2 : index
    %c5_247 = arith.constant 5 : index
    %c0_248 = arith.constant 0 : index
    %c0_249 = arith.constant 0 : index
    %240 = vector.load %arg3[%c2_246, %c5_247, %c0_248, %c0_249] : memref<4x9x16x16xbf16, #tpu.memory_space<vmem>>, vector<1x1x16x16xbf16>
    %241 = vector.shape_cast %240 : vector<1x1x16x16xbf16> to vector<16x16xbf16>
    %cst_250 = arith.constant dense<0.000000e+00> : vector<64x16xf32>
    %242 = tpu.matmul %239, %241, %cst_250 {dimension_numbers = #tpu.dot_dimension_numbers<[1], [0], [0], [1], [0, 0, 1, 1], [], []>} : vector<64x16xbf16>, vector<16x16xbf16>, vector<64x16xf32> -> vector<64x16xf32>
    %243 = arith.addf %235, %242 : vector<64x16xf32>
    %c6_251 = arith.constant 6 : index
    %c0_252 = arith.constant 0 : index
    %c0_253 = arith.constant 0 : index
    %244 = vector.load %arg6[%c6_251, %c0_252, %c0_253] : memref<9x64x64xbf16, #tpu.memory_space<vmem>>, vector<1x64x64xbf16>
    %245 = vector.shape_cast %244 : vector<1x64x64xbf16> to vector<64x64xbf16>
    %cst_254 = arith.constant dense<0.000000e+00> : vector<64x16xf32>
    %246 = tpu.matmul %245, %198, %cst_254 {dimension_numbers = #tpu.dot_dimension_numbers<[1], [0], [0], [1], [0, 0, 1, 1], [], []>} : vector<64x64xbf16>, vector<64x16xbf16>, vector<64x16xf32> -> vector<64x16xf32>
    %247 = arith.truncf %246 : vector<64x16xf32> to vector<64x16xbf16>
    %c2_255 = arith.constant 2 : index
    %c6_256 = arith.constant 6 : index
    %c0_257 = arith.constant 0 : index
    %c0_258 = arith.constant 0 : index
    %248 = vector.load %arg3[%c2_255, %c6_256, %c0_257, %c0_258] : memref<4x9x16x16xbf16, #tpu.memory_space<vmem>>, vector<1x1x16x16xbf16>
    %249 = vector.shape_cast %248 : vector<1x1x16x16xbf16> to vector<16x16xbf16>
    %cst_259 = arith.constant dense<0.000000e+00> : vector<64x16xf32>
    %250 = tpu.matmul %247, %249, %cst_259 {dimension_numbers = #tpu.dot_dimension_numbers<[1], [0], [0], [1], [0, 0, 1, 1], [], []>} : vector<64x16xbf16>, vector<16x16xbf16>, vector<64x16xf32> -> vector<64x16xf32>
    %251 = arith.addf %243, %250 : vector<64x16xf32>
    %c7_260 = arith.constant 7 : index
    %c0_261 = arith.constant 0 : index
    %c0_262 = arith.constant 0 : index
    %252 = vector.load %arg6[%c7_260, %c0_261, %c0_262] : memref<9x64x64xbf16, #tpu.memory_space<vmem>>, vector<1x64x64xbf16>
    %253 = vector.shape_cast %252 : vector<1x64x64xbf16> to vector<64x64xbf16>
    %cst_263 = arith.constant dense<0.000000e+00> : vector<64x16xf32>
    %254 = tpu.matmul %253, %198, %cst_263 {dimension_numbers = #tpu.dot_dimension_numbers<[1], [0], [0], [1], [0, 0, 1, 1], [], []>} : vector<64x64xbf16>, vector<64x16xbf16>, vector<64x16xf32> -> vector<64x16xf32>
    %255 = arith.truncf %254 : vector<64x16xf32> to vector<64x16xbf16>
    %c2_264 = arith.constant 2 : index
    %c7_265 = arith.constant 7 : index
    %c0_266 = arith.constant 0 : index
    %c0_267 = arith.constant 0 : index
    %256 = vector.load %arg3[%c2_264, %c7_265, %c0_266, %c0_267] : memref<4x9x16x16xbf16, #tpu.memory_space<vmem>>, vector<1x1x16x16xbf16>
    %257 = vector.shape_cast %256 : vector<1x1x16x16xbf16> to vector<16x16xbf16>
    %cst_268 = arith.constant dense<0.000000e+00> : vector<64x16xf32>
    %258 = tpu.matmul %255, %257, %cst_268 {dimension_numbers = #tpu.dot_dimension_numbers<[1], [0], [0], [1], [0, 0, 1, 1], [], []>} : vector<64x16xbf16>, vector<16x16xbf16>, vector<64x16xf32> -> vector<64x16xf32>
    %259 = arith.addf %251, %258 : vector<64x16xf32>
    %c8_269 = arith.constant 8 : index
    %c0_270 = arith.constant 0 : index
    %c0_271 = arith.constant 0 : index
    %260 = vector.load %arg6[%c8_269, %c0_270, %c0_271] : memref<9x64x64xbf16, #tpu.memory_space<vmem>>, vector<1x64x64xbf16>
    %261 = vector.shape_cast %260 : vector<1x64x64xbf16> to vector<64x64xbf16>
    %cst_272 = arith.constant dense<0.000000e+00> : vector<64x16xf32>
    %262 = tpu.matmul %261, %198, %cst_272 {dimension_numbers = #tpu.dot_dimension_numbers<[1], [0], [0], [1], [0, 0, 1, 1], [], []>} : vector<64x64xbf16>, vector<64x16xbf16>, vector<64x16xf32> -> vector<64x16xf32>
    %263 = arith.truncf %262 : vector<64x16xf32> to vector<64x16xbf16>
    %c2_273 = arith.constant 2 : index
    %c8_274 = arith.constant 8 : index
    %c0_275 = arith.constant 0 : index
    %c0_276 = arith.constant 0 : index
    %264 = vector.load %arg3[%c2_273, %c8_274, %c0_275, %c0_276] : memref<4x9x16x16xbf16, #tpu.memory_space<vmem>>, vector<1x1x16x16xbf16>
    %265 = vector.shape_cast %264 : vector<1x1x16x16xbf16> to vector<16x16xbf16>
    %cst_277 = arith.constant dense<0.000000e+00> : vector<64x16xf32>
    %266 = tpu.matmul %263, %265, %cst_277 {dimension_numbers = #tpu.dot_dimension_numbers<[1], [0], [0], [1], [0, 0, 1, 1], [], []>} : vector<64x16xbf16>, vector<16x16xbf16>, vector<64x16xf32> -> vector<64x16xf32>
    %267 = arith.addf %259, %266 : vector<64x16xf32>
    %c3_278 = arith.constant 3 : index
    %c0_279 = arith.constant 0 : index
    %c0_280 = arith.constant 0 : index
    %268 = vector.load %arg4[%c3_278, %c0_279, %c0_280] : memref<5x1x16xf32, #tpu.memory_space<vmem>>, vector<1x1x16xf32>
    %269 = vector.shape_cast %268 : vector<1x1x16xf32> to vector<1x16xf32>
    %270 = vector.broadcast %269 : vector<1x16xf32> to vector<64x16xf32>
    %271 = arith.addf %267, %270 : vector<64x16xf32>
    %cst_281 = arith.constant 0.000000e+00 : f32
    %272 = vector.broadcast %cst_281 : f32 to vector<64x16xf32>
    %273 = arith.maximumf %271, %272 : vector<64x16xf32>
    %274 = arith.truncf %273 : vector<64x16xf32> to vector<64x16xbf16>
    %cst_282 = arith.constant 0.000000e+00 : f32
    %275 = vector.broadcast %cst_282 : f32 to vector<64x16xf32>
    %c0_283 = arith.constant 0 : index
    %c0_284 = arith.constant 0 : index
    %c0_285 = arith.constant 0 : index
    %276 = vector.load %arg6[%c0_283, %c0_284, %c0_285] : memref<9x64x64xbf16, #tpu.memory_space<vmem>>, vector<1x64x64xbf16>
    %277 = vector.shape_cast %276 : vector<1x64x64xbf16> to vector<64x64xbf16>
    %cst_286 = arith.constant dense<0.000000e+00> : vector<64x16xf32>
    %278 = tpu.matmul %277, %274, %cst_286 {dimension_numbers = #tpu.dot_dimension_numbers<[1], [0], [0], [1], [0, 0, 1, 1], [], []>} : vector<64x64xbf16>, vector<64x16xbf16>, vector<64x16xf32> -> vector<64x16xf32>
    %279 = arith.truncf %278 : vector<64x16xf32> to vector<64x16xbf16>
    %c3_287 = arith.constant 3 : index
    %c0_288 = arith.constant 0 : index
    %c0_289 = arith.constant 0 : index
    %c0_290 = arith.constant 0 : index
    %280 = vector.load %arg3[%c3_287, %c0_288, %c0_289, %c0_290] : memref<4x9x16x16xbf16, #tpu.memory_space<vmem>>, vector<1x1x16x16xbf16>
    %281 = vector.shape_cast %280 : vector<1x1x16x16xbf16> to vector<16x16xbf16>
    %cst_291 = arith.constant dense<0.000000e+00> : vector<64x16xf32>
    %282 = tpu.matmul %279, %281, %cst_291 {dimension_numbers = #tpu.dot_dimension_numbers<[1], [0], [0], [1], [0, 0, 1, 1], [], []>} : vector<64x16xbf16>, vector<16x16xbf16>, vector<64x16xf32> -> vector<64x16xf32>
    %283 = arith.addf %275, %282 : vector<64x16xf32>
    %c1_292 = arith.constant 1 : index
    %c0_293 = arith.constant 0 : index
    %c0_294 = arith.constant 0 : index
    %284 = vector.load %arg6[%c1_292, %c0_293, %c0_294] : memref<9x64x64xbf16, #tpu.memory_space<vmem>>, vector<1x64x64xbf16>
    %285 = vector.shape_cast %284 : vector<1x64x64xbf16> to vector<64x64xbf16>
    %cst_295 = arith.constant dense<0.000000e+00> : vector<64x16xf32>
    %286 = tpu.matmul %285, %274, %cst_295 {dimension_numbers = #tpu.dot_dimension_numbers<[1], [0], [0], [1], [0, 0, 1, 1], [], []>} : vector<64x64xbf16>, vector<64x16xbf16>, vector<64x16xf32> -> vector<64x16xf32>
    %287 = arith.truncf %286 : vector<64x16xf32> to vector<64x16xbf16>
    %c3_296 = arith.constant 3 : index
    %c1_297 = arith.constant 1 : index
    %c0_298 = arith.constant 0 : index
    %c0_299 = arith.constant 0 : index
    %288 = vector.load %arg3[%c3_296, %c1_297, %c0_298, %c0_299] : memref<4x9x16x16xbf16, #tpu.memory_space<vmem>>, vector<1x1x16x16xbf16>
    %289 = vector.shape_cast %288 : vector<1x1x16x16xbf16> to vector<16x16xbf16>
    %cst_300 = arith.constant dense<0.000000e+00> : vector<64x16xf32>
    %290 = tpu.matmul %287, %289, %cst_300 {dimension_numbers = #tpu.dot_dimension_numbers<[1], [0], [0], [1], [0, 0, 1, 1], [], []>} : vector<64x16xbf16>, vector<16x16xbf16>, vector<64x16xf32> -> vector<64x16xf32>
    %291 = arith.addf %283, %290 : vector<64x16xf32>
    %c2_301 = arith.constant 2 : index
    %c0_302 = arith.constant 0 : index
    %c0_303 = arith.constant 0 : index
    %292 = vector.load %arg6[%c2_301, %c0_302, %c0_303] : memref<9x64x64xbf16, #tpu.memory_space<vmem>>, vector<1x64x64xbf16>
    %293 = vector.shape_cast %292 : vector<1x64x64xbf16> to vector<64x64xbf16>
    %cst_304 = arith.constant dense<0.000000e+00> : vector<64x16xf32>
    %294 = tpu.matmul %293, %274, %cst_304 {dimension_numbers = #tpu.dot_dimension_numbers<[1], [0], [0], [1], [0, 0, 1, 1], [], []>} : vector<64x64xbf16>, vector<64x16xbf16>, vector<64x16xf32> -> vector<64x16xf32>
    %295 = arith.truncf %294 : vector<64x16xf32> to vector<64x16xbf16>
    %c3_305 = arith.constant 3 : index
    %c2_306 = arith.constant 2 : index
    %c0_307 = arith.constant 0 : index
    %c0_308 = arith.constant 0 : index
    %296 = vector.load %arg3[%c3_305, %c2_306, %c0_307, %c0_308] : memref<4x9x16x16xbf16, #tpu.memory_space<vmem>>, vector<1x1x16x16xbf16>
    %297 = vector.shape_cast %296 : vector<1x1x16x16xbf16> to vector<16x16xbf16>
    %cst_309 = arith.constant dense<0.000000e+00> : vector<64x16xf32>
    %298 = tpu.matmul %295, %297, %cst_309 {dimension_numbers = #tpu.dot_dimension_numbers<[1], [0], [0], [1], [0, 0, 1, 1], [], []>} : vector<64x16xbf16>, vector<16x16xbf16>, vector<64x16xf32> -> vector<64x16xf32>
    %299 = arith.addf %291, %298 : vector<64x16xf32>
    %c3_310 = arith.constant 3 : index
    %c0_311 = arith.constant 0 : index
    %c0_312 = arith.constant 0 : index
    %300 = vector.load %arg6[%c3_310, %c0_311, %c0_312] : memref<9x64x64xbf16, #tpu.memory_space<vmem>>, vector<1x64x64xbf16>
    %301 = vector.shape_cast %300 : vector<1x64x64xbf16> to vector<64x64xbf16>
    %cst_313 = arith.constant dense<0.000000e+00> : vector<64x16xf32>
    %302 = tpu.matmul %301, %274, %cst_313 {dimension_numbers = #tpu.dot_dimension_numbers<[1], [0], [0], [1], [0, 0, 1, 1], [], []>} : vector<64x64xbf16>, vector<64x16xbf16>, vector<64x16xf32> -> vector<64x16xf32>
    %303 = arith.truncf %302 : vector<64x16xf32> to vector<64x16xbf16>
    %c3_314 = arith.constant 3 : index
    %c3_315 = arith.constant 3 : index
    %c0_316 = arith.constant 0 : index
    %c0_317 = arith.constant 0 : index
    %304 = vector.load %arg3[%c3_314, %c3_315, %c0_316, %c0_317] : memref<4x9x16x16xbf16, #tpu.memory_space<vmem>>, vector<1x1x16x16xbf16>
    %305 = vector.shape_cast %304 : vector<1x1x16x16xbf16> to vector<16x16xbf16>
    %cst_318 = arith.constant dense<0.000000e+00> : vector<64x16xf32>
    %306 = tpu.matmul %303, %305, %cst_318 {dimension_numbers = #tpu.dot_dimension_numbers<[1], [0], [0], [1], [0, 0, 1, 1], [], []>} : vector<64x16xbf16>, vector<16x16xbf16>, vector<64x16xf32> -> vector<64x16xf32>
    %307 = arith.addf %299, %306 : vector<64x16xf32>
    %c3_319 = arith.constant 3 : index
    %c4_320 = arith.constant 4 : index
    %c0_321 = arith.constant 0 : index
    %c0_322 = arith.constant 0 : index
    %308 = vector.load %arg3[%c3_319, %c4_320, %c0_321, %c0_322] : memref<4x9x16x16xbf16, #tpu.memory_space<vmem>>, vector<1x1x16x16xbf16>
    %309 = vector.shape_cast %308 : vector<1x1x16x16xbf16> to vector<16x16xbf16>
    %cst_323 = arith.constant dense<0.000000e+00> : vector<64x16xf32>
    %310 = tpu.matmul %274, %309, %cst_323 {dimension_numbers = #tpu.dot_dimension_numbers<[1], [0], [0], [1], [0, 0, 1, 1], [], []>} : vector<64x16xbf16>, vector<16x16xbf16>, vector<64x16xf32> -> vector<64x16xf32>
    %311 = arith.addf %307, %310 : vector<64x16xf32>
    %c5_324 = arith.constant 5 : index
    %c0_325 = arith.constant 0 : index
    %c0_326 = arith.constant 0 : index
    %312 = vector.load %arg6[%c5_324, %c0_325, %c0_326] : memref<9x64x64xbf16, #tpu.memory_space<vmem>>, vector<1x64x64xbf16>
    %313 = vector.shape_cast %312 : vector<1x64x64xbf16> to vector<64x64xbf16>
    %cst_327 = arith.constant dense<0.000000e+00> : vector<64x16xf32>
    %314 = tpu.matmul %313, %274, %cst_327 {dimension_numbers = #tpu.dot_dimension_numbers<[1], [0], [0], [1], [0, 0, 1, 1], [], []>} : vector<64x64xbf16>, vector<64x16xbf16>, vector<64x16xf32> -> vector<64x16xf32>
    %315 = arith.truncf %314 : vector<64x16xf32> to vector<64x16xbf16>
    %c3_328 = arith.constant 3 : index
    %c5_329 = arith.constant 5 : index
    %c0_330 = arith.constant 0 : index
    %c0_331 = arith.constant 0 : index
    %316 = vector.load %arg3[%c3_328, %c5_329, %c0_330, %c0_331] : memref<4x9x16x16xbf16, #tpu.memory_space<vmem>>, vector<1x1x16x16xbf16>
    %317 = vector.shape_cast %316 : vector<1x1x16x16xbf16> to vector<16x16xbf16>
    %cst_332 = arith.constant dense<0.000000e+00> : vector<64x16xf32>
    %318 = tpu.matmul %315, %317, %cst_332 {dimension_numbers = #tpu.dot_dimension_numbers<[1], [0], [0], [1], [0, 0, 1, 1], [], []>} : vector<64x16xbf16>, vector<16x16xbf16>, vector<64x16xf32> -> vector<64x16xf32>
    %319 = arith.addf %311, %318 : vector<64x16xf32>
    %c6_333 = arith.constant 6 : index
    %c0_334 = arith.constant 0 : index
    %c0_335 = arith.constant 0 : index
    %320 = vector.load %arg6[%c6_333, %c0_334, %c0_335] : memref<9x64x64xbf16, #tpu.memory_space<vmem>>, vector<1x64x64xbf16>
    %321 = vector.shape_cast %320 : vector<1x64x64xbf16> to vector<64x64xbf16>
    %cst_336 = arith.constant dense<0.000000e+00> : vector<64x16xf32>
    %322 = tpu.matmul %321, %274, %cst_336 {dimension_numbers = #tpu.dot_dimension_numbers<[1], [0], [0], [1], [0, 0, 1, 1], [], []>} : vector<64x64xbf16>, vector<64x16xbf16>, vector<64x16xf32> -> vector<64x16xf32>
    %323 = arith.truncf %322 : vector<64x16xf32> to vector<64x16xbf16>
    %c3_337 = arith.constant 3 : index
    %c6_338 = arith.constant 6 : index
    %c0_339 = arith.constant 0 : index
    %c0_340 = arith.constant 0 : index
    %324 = vector.load %arg3[%c3_337, %c6_338, %c0_339, %c0_340] : memref<4x9x16x16xbf16, #tpu.memory_space<vmem>>, vector<1x1x16x16xbf16>
    %325 = vector.shape_cast %324 : vector<1x1x16x16xbf16> to vector<16x16xbf16>
    %cst_341 = arith.constant dense<0.000000e+00> : vector<64x16xf32>
    %326 = tpu.matmul %323, %325, %cst_341 {dimension_numbers = #tpu.dot_dimension_numbers<[1], [0], [0], [1], [0, 0, 1, 1], [], []>} : vector<64x16xbf16>, vector<16x16xbf16>, vector<64x16xf32> -> vector<64x16xf32>
    %327 = arith.addf %319, %326 : vector<64x16xf32>
    %c7_342 = arith.constant 7 : index
    %c0_343 = arith.constant 0 : index
    %c0_344 = arith.constant 0 : index
    %328 = vector.load %arg6[%c7_342, %c0_343, %c0_344] : memref<9x64x64xbf16, #tpu.memory_space<vmem>>, vector<1x64x64xbf16>
    %329 = vector.shape_cast %328 : vector<1x64x64xbf16> to vector<64x64xbf16>
    %cst_345 = arith.constant dense<0.000000e+00> : vector<64x16xf32>
    %330 = tpu.matmul %329, %274, %cst_345 {dimension_numbers = #tpu.dot_dimension_numbers<[1], [0], [0], [1], [0, 0, 1, 1], [], []>} : vector<64x64xbf16>, vector<64x16xbf16>, vector<64x16xf32> -> vector<64x16xf32>
    %331 = arith.truncf %330 : vector<64x16xf32> to vector<64x16xbf16>
    %c3_346 = arith.constant 3 : index
    %c7_347 = arith.constant 7 : index
    %c0_348 = arith.constant 0 : index
    %c0_349 = arith.constant 0 : index
    %332 = vector.load %arg3[%c3_346, %c7_347, %c0_348, %c0_349] : memref<4x9x16x16xbf16, #tpu.memory_space<vmem>>, vector<1x1x16x16xbf16>
    %333 = vector.shape_cast %332 : vector<1x1x16x16xbf16> to vector<16x16xbf16>
    %cst_350 = arith.constant dense<0.000000e+00> : vector<64x16xf32>
    %334 = tpu.matmul %331, %333, %cst_350 {dimension_numbers = #tpu.dot_dimension_numbers<[1], [0], [0], [1], [0, 0, 1, 1], [], []>} : vector<64x16xbf16>, vector<16x16xbf16>, vector<64x16xf32> -> vector<64x16xf32>
    %335 = arith.addf %327, %334 : vector<64x16xf32>
    %c8_351 = arith.constant 8 : index
    %c0_352 = arith.constant 0 : index
    %c0_353 = arith.constant 0 : index
    %336 = vector.load %arg6[%c8_351, %c0_352, %c0_353] : memref<9x64x64xbf16, #tpu.memory_space<vmem>>, vector<1x64x64xbf16>
    %337 = vector.shape_cast %336 : vector<1x64x64xbf16> to vector<64x64xbf16>
    %cst_354 = arith.constant dense<0.000000e+00> : vector<64x16xf32>
    %338 = tpu.matmul %337, %274, %cst_354 {dimension_numbers = #tpu.dot_dimension_numbers<[1], [0], [0], [1], [0, 0, 1, 1], [], []>} : vector<64x64xbf16>, vector<64x16xbf16>, vector<64x16xf32> -> vector<64x16xf32>
    %339 = arith.truncf %338 : vector<64x16xf32> to vector<64x16xbf16>
    %c3_355 = arith.constant 3 : index
    %c8_356 = arith.constant 8 : index
    %c0_357 = arith.constant 0 : index
    %c0_358 = arith.constant 0 : index
    %340 = vector.load %arg3[%c3_355, %c8_356, %c0_357, %c0_358] : memref<4x9x16x16xbf16, #tpu.memory_space<vmem>>, vector<1x1x16x16xbf16>
    %341 = vector.shape_cast %340 : vector<1x1x16x16xbf16> to vector<16x16xbf16>
    %cst_359 = arith.constant dense<0.000000e+00> : vector<64x16xf32>
    %342 = tpu.matmul %339, %341, %cst_359 {dimension_numbers = #tpu.dot_dimension_numbers<[1], [0], [0], [1], [0, 0, 1, 1], [], []>} : vector<64x16xbf16>, vector<16x16xbf16>, vector<64x16xf32> -> vector<64x16xf32>
    %343 = arith.addf %335, %342 : vector<64x16xf32>
    %c4_360 = arith.constant 4 : index
    %c0_361 = arith.constant 0 : index
    %c0_362 = arith.constant 0 : index
    %344 = vector.load %arg4[%c4_360, %c0_361, %c0_362] : memref<5x1x16xf32, #tpu.memory_space<vmem>>, vector<1x1x16xf32>
    %345 = vector.shape_cast %344 : vector<1x1x16xf32> to vector<1x16xf32>
    %346 = vector.broadcast %345 : vector<1x16xf32> to vector<64x16xf32>
    %347 = arith.addf %343, %346 : vector<64x16xf32>
    %348 = arith.addf %347, %197 : vector<64x16xf32>
    %cst_363 = arith.constant 0.000000e+00 : f32
    %349 = vector.broadcast %cst_363 : f32 to vector<64x16xf32>
    %350 = arith.maximumf %348, %349 : vector<64x16xf32>
    %c0_364 = arith.constant 0 : index
    %c0_365 = arith.constant 0 : index
    %c0_366 = arith.constant 0 : index
    %351 = vector.load %arg7[%c0_364, %c0_365, %c0_366] : memref<1x64x16xf32, #tpu.memory_space<vmem>>, vector<1x64x16xf32>
    %352 = vector.shape_cast %351 : vector<1x64x16xf32> to vector<64x16xf32>
    %353 = vector.shape_cast %350 : vector<64x16xf32> to vector<1x64x16xf32>
    tpu.vector_store %arg7[%c0_364, %c0_365, %c0_366], %353 {strides = array<i32>} : memref<1x64x16xf32, #tpu.memory_space<vmem>>, vector<1x64x16xf32>,
    return
  }
  func.func @transform_0(%arg0: i32) -> (i32, i32, i32) {
    %c0_i32 = arith.constant 0 : i32
    %c0_i32_0 = arith.constant 0 : i32
    %c0_i32_1 = arith.constant 0 : i32
    return %arg0, %c0_i32, %c0_i32_0 : i32, i32, i32
  }
  func.func @transform_1(%arg0: i32) -> (i32, i32) {
    %c0_i32 = arith.constant 0 : i32
    %c0_i32_0 = arith.constant 0 : i32
    %c0_i32_1 = arith.constant 0 : i32
    return %c0_i32, %c0_i32_0 : i32, i32
  }
  func.func @transform_2(%arg0: i32) -> (i32, i32, i32, i32) {
    %c0_i32 = arith.constant 0 : i32
    %c0_i32_0 = arith.constant 0 : i32
    %c0_i32_1 = arith.constant 0 : i32
    %c0_i32_2 = arith.constant 0 : i32
    %c0_i32_3 = arith.constant 0 : i32
    return %c0_i32, %c0_i32_0, %c0_i32_1, %c0_i32_2 : i32, i32, i32, i32
  }
  func.func @transform_3(%arg0: i32) -> (i32, i32, i32) {
    %c0_i32 = arith.constant 0 : i32
    %c0_i32_0 = arith.constant 0 : i32
    %c0_i32_1 = arith.constant 0 : i32
    %c0_i32_2 = arith.constant 0 : i32
    return %c0_i32, %c0_i32_0, %c0_i32_1 : i32, i32, i32
  }
  func.func @transform_4(%arg0: i32) -> (i32, i32, i32) {
    %c0_i32 = arith.constant 0 : i32
    %c0_i32_0 = arith.constant 0 : i32
    %c0_i32_1 = arith.constant 0 : i32
    %c0_i32_2 = arith.constant 0 : i32
    return %c0_i32, %c0_i32_0, %c0_i32_1 : i32, i32, i32
  }
  func.func @transform_5(%arg0: i32) -> (i32, i32, i32) {
    %c0_i32 = arith.constant 0 : i32
    %c0_i32_0 = arith.constant 0 : i32
    %c0_i32_1 = arith.constant 0 : i32
    %c0_i32_2 = arith.constant 0 : i32
    return %c0_i32, %c0_i32_0, %c0_i32_1 : i32, i32, i32
  }
  func.func @transform_6(%arg0: i32) -> (i32, i32, i32) {
    %c0_i32 = arith.constant 0 : i32
    %c0_i32_0 = arith.constant 0 : i32
    %c0_i32_1 = arith.constant 0 : i32
    return %arg0, %c0_i32, %c0_i32_0 : i32, i32, i32
  }
}

</mosaic_0001>

<llo_original>
// kernel: res_bottom_forward.1
$region0: #{res_bottom_forward.1}
  #allocation0 [shape = 'u32[]', space=smem, size = 0x4, offset = 0x4, fixed_abs, tag = 'smem constant byte address 0x4 - core index']
  #allocation1 [shape = 'u32[72,128]{1,0:T(1,128)}', space=vmem, size = 0x9000, scoped, tag = 'internal scratch']
  %s0 = inlined_call_operand.vmem [shape: bf16[2,256,147], index: 0, kind: input, shape index: {}]
  %s1 = inlined_call_operand.vmem [shape: bf16[147,16], index: 1, kind: input, shape index: {}]
  %s2 = inlined_call_operand.vmem [shape: bf16[4,9,16,16], index: 2, kind: input, shape index: {}]
  %s3 = inlined_call_operand.vmem [shape: f32[5,1,16], index: 3, kind: input, shape index: {}]
  %s4 = inlined_call_operand.vmem [shape: f32[9,64,256], index: 4, kind: input, shape index: {}]
  %s5 = inlined_call_operand.vmem [shape: bf16[9,64,64], index: 5, kind: input, shape index: {}]
  %s6 = inlined_call_operand.hbm [shape: f32[2,64,16], index: 6, kind: output, shape index: {}]
  %s7 = sld [smem:[#allocation0]]
  $region57: #{res_bottom_forward.1} parent=0
    _
  %s9 = ssub.s32 1, %s7
  %s10 = scalar_select 0, %s9, %s7
  $region1: #{res_bottom_forward.1} parent=0
    #allocation2 [shape = 'u8[65536]{0}', space=vmem, size = 0x10000, scoped, tag = 'output window, operand 0']
    #allocation3 [shape = 's32[2]{0}', space=sflag, size = 0x8, scoped, tag = 'scoped memory for res_bottom_forward.1']
    %11 = vsyncpa [#allocation3], 0
    %s12 = scalar_lea.sflag [#allocation3], 1
    %13 = vsyncpa %s12, 0
    loop: start=0, step=1, limit=4
    $region2: #{res_bottom_forward.1} parent=1 // loop_pre_header
      _
    $region3: #{res_bottom_forward.1} parent=1 // loop_header
      %s15 = sphi 0, %s19
      %p16 = scmp.ge.s32.totalorder %s15, 4
      %s25 = sphi 0, %s27
      %s28 = sphi 0, %s25
      %s29 = sphi 0, %s28
      %s45 = sphi 0, %s29
      %s49 = sphi 0, %s49
      %s51 = sphi 0, %s49
      %s52 = sphi 0, %s51
      %s66 = sphi 0, %s52
      %s70 = sphi 0, %s70
      %s72 = sphi 0, %s70
      %s73 = sphi 0, %s72
      %s87 = sphi 0, %s73
      %s91 = sphi 0, %s91
      %s93 = sphi 0, %s91
      %s94 = sphi 0, %s93
      %s108 = sphi 0, %s94
      %s112 = sphi 0, %s112
      %s114 = sphi 0, %s112
      %s115 = sphi 0, %s114
      %s129 = sphi 0, %s115
      %s133 = sphi 0, %s133
      %s135 = sphi 0, %s133
      %s136 = sphi 0, %s135
      %s150 = sphi 0, %s136
      %s156 = sphi 0, %s158
      %s159 = sphi 0, %s156
      %s160 = sphi 0, %s159
      %s176 = sphi 0, %s160
    $region4: #{res_bottom_forward.1} parent=1 // loop_header_branch
      %18 = sbr.rel (%p16) target = $region8
    $region5: #{res_bottom_forward.1} parent=1 // loop_body
      %s20 = ssub.s32 %s15, 1
      %s21 = ssub.s32 %s15, 2
      %s22 = sadd.s32 %s15, 1
      %s23 = ssub.s32 %s15, %s22
      %p24 = scmp.eq.s32.totalorder %s23, 0
      %s26 = sadd.s32 %s25, 1
      %s27 = scalar_select %p24, %s25, %s26
      %p30 = pneg %p24
      %p31 = scmp.eq.s32.totalorder %s15, 1
      %p32 = por %p30, %p31
      %p33 = scmp.ne.s32.totalorder %s25, %s28
      %p34 = scmp.eq.s32.totalorder %s15, 0
      %p35 = por %p33, %p34
      %p36 = scmp.ne.s32.totalorder %s25, %s28
      %p37 = scmp.eq.s32.totalorder %s20, 1
      %p38 = por %p36, %p37
      %p39 = scmp.ne.s32.totalorder %s28, %s29
      %p40 = scmp.eq.s32.totalorder %s20, 0
      %p41 = por %p39, %p40
      %p42 = scmp.ne.s32.totalorder %s28, %s29
      %p43 = scmp.eq.s32.totalorder %s21, 1
      %p44 = por %p42, %p43
      %p46 = scmp.ne.s32.totalorder %s29, %s45
      %p47 = scmp.eq.s32.totalorder %s21, 0
      %p48 = por %p46, %p47
      %s50 = sadd.s32 %s49, 1
      %p53 = scmp.eq.s32.totalorder %s15, 1
      %p54 = scmp.ne.s32.totalorder %s49, %s51
      %p55 = scmp.eq.s32.totalorder %s15, 0
      %p56 = por %p54, %p55
      %p57 = scmp.ne.s32.totalorder %s49, %s51
      %p58 = scmp.eq.s32.totalorder %s20, 1
      %p59 = por %p57, %p58
      %p60 = scmp.ne.s32.totalorder %s51, %s52
      %p61 = scmp.eq.s32.totalorder %s20, 0
      %p62 = por %p60, %p61
      %p63 = scmp.ne.s32.totalorder %s51, %s52
      %p64 = scmp.eq.s32.totalorder %s21, 1
      %p65 = por %p63, %p64
      %p67 = scmp.ne.s32.totalorder %s52, %s66
      %p68 = scmp.eq.s32.totalorder %s21, 0
      %p69 = por %p67, %p68
      %s71 = sadd.s32 %s70, 1
      %p74 = scmp.eq.s32.totalorder %s15, 1
      %p75 = scmp.ne.s32.totalorder %s70, %s72
      %p76 = scmp.eq.s32.totalorder %s15, 0
      %p77 = por %p75, %p76
      %p78 = scmp.ne.s32.totalorder %s70, %s72
      %p79 = scmp.eq.s32.totalorder %s20, 1
      %p80 = por %p78, %p79
      %p81 = scmp.ne.s32.totalorder %s72, %s73
      %p82 = scmp.eq.s32.totalorder %s20, 0
      %p83 = por %p81, %p82
      %p84 = scmp.ne.s32.totalorder %s72, %s73
      %p85 = scmp.eq.s32.totalorder %s21, 1
      %p86 = por %p84, %p85
      %p88 = scmp.ne.s32.totalorder %s73, %s87
      %p89 = scmp.eq.s32.totalorder %s21, 0
      %p90 = por %p88, %p89
      %s92 = sadd.s32 %s91, 1
      %p95 = scmp.eq.s32.totalorder %s15, 1
      %p96 = scmp.ne.s32.totalorder %s91, %s93
      %p97 = scmp.eq.s32.totalorder %s15, 0
      %p98 = por %p96, %p97
      %p99 = scmp.ne.s32.totalorder %s91, %s93
      %p100 = scmp.eq.s32.totalorder %s20, 1
      %p101 = por %p99, %p100
      %p102 = scmp.ne.s32.totalorder %s93, %s94
      %p103 = scmp.eq.s32.totalorder %s20, 0
      %p104 = por %p102, %p103
      %p105 = scmp.ne.s32.totalorder %s93, %s94
      %p106 = scmp.eq.s32.totalorder %s21, 1
      %p107 = por %p105, %p106
      %p109 = scmp.ne.s32.totalorder %s94, %s108
      %p110 = scmp.eq.s32.totalorder %s21, 0
      %p111 = por %p109, %p110
      %s113 = sadd.s32 %s112, 1
      %p116 = scmp.eq.s32.totalorder %s15, 1
      %p117 = scmp.ne.s32.totalorder %s112, %s114
      %p118 = scmp.eq.s32.totalorder %s15, 0
      %p119 = por %p117, %p118
      %p120 = scmp.ne.s32.totalorder %s112, %s114
      %p121 = scmp.eq.s32.totalorder %s20, 1
      %p122 = por %p120, %p121
      %p123 = scmp.ne.s32.totalorder %s114, %s115
      %p124 = scmp.eq.s32.totalorder %s20, 0
      %p125 = por %p123, %p124
      %p126 = scmp.ne.s32.totalorder %s114, %s115
      %p127 = scmp.eq.s32.totalorder %s21, 1
      %p128 = por %p126, %p127
      %p130 = scmp.ne.s32.totalorder %s115, %s129
      %p131 = scmp.eq.s32.totalorder %s21, 0
      %p132 = por %p130, %p131
      %s134 = sadd.s32 %s133, 1
      %p137 = scmp.eq.s32.totalorder %s15, 1
      %p138 = scmp.ne.s32.totalorder %s133, %s135
      %p139 = scmp.eq.s32.totalorder %s15, 0
      %p140 = por %p138, %p139
      %p141 = scmp.ne.s32.totalorder %s133, %s135
      %p142 = scmp.eq.s32.totalorder %s20, 1
      %p143 = por %p141, %p142
      %p144 = scmp.ne.s32.totalorder %s135, %s136
      %p145 = scmp.eq.s32.totalorder %s20, 0
      %p146 = por %p144, %p145
      %p147 = scmp.ne.s32.totalorder %s135, %s136
      %p148 = scmp.eq.s32.totalorder %s21, 1
      %p149 = por %p147, %p148
      %p151 = scmp.ne.s32.totalorder %s136, %s150
      %p152 = scmp.eq.s32.totalorder %s21, 0
      %p153 = por %p151, %p152
      %s154 = ssub.s32 %s15, %s22
      %p155 = scmp.eq.s32.totalorder %s154, 0
      %s157 = sadd.s32 %s156, 1
      %s158 = scalar_select %p155, %s156, %s157
      %p161 = pneg %p155
      %p162 = scmp.eq.s32.totalorder %s15, 1
      %p163 = por %p161, %p162
      %p164 = scmp.ne.s32.totalorder %s156, %s159
      %p165 = scmp.eq.s32.totalorder %s15, 0
      %p166 = por %p164, %p165
      %p167 = scmp.ne.s32.totalorder %s156, %s159
      %p168 = scmp.eq.s32.totalorder %s20, 1
      %p169 = por %p167, %p168
      %p170 = scmp.ne.s32.totalorder %s159, %s160
      %p171 = scmp.eq.s32.totalorder %s20, 0
      %p172 = por %p170, %p171
      %p173 = scmp.ne.s32.totalorder %s159, %s160
      %p174 = scmp.eq.s32.totalorder %s21, 1
      %p175 = por %p173, %p174
      %p177 = scmp.ne.s32.totalorder %s160, %s176
      %p178 = scmp.eq.s32.totalorder %s21, 0
      %p179 = por %p177, %p178
      %p180 = scmp.le.s32.totalorder 1, %s15
      %p181 = scmp.lt.s32.totalorder %s15, 3
      %p182 = pnand %p180, %p181
      %p183 = pneg %p182
      // Predicated region
      $region9: #{res_bottom_forward.1} parent=5 // pred_check
        _
      $region10: #{res_bottom_forward.1} parent=5 // pred_check_branch
        %185 = sbr.rel (%p182) target = $region12
      $region11: #{res_bottom_forward.1} parent=5 // pred_region
        %s186 = ssub.s32 %s15, 1
        // Predicated region
        $region13: #{res_bottom_forward.1} parent=11 // pred_check
          %p187 = pneg %p62
        $region14: #{res_bottom_forward.1} parent=11 // pred_check_branch
          %189 = sbr.rel (%p187) target = $region16
        $region15: #{res_bottom_forward.1} parent=11 // pred_region
          _
        $region16: #{res_bottom_forward.1} parent=11 // pred_fallthru
          _
        // Predicated region
        $region17: #{res_bottom_forward.1} parent=11 // pred_check
          %p190 = pneg %p83
        $region18: #{res_bottom_forward.1} parent=11 // pred_check_branch
          %192 = sbr.rel (%p190) target = $region20
        $region19: #{res_bottom_forward.1} parent=11 // pred_region
          _
        $region20: #{res_bottom_forward.1} parent=11 // pred_fallthru
          _
        // Predicated region
        $region21: #{res_bottom_forward.1} parent=11 // pred_check
          %p193 = pneg %p104
        $region22: #{res_bottom_forward.1} parent=11 // pred_check_branch
          %195 = sbr.rel (%p193) target = $region24
        $region23: #{res_bottom_forward.1} parent=11 // pred_region
          _
        $region24: #{res_bottom_forward.1} parent=11 // pred_fallthru
          _
        // Predicated region
        $region25: #{res_bottom_forward.1} parent=11 // pred_check
          %p196 = pneg %p125
        $region26: #{res_bottom_forward.1} parent=11 // pred_check_branch
          %198 = sbr.rel (%p196) target = $region28
        $region27: #{res_bottom_forward.1} parent=11 // pred_region
          _
        $region28: #{res_bottom_forward.1} parent=11 // pred_fallthru
          _
        // Predicated region
        $region29: #{res_bottom_forward.1} parent=11 // pred_check
          %p199 = pneg %p146
        $region30: #{res_bottom_forward.1} parent=11 // pred_check_branch
          %201 = sbr.rel (%p199) target = $region32
        $region31: #{res_bottom_forward.1} parent=11 // pred_region
          _
        $region32: #{res_bottom_forward.1} parent=11 // pred_fallthru
          _
      $region12: #{res_bottom_forward.1} parent=5 // pred_fallthru
        _
      %p202 = scmp.lt.s32.totalorder %s15, 2
      // Predicated region
      $region33: #{res_bottom_forward.1} parent=5 // pred_check
        %p203 = pneg %p202
      $region34: #{res_bottom_forward.1} parent=5 // pred_check_branch
        %205 = sbr.rel (%p203) target = $region36
      $region35: #{res_bottom_forward.1} parent=5 // pred_region
        // Predicated region
        $region37: #{res_bottom_forward.1} parent=35 // pred_check
          %p206 = pneg %p35
        $region38: #{res_bottom_forward.1} parent=35 // pred_check_branch
          %208 = sbr.rel (%p206) target = $region40
        $region39: #{res_bottom_forward.1} parent=35 // pred_region
          %p209 = scmp.lt.s32.totalorder %s15, 1
          %s210 = scalar_select %p209, %s15, 1
          %s211 = smul.addr %s210, 64
          %s212 = smul.addr %s211, 4
          %s213 = scalar_lea.vmem %s0, %s212
        $region40: #{res_bottom_forward.1} parent=35 // pred_fallthru
          _
      $region36: #{res_bottom_forward.1} parent=5 // pred_fallthru
        _
      %p214 = scmp.le.s32.totalorder 1, %s15
      %p215 = scmp.lt.s32.totalorder %s15, 3
      %p216 = pnand %p214, %p215
      %p217 = pneg %p216
      // Predicated region
      $region41: #{res_bottom_forward.1} parent=5 // pred_check
        _
      $region42: #{res_bottom_forward.1} parent=5 // pred_check_branch
        %219 = sbr.rel (%p216) target = $region44
      $region43: #{res_bottom_forward.1} parent=5 // pred_region
        %s220 = ssub.s32 %s15, 1
        %p221 = scmp.lt.s32.totalorder %s20, 1
        %s222 = scalar_select %p221, %s20, 1
        %s223 = smul.addr %s222, 64
        %s224 = smul.addr %s223, 4
        %s225 = scalar_lea.vmem %s0, %s224
        %p226 = pneg %p41
        %p227 = pneg %p38
        %p228 = pneg %p62
        %p229 = pneg %p59
        %p230 = pneg %p83
        %p231 = pneg %p80
        %p232 = pneg %p104
        %p233 = pneg %p101
        %p234 = pneg %p125
        %p235 = pneg %p122
        %p236 = pneg %p146
        %p237 = pneg %p143
        %p238 = pneg %p172
        %p239 = pneg %p169
        %s240 = sand.u32 %s159, 1
        %s241 = scalar_lea.sflag [#allocation3], %s240
        %s242 = sand.u32 %s159, 1
        %s243 = smul.addr %s242, 64
        %s244 = scalar_lea.vmem [#allocation2], %s243
        %p245 = scmp.lt.s32.totalorder %s20, 1
        %s246 = scalar_select %p245, %s20, 1
        %s247 = smul.addr %s246, 64
        %s248 = smul.addr %s247, 4
        %s249 = scalar_lea.vmem %s0, %s248
        %v251 = vld [vmem:[%s249] sm:$0xff]
        %v252 = vld [vmem:[%s249 + $0x8] sm:$0xff]
        %v253 = vld [vmem:[%s249 + $0x10] sm:$0xff]
        %v254 = vld [vmem:[%s249 + $0x18] sm:$0xff]
        %v255 = vld [vmem:[%s249 + $0x20] sm:$0xff]
        %v256 = vld [vmem:[%s249 + $0x28] sm:$0xff]
        %v257 = vld [vmem:[%s249 + $0x30] sm:$0xff]
        %v258 = vld [vmem:[%s249 + $0x38] sm:$0xff]
        %v259 = vld [vmem:[%s249 + $0x40] sm:$0xff]
        %v260 = vld [vmem:[%s249 + $0x48] sm:$0xff]
        %v261 = vld [vmem:[%s249 + $0x50] sm:$0xff]
        %v262 = vld [vmem:[%s249 + $0x58] sm:$0xff]
        %v263 = vld [vmem:[%s249 + $0x60] sm:$0xff]
        %v264 = vld [vmem:[%s249 + $0x68] sm:$0xff]
        %v265 = vld [vmem:[%s249 + $0x70] sm:$0xff]
        %v266 = vld [vmem:[%s249 + $0x78] sm:$0xff]
        %v267 = vld [vmem:[%s249 + $0x80] sm:$0xff]
        %v268 = vld [vmem:[%s249 + $0x88] sm:$0xff]
        %v269 = vld [vmem:[%s249 + $0x90] sm:$0xff]
        %v270 = vld [vmem:[%s249 + $0x98] sm:$0xff]
        %v271 = vld [vmem:[%s249 + $0xa0] sm:$0xff]
        %v272 = vld [vmem:[%s249 + $0xa8] sm:$0xff]
        %v273 = vld [vmem:[%s249 + $0xb0] sm:$0xff]
        %v274 = vld [vmem:[%s249 + $0xb8] sm:$0xff]
        %v275 = vld [vmem:[%s249 + $0xc0] sm:$0xff]
        %v276 = vld [vmem:[%s249 + $0xc8] sm:$0xff]
        %v277 = vld [vmem:[%s249 + $0xd0] sm:$0xff]
        %v278 = vld [vmem:[%s249 + $0xd8] sm:$0xff]
        %v279 = vld [vmem:[%s249 + $0xe0] sm:$0xff]
        %v280 = vld [vmem:[%s249 + $0xe8] sm:$0xff]
        %v281 = vld [vmem:[%s249 + $0xf0] sm:$0xff]
        %v282 = vld [vmem:[%s249 + $0xf8] sm:$0xff]
        %v283 = vld [vmem:[%s1] sm:$0xf]
        %v284 = vld [vmem:[%s1 + $0x4] sm:$0xf]
        %v285 = vld [vmem:[%s1 + $0x8] sm:$0xf]
        %v286 = vld [vmem:[%s1 + $0xc] sm:$0xf]
        %v287 = vld [vmem:[%s1 + $0x10] sm:$0xf]
        %v288 = vld [vmem:[%s1 + $0x14] sm:$0xf]
        %v289 = vld [vmem:[%s1 + $0x18] sm:$0xf]
        %v290 = vld [vmem:[%s1 + $0x1c] sm:$0xf]
        %v291 = vld [vmem:[%s1 + $0x20] sm:$0xf]
        %v292 = vld [vmem:[%s1 + $0x24] sm:$0xf]
        %v293 = vld [vmem:[%s1 + $0x28] sm:$0xf]
        %v294 = vld [vmem:[%s1 + $0x2c] sm:$0xf]
        %v295 = vld [vmem:[%s1 + $0x30] sm:$0xf]
        %v296 = vld [vmem:[%s1 + $0x34] sm:$0xf]
        %v297 = vld [vmem:[%s1 + $0x38] sm:$0xf]
        %v298 = vld [vmem:[%s1 + $0x3c] sm:$0xf]
        %v299 = vld [vmem:[%s1 + $0x40] sm:$0xf]
        %v300 = vld [vmem:[%s1 + $0x44] sm:$0xf]
        %v301 = vld [vmem:[%s1 + $0x48] sm:$0x3]
        %v302 = vld [vmem:[%s3] sm:$0x1]
        %v304 = vperm.slane %v302, 0
        %v338 = vunpack.c.l.b16 %v251
        %v339 = vunpack.c.h.b16 %v251
        %v340 = vunpack.c.l.b16 %v252
        %v341 = vunpack.c.h.b16 %v252
        %v342 = vunpack.c.l.b16 %v253
        %v343 = vunpack.c.h.b16 %v253
        %v344 = vunpack.c.l.b16 %v254
        %v345 = vunpack.c.h.b16 %v254
        %v346 = vunpack.c.l.b16 %v255
        %v347 = vunpack.c.h.b16 %v255
        %v348 = vunpack.c.l.b16 %v256
        %v349 = vunpack.c.h.b16 %v256
        %v350 = vunpack.c.l.b16 %v257
        %v351 = vunpack.c.h.b16 %v257
        %v352 = vunpack.c.l.b16 %v258
        %v353 = vunpack.c.h.b16 %v258
        %v354 = vunpack.c.l.b16 %v259
        %v355 = vunpack.c.h.b16 %v259
        %v356 = vunpack.c.l.b16 %v260
        %v357 = vunpack.c.h.b16 %v260
        %v358 = vunpack.c.l.b16 %v261
        %v359 = vunpack.c.h.b16 %v261
        %v360 = vunpack.c.l.b16 %v262
        %v361 = vunpack.c.h.b16 %v262
        %v362 = vunpack.c.l.b16 %v263
        %v363 = vunpack.c.h.b16 %v263
        %v364 = vunpack.c.l.b16 %v264
        %v365 = vunpack.c.h.b16 %v264
        %v366 = vunpack.c.l.b16 %v265
        %v367 = vunpack.c.h.b16 %v265
        %v368 = vunpack.c.l.b16 %v266
        %v369 = vunpack.c.h.b16 %v266
        %v370 = vunpack.c.l.b16 %v267
        %v371 = vunpack.c.h.b16 %v267
        %v372 = vunpack.c.l.b16 %v268
        %v373 = vunpack.c.h.b16 %v268
        %v374 = vunpack.c.l.b16 %v269
        %v375 = vunpack.c.h.b16 %v269
        %v376 = vunpack.c.l.b16 %v270
        %v377 = vunpack.c.h.b16 %v270
        %v378 = vunpack.c.l.b16 %v271
        %v379 = vunpack.c.h.b16 %v271
        %v380 = vunpack.c.l.b16 %v272
        %v381 = vunpack.c.h.b16 %v272
        %v382 = vunpack.c.l.b16 %v273
        %v383 = vunpack.c.h.b16 %v273
        %v384 = vunpack.c.l.b16 %v274
        %v385 = vunpack.c.h.b16 %v274
        %v386 = vunpack.c.l.b16 %v275
        %v387 = vunpack.c.h.b16 %v275
        %v388 = vunpack.c.l.b16 %v276
        %v389 = vunpack.c.h.b16 %v276
        %v390 = vunpack.c.l.b16 %v277
        %v391 = vunpack.c.h.b16 %v277
        %v392 = vunpack.c.l.b16 %v278
        %v393 = vunpack.c.h.b16 %v278
        %v394 = vunpack.c.l.b16 %v279
        %v395 = vunpack.c.h.b16 %v279
        %v396 = vunpack.c.l.b16 %v280
        %v397 = vunpack.c.h.b16 %v280
        %v398 = vunpack.c.l.b16 %v281
        %v399 = vunpack.c.h.b16 %v281
        %v400 = vunpack.c.l.b16 %v282
        %v401 = vunpack.c.h.b16 %v282
        %v402 = vpack.c.b16 %v340, %v338
        %v403 = vpack.c.b16 %v341, %v339
        %v404 = vpack.c.b16 %v344, %v342
        %v405 = vpack.c.b16 %v345, %v343
        %v406 = vpack.c.b16 %v348, %v346
        %v407 = vpack.c.b16 %v349, %v347
        %v408 = vpack.c.b16 %v352, %v350
        %v409 = vpack.c.b16 %v353, %v351
        %v410 = vpack.c.b16 %v356, %v354
        %v411 = vpack.c.b16 %v357, %v355
        %v412 = vpack.c.b16 %v360, %v358
        %v413 = vpack.c.b16 %v361, %v359
        %v414 = vpack.c.b16 %v364, %v362
        %v415 = vpack.c.b16 %v365, %v363
        %v416 = vpack.c.b16 %v368, %v366
        %v417 = vpack.c.b16 %v369, %v367
        %v418 = vpack.c.b16 %v372, %v370
        %v419 = vpack.c.b16 %v373, %v371
        %v420 = vpack.c.b16 %v376, %v374
        %v421 = vpack.c.b16 %v377, %v375
        %v422 = vpack.c.b16 %v380, %v378
        %v423 = vpack.c.b16 %v381, %v379
        %v424 = vpack.c.b16 %v384, %v382
        %v425 = vpack.c.b16 %v385, %v383
        %v426 = vpack.c.b16 %v388, %v386
        %v427 = vpack.c.b16 %v389, %v387
        %v428 = vpack.c.b16 %v392, %v390
        %v429 = vpack.c.b16 %v393, %v391
        %v430 = vpack.c.b16 %v396, %v394
        %v431 = vpack.c.b16 %v397, %v395
        %v432 = vpack.c.b16 %v400, %v398
        %v433 = vpack.c.b16 %v401, %v399
        %v469 = vunpack.c.l.b16 %v283
        %v470 = vunpack.c.l.b16 %v284
        %v471 = vunpack.c.l.b16 %v285
        %v472 = vunpack.c.l.b16 %v286
        %v473 = vunpack.c.l.b16 %v287
        %v474 = vunpack.c.l.b16 %v288
        %v475 = vunpack.c.l.b16 %v289
        %v476 = vunpack.c.l.b16 %v290
        %v477 = vunpack.c.l.b16 %v291
        %v478 = vunpack.c.l.b16 %v292
        %v479 = vunpack.c.l.b16 %v293
        %v480 = vunpack.c.l.b16 %v294
        %v481 = vunpack.c.l.b16 %v295
        %v482 = vunpack.c.l.b16 %v296
        %v483 = vunpack.c.l.b16 %v297
        %v484 = vunpack.c.l.b16 %v298
        %v485 = vunpack.c.l.b16 %v299
        %v486 = vunpack.c.l.b16 %v300
        %v487 = vunpack.c.l.b16 %v301
        %v488 = vpack.c.b16 %v470, %v469
        %v489 = vpack.c.b16 %v472, %v471
        %v490 = vpack.c.b16 %v474, %v473
        %v491 = vpack.c.b16 %v476, %v475
        %v492 = vpack.c.b16 %v478, %v477
        %v493 = vpack.c.b16 %v480, %v479
        %v494 = vpack.c.b16 %v482, %v481
        %v495 = vpack.c.b16 %v484, %v483
        %v496 = vpack.c.b16 %v486, %v485
        %v497 = vpack.c.b16 %v487, %v487
        %vm507 = vcmask 154624
        %v509 = vsel %vm507, %v403, 0
        %v512 = vsel %vm507, %v405, 0
        %v515 = vsel %vm507, %v407, 0
        %v518 = vsel %vm507, %v409, 0
        %v521 = vsel %vm507, %v411, 0
        %v524 = vsel %vm507, %v413, 0
        %v527 = vsel %vm507, %v415, 0
        %v530 = vsel %vm507, %v417, 0
        %v533 = vsel %vm507, %v419, 0
        %v536 = vsel %vm507, %v421, 0
        %v539 = vsel %vm507, %v423, 0
        %v542 = vsel %vm507, %v425, 0
        %v545 = vsel %vm507, %v427, 0
        %v548 = vsel %vm507, %v429, 0
        %v551 = vsel %vm507, %v431, 0
        %v554 = vsel %vm507, %v433, 0
        %vm556 = vcmask 1040384
        %vm557 = vcmask 1041408
        %v558 = vsel %vm556, 4294967295, 65535
        %v559 = vsel %vm557, %v558, 0
        %v561 = vand.u32 %v497, %v559
        %563 = vmatpush.bf16.msra.mxu0 %v495
        %564 = vmatpush.bf16.msra.mxu0 %v494
        %565 = vmatpush.bf16.msra.mxu0 %v493
        %566 = vmatpush.bf16.msra.mxu0 %v492
        %567 = vmatpush.bf16.msra.mxu0 %v491
        %568 = vmatpush.bf16.msra.mxu0 %v490
        %569 = vmatpush.bf16.msra.mxu0 %v489
        %570 = vmatpush.bf16.msra.mxu0 %v488
        %571 = vmatmul.bf16.gmra.mxu0 %v402
        %v572 = vpop.f32.mrf.mxu0
        %v573 = vadd.f32 %v304, %v572
        %v574 = vpop.f32.mrf.mxu0
        %v575 = vadd.f32 %v304, %v574
        %576 = vmatmul.bf16.gmra.mxu0 %v404
        %v577 = vpop.f32.mrf.mxu0
        %v578 = vadd.f32 %v304, %v577
        %v579 = vpop.f32.mrf.mxu0
        %v580 = vadd.f32 %v304, %v579
        %581 = vmatmul.bf16.gmra.mxu0 %v406
        %v582 = vpop.f32.mrf.mxu0
        %v583 = vadd.f32 %v304, %v582
        %v584 = vpop.f32.mrf.mxu0
        %v585 = vadd.f32 %v304, %v584
        %586 = vmatmul.bf16.gmra.mxu0 %v408
        %v587 = vpop.f32.mrf.mxu0
        %v588 = vadd.f32 %v304, %v587
        %v589 = vpop.f32.mrf.mxu0
        %v590 = vadd.f32 %v304, %v589
        %591 = vmatmul.bf16.gmra.mxu0 %v410
        %v592 = vpop.f32.mrf.mxu0
        %v593 = vadd.f32 %v304, %v592
        %v594 = vpop.f32.mrf.mxu0
        %v595 = vadd.f32 %v304, %v594
        %596 = vmatmul.bf16.gmra.mxu0 %v412
        %v597 = vpop.f32.mrf.mxu0
        %v598 = vadd.f32 %v304, %v597
        %v599 = vpop.f32.mrf.mxu0
        %v600 = vadd.f32 %v304, %v599
        %601 = vmatmul.bf16.gmra.mxu0 %v414
        %v602 = vpop.f32.mrf.mxu0
        %v603 = vadd.f32 %v304, %v602
        %v604 = vpop.f32.mrf.mxu0
        %v605 = vadd.f32 %v304, %v604
        %606 = vmatmul.bf16.gmra.mxu0 %v416
        %v607 = vpop.f32.mrf.mxu0
        %v608 = vadd.f32 %v304, %v607
        %v609 = vpop.f32.mrf.mxu0
        %v610 = vadd.f32 %v304, %v609
        %611 = vmatmul.bf16.gmra.mxu0 %v418
        %v612 = vpop.f32.mrf.mxu0
        %v613 = vadd.f32 %v304, %v612
        %v614 = vpop.f32.mrf.mxu0
        %v615 = vadd.f32 %v304, %v614
        %616 = vmatmul.bf16.gmra.mxu0 %v420
        %v617 = vpop.f32.mrf.mxu0
        %v618 = vadd.f32 %v304, %v617
        %v619 = vpop.f32.mrf.mxu0
        %v620 = vadd.f32 %v304, %v619
        %621 = vmatmul.bf16.gmra.mxu0 %v422
        %v622 = vpop.f32.mrf.mxu0
        %v623 = vadd.f32 %v304, %v622
        %v624 = vpop.f32.mrf.mxu0
        %v625 = vadd.f32 %v304, %v624
        %626 = vmatmul.bf16.gmra.mxu0 %v424
        %v627 = vpop.f32.mrf.mxu0
        %v628 = vadd.f32 %v304, %v627
        %v629 = vpop.f32.mrf.mxu0
        %v630 = vadd.f32 %v304, %v629
        %631 = vmatmul.bf16.gmra.mxu0 %v426
        %v632 = vpop.f32.mrf.mxu0
        %v633 = vadd.f32 %v304, %v632
        %v634 = vpop.f32.mrf.mxu0
        %v635 = vadd.f32 %v304, %v634
        %636 = vmatmul.bf16.gmra.mxu0 %v428
        %v637 = vpop.f32.mrf.mxu0
        %v638 = vadd.f32 %v304, %v637
        %v639 = vpop.f32.mrf.mxu0
        %v640 = vadd.f32 %v304, %v639
        %641 = vmatmul.bf16.gmra.mxu0 %v430
        %v642 = vpop.f32.mrf.mxu0
        %v643 = vadd.f32 %v304, %v642
        %v644 = vpop.f32.mrf.mxu0
        %v645 = vadd.f32 %v304, %v644
        %646 = vmatmul.bf16.gmra.mxu0 %v432
        %v647 = vpop.f32.mrf.mxu0
        %v648 = vadd.f32 %v304, %v647
        %v649 = vpop.f32.mrf.mxu0
        %v650 = vadd.f32 %v304, %v649
        %651 = vdwg.mxu0
        %652 = vmatpush.bf16.msra.mxu0 0
        %653 = vmatpush.bf16.msra.mxu0 0
        %654 = vmatpush.bf16.msra.mxu0 0
        %655 = vmatpush.bf16.msra.mxu0 0
        %656 = vmatpush.bf16.msra.mxu0 0
        %657 = vmatpush.bf16.msra.mxu0 0
        %658 = vmatpush.bf16.msra.mxu0 %v561
        %659 = vmatpush.bf16.msra.mxu0 %v496
        %660 = vmatmul.bf16.gmra.mxu0 %v509
        %v661 = vpop.f32.mrf.mxu0
        %v662 = vadd.f32 %v573, %v661
        %v663 = vpop.f32.mrf.mxu0
        %v664 = vadd.f32 %v575, %v663
        %665 = vmatmul.bf16.gmra.mxu0 %v512
        %v666 = vpop.f32.mrf.mxu0
        %v667 = vadd.f32 %v578, %v666
        %v668 = vpop.f32.mrf.mxu0
        %v669 = vadd.f32 %v580, %v668
        %670 = vmatmul.bf16.gmra.mxu0 %v515
        %v671 = vpop.f32.mrf.mxu0
        %v672 = vadd.f32 %v583, %v671
        %v673 = vpop.f32.mrf.mxu0
        %v674 = vadd.f32 %v585, %v673
        %675 = vmatmul.bf16.gmra.mxu0 %v518
        %v676 = vpop.f32.mrf.mxu0
        %v677 = vadd.f32 %v588, %v676
        %v678 = vpop.f32.mrf.mxu0
        %v679 = vadd.f32 %v590, %v678
        %680 = vmatmul.bf16.gmra.mxu0 %v521
        %v681 = vpop.f32.mrf.mxu0
        %v682 = vadd.f32 %v593, %v681
        %v683 = vpop.f32.mrf.mxu0
        %v684 = vadd.f32 %v595, %v683
        %685 = vmatmul.bf16.gmra.mxu0 %v524
        %v686 = vpop.f32.mrf.mxu0
        %v687 = vadd.f32 %v598, %v686
        %v688 = vpop.f32.mrf.mxu0
        %v689 = vadd.f32 %v600, %v688
        %690 = vmatmul.bf16.gmra.mxu0 %v527
        %v691 = vpop.f32.mrf.mxu0
        %v692 = vadd.f32 %v603, %v691
        %v693 = vpop.f32.mrf.mxu0
        %v694 = vadd.f32 %v605, %v693
        %695 = vmatmul.bf16.gmra.mxu0 %v530
        %v696 = vpop.f32.mrf.mxu0
        %v697 = vadd.f32 %v608, %v696
        %v698 = vpop.f32.mrf.mxu0
        %v699 = vadd.f32 %v610, %v698
        %700 = vmatmul.bf16.gmra.mxu0 %v533
        %v701 = vpop.f32.mrf.mxu0
        %v702 = vadd.f32 %v613, %v701
        %v703 = vpop.f32.mrf.mxu0
        %v704 = vadd.f32 %v615, %v703
        %705 = vmatmul.bf16.gmra.mxu0 %v536
        %v706 = vpop.f32.mrf.mxu0
        %v707 = vadd.f32 %v618, %v706
        %v708 = vpop.f32.mrf.mxu0
        %v709 = vadd.f32 %v620, %v708
        %710 = vmatmul.bf16.gmra.mxu0 %v539
        %v711 = vpop.f32.mrf.mxu0
        %v712 = vadd.f32 %v623, %v711
        %v713 = vpop.f32.mrf.mxu0
        %v714 = vadd.f32 %v625, %v713
        %715 = vmatmul.bf16.gmra.mxu0 %v542
        %v716 = vpop.f32.mrf.mxu0
        %v717 = vadd.f32 %v628, %v716
        %v718 = vpop.f32.mrf.mxu0
        %v719 = vadd.f32 %v630, %v718
        %720 = vmatmul.bf16.gmra.mxu0 %v545
        %v721 = vpop.f32.mrf.mxu0
        %v722 = vadd.f32 %v633, %v721
        %v723 = vpop.f32.mrf.mxu0
        %v724 = vadd.f32 %v635, %v723
        %725 = vmatmul.bf16.gmra.mxu0 %v548
        %v726 = vpop.f32.mrf.mxu0
        %v727 = vadd.f32 %v638, %v726
        %v728 = vpop.f32.mrf.mxu0
        %v729 = vadd.f32 %v640, %v728
        %730 = vmatmul.bf16.gmra.mxu0 %v551
        %v731 = vpop.f32.mrf.mxu0
        %v732 = vadd.f32 %v643, %v731
        %v733 = vpop.f32.mrf.mxu0
        %v734 = vadd.f32 %v645, %v733
        %735 = vmatmul.bf16.gmra.mxu0 %v554
        %v736 = vpop.f32.mrf.mxu0
        %v737 = vadd.f32 %v648, %v736
        %v738 = vpop.f32.mrf.mxu0
        %v739 = vadd.f32 %v650, %v738
        %740 = vdwg.mxu0
        %v741 = vmax.f32 %v662, 0.0
        %v742 = vmax.f32 %v664, 0.0
        %v743 = vmax.f32 %v667, 0.0
        %v744 = vmax.f32 %v669, 0.0
        %v745 = vmax.f32 %v672, 0.0
        %v746 = vmax.f32 %v674, 0.0
        %v747 = vmax.f32 %v677, 0.0
        %v748 = vmax.f32 %v679, 0.0
        %v749 = vmax.f32 %v682, 0.0
        %v750 = vmax.f32 %v684, 0.0
        %v751 = vmax.f32 %v687, 0.0
        %v752 = vmax.f32 %v689, 0.0
        %v753 = vmax.f32 %v692, 0.0
        %v754 = vmax.f32 %v694, 0.0
        %v755 = vmax.f32 %v697, 0.0
        %v756 = vmax.f32 %v699, 0.0
        %v757 = vmax.f32 %v702, 0.0
        %v758 = vmax.f32 %v704, 0.0
        %v759 = vmax.f32 %v707, 0.0
        %v760 = vmax.f32 %v709, 0.0
        %v761 = vmax.f32 %v712, 0.0
        %v762 = vmax.f32 %v714, 0.0
        %v763 = vmax.f32 %v717, 0.0
        %v764 = vmax.f32 %v719, 0.0
        %v765 = vmax.f32 %v722, 0.0
        %v766 = vmax.f32 %v724, 0.0
        %v767 = vmax.f32 %v727, 0.0
        %v768 = vmax.f32 %v729, 0.0
        %v769 = vmax.f32 %v732, 0.0
        %v770 = vmax.f32 %v734, 0.0
        %v771 = vmax.f32 %v737, 0.0
        %v772 = vmax.f32 %v739, 0.0
        %v773 = vld [vmem:[%s4] sm:$0xff]
        %v774 = vld [vmem:[%s4 + $0x8] sm:$0xff]
        %v775 = vld [vmem:[%s4 + $0x10] sm:$0xff]
        %v776 = vld [vmem:[%s4 + $0x18] sm:$0xff]
        %v777 = vld [vmem:[%s4 + $0x20] sm:$0xff]
        %v778 = vld [vmem:[%s4 + $0x28] sm:$0xff]
        %v779 = vld [vmem:[%s4 + $0x30] sm:$0xff]
        %v780 = vld [vmem:[%s4 + $0x38] sm:$0xff]
        %v781 = vld [vmem:[%s4 + $0x40] sm:$0xff]
        %v782 = vld [vmem:[%s4 + $0x48] sm:$0xff]
        %v783 = vld [vmem:[%s4 + $0x50] sm:$0xff]
        %v784 = vld [vmem:[%s4 + $0x58] sm:$0xff]
        %v785 = vld [vmem:[%s4 + $0x60] sm:$0xff]
        %v786 = vld [vmem:[%s4 + $0x68] sm:$0xff]
        %v787 = vld [vmem:[%s4 + $0x70] sm:$0xff]
        %v788 = vld [vmem:[%s4 + $0x78] sm:$0xff]
        %789 = vmatpush.msra.mxu0 %v756
        %790 = vmatpush.msra.mxu0 %v755
        %791 = vmatpush.msra.mxu0 %v754
        %792 = vmatpush.msra.mxu0 %v753
        %793 = vmatpush.msra.mxu0 %v752
        %794 = vmatpush.msra.mxu0 %v751
        %795 = vmatpush.msra.mxu0 %v750
        %796 = vmatpush.msra.mxu0 %v749
        %797 = vmatpush.msra.mxu0 %v748
        %798 = vmatpush.msra.mxu0 %v747
        %799 = vmatpush.msra.mxu0 %v746
        %800 = vmatpush.msra.mxu0 %v745
        %801 = vmatpush.msra.mxu0 %v744
        %802 = vmatpush.msra.mxu0 %v743
        %803 = vmatpush.msra.mxu0 %v742
        %804 = vmatpush.msra.mxu0 %v741
        %805 = vmatmul.f32.gmra.mxu0 %v773
        %v806 = vpop.f32.mrf.mxu0
        %v807 = vadd.f32 0.0, %v806
        %808 = vmatmul.f32.gmra.mxu0 %v775
        %v809 = vpop.f32.mrf.mxu0
        %v810 = vadd.f32 0.0, %v809
        %811 = vmatmul.f32.gmra.mxu0 %v777
        %v812 = vpop.f32.mrf.mxu0
        %v813 = vadd.f32 0.0, %v812
        %814 = vmatmul.f32.gmra.mxu0 %v779
        %v815 = vpop.f32.mrf.mxu0
        %v816 = vadd.f32 0.0, %v815
        %817 = vmatmul.f32.gmra.mxu0 %v781
        %v818 = vpop.f32.mrf.mxu0
        %v819 = vadd.f32 0.0, %v818
        %820 = vmatmul.f32.gmra.mxu0 %v783
        %v821 = vpop.f32.mrf.mxu0
        %v822 = vadd.f32 0.0, %v821
        %823 = vmatmul.f32.gmra.mxu0 %v785
        %v824 = vpop.f32.mrf.mxu0
        %v825 = vadd.f32 0.0, %v824
        %826 = vmatmul.f32.gmra.mxu0 %v787
        %v827 = vpop.f32.mrf.mxu0
        %v828 = vadd.f32 0.0, %v827
        %829 = vdwg.mxu0
        %830 = vmatpush.msra.mxu0 %v772
        %831 = vmatpush.msra.mxu0 %v771
        %832 = vmatpush.msra.mxu0 %v770
        %833 = vmatpush.msra.mxu0 %v769
        %834 = vmatpush.msra.mxu0 %v768
        %835 = vmatpush.msra.mxu0 %v767
        %836 = vmatpush.msra.mxu0 %v766
        %837 = vmatpush.msra.mxu0 %v765
        %838 = vmatpush.msra.mxu0 %v764
        %839 = vmatpush.msra.mxu0 %v763
        %840 = vmatpush.msra.mxu0 %v762
        %841 = vmatpush.msra.mxu0 %v761
        %842 = vmatpush.msra.mxu0 %v760
        %843 = vmatpush.msra.mxu0 %v759
        %844 = vmatpush.msra.mxu0 %v758
        %845 = vmatpush.msra.mxu0 %v757
        %846 = vmatmul.f32.gmra.mxu0 %v774
        %v847 = vpop.f32.mrf.mxu0
        %v848 = vadd.f32 %v807, %v847
        %849 = vmatmul.f32.gmra.mxu0 %v776
        %v850 = vpop.f32.mrf.mxu0
        %v851 = vadd.f32 %v810, %v850
        %852 = vmatmul.f32.gmra.mxu0 %v778
        %v853 = vpop.f32.mrf.mxu0
        %v854 = vadd.f32 %v813, %v853
        %855 = vmatmul.f32.gmra.mxu0 %v780
        %v856 = vpop.f32.mrf.mxu0
        %v857 = vadd.f32 %v816, %v856
        %858 = vmatmul.f32.gmra.mxu0 %v782
        %v859 = vpop.f32.mrf.mxu0
        %v860 = vadd.f32 %v819, %v859
        %861 = vmatmul.f32.gmra.mxu0 %v784
        %v862 = vpop.f32.mrf.mxu0
        %v863 = vadd.f32 %v822, %v862
        %864 = vmatmul.f32.gmra.mxu0 %v786
        %v865 = vpop.f32.mrf.mxu0
        %v866 = vadd.f32 %v825, %v865
        %867 = vmatmul.f32.gmra.mxu0 %v788
        %v868 = vpop.f32.mrf.mxu0
        %v869 = vadd.f32 %v828, %v868
        %870 = vdwg.mxu0
        %s871 = scalar_lea.vmem %s4, 128
        %v872 = vld [vmem:[%s871] sm:$0xff]
        %v873 = vld [vmem:[%s871 + $0x8] sm:$0xff]
        %v874 = vld [vmem:[%s871 + $0x10] sm:$0xff]
        %v875 = vld [vmem:[%s871 + $0x18] sm:$0xff]
        %v876 = vld [vmem:[%s871 + $0x20] sm:$0xff]
        %v877 = vld [vmem:[%s871 + $0x28] sm:$0xff]
        %v878 = vld [vmem:[%s871 + $0x30] sm:$0xff]
        %v879 = vld [vmem:[%s871 + $0x38] sm:$0xff]
        %v880 = vld [vmem:[%s871 + $0x40] sm:$0xff]
        %v881 = vld [vmem:[%s871 + $0x48] sm:$0xff]
        %v882 = vld [vmem:[%s871 + $0x50] sm:$0xff]
        %v883 = vld [vmem:[%s871 + $0x58] sm:$0xff]
        %v884 = vld [vmem:[%s871 + $0x60] sm:$0xff]
        %v885 = vld [vmem:[%s871 + $0x68] sm:$0xff]
        %v886 = vld [vmem:[%s871 + $0x70] sm:$0xff]
        %v887 = vld [vmem:[%s871 + $0x78] sm:$0xff]
        %888 = vmatpush.msra.mxu0 %v756
        %889 = vmatpush.msra.mxu0 %v755
        %890 = vmatpush.msra.mxu0 %v754
        %891 = vmatpush.msra.mxu0 %v753
        %892 = vmatpush.msra.mxu0 %v752
        %893 = vmatpush.msra.mxu0 %v751
        %894 = vmatpush.msra.mxu0 %v750
        %895 = vmatpush.msra.mxu0 %v749
        %896 = vmatpush.msra.mxu0 %v748
        %897 = vmatpush.msra.mxu0 %v747
        %898 = vmatpush.msra.mxu0 %v746
        %899 = vmatpush.msra.mxu0 %v745
        %900 = vmatpush.msra.mxu0 %v744
        %901 = vmatpush.msra.mxu0 %v743
        %902 = vmatpush.msra.mxu0 %v742
        %903 = vmatpush.msra.mxu0 %v741
        %904 = vmatmul.f32.gmra.mxu0 %v872
        %v905 = vpop.f32.mrf.mxu0
        %v906 = vadd.f32 0.0, %v905
        %907 = vmatmul.f32.gmra.mxu0 %v874
        %v908 = vpop.f32.mrf.mxu0
        %v909 = vadd.f32 0.0, %v908
        %910 = vmatmul.f32.gmra.mxu0 %v876
        %v911 = vpop.f32.mrf.mxu0
        %v912 = vadd.f32 0.0, %v911
        %913 = vmatmul.f32.gmra.mxu0 %v878
        %v914 = vpop.f32.mrf.mxu0
        %v915 = vadd.f32 0.0, %v914
        %916 = vmatmul.f32.gmra.mxu0 %v880
        %v917 = vpop.f32.mrf.mxu0
        %v918 = vadd.f32 0.0, %v917
        %919 = vmatmul.f32.gmra.mxu0 %v882
        %v920 = vpop.f32.mrf.mxu0
        %v921 = vadd.f32 0.0, %v920
        %922 = vmatmul.f32.gmra.mxu0 %v884
        %v923 = vpop.f32.mrf.mxu0
        %v924 = vadd.f32 0.0, %v923
        %925 = vmatmul.f32.gmra.mxu0 %v886
        %v926 = vpop.f32.mrf.mxu0
        %v927 = vadd.f32 0.0, %v926
        %928 = vdwg.mxu0
        %929 = vmatpush.msra.mxu0 %v772
        %930 = vmatpush.msra.mxu0 %v771
        %931 = vmatpush.msra.mxu0 %v770
        %932 = vmatpush.msra.mxu0 %v769
        %933 = vmatpush.msra.mxu0 %v768
        %934 = vmatpush.msra.mxu0 %v767
        %935 = vmatpush.msra.mxu0 %v766
        %936 = vmatpush.msra.mxu0 %v765
        %937 = vmatpush.msra.mxu0 %v764
        %938 = vmatpush.msra.mxu0 %v763
        %939 = vmatpush.msra.mxu0 %v762
        %940 = vmatpush.msra.mxu0 %v761
        %941 = vmatpush.msra.mxu0 %v760
        %942 = vmatpush.msra.mxu0 %v759
        %943 = vmatpush.msra.mxu0 %v758
        %944 = vmatpush.msra.mxu0 %v757
        %945 = vmatmul.f32.gmra.mxu0 %v873
        %v946 = vpop.f32.mrf.mxu0
        %v947 = vadd.f32 %v906, %v946
        %948 = vmatmul.f32.gmra.mxu0 %v875
        %v949 = vpop.f32.mrf.mxu0
        %v950 = vadd.f32 %v909, %v949
        %951 = vmatmul.f32.gmra.mxu0 %v877
        %v952 = vpop.f32.mrf.mxu0
        %v953 = vadd.f32 %v912, %v952
        %954 = vmatmul.f32.gmra.mxu0 %v879
        %v955 = vpop.f32.mrf.mxu0
        %v956 = vadd.f32 %v915, %v955
        %957 = vmatmul.f32.gmra.mxu0 %v881
        %v958 = vpop.f32.mrf.mxu0
        %v959 = vadd.f32 %v918, %v958
        %960 = vmatmul.f32.gmra.mxu0 %v883
        %v961 = vpop.f32.mrf.mxu0
        %v962 = vadd.f32 %v921, %v961
        %963 = vmatmul.f32.gmra.mxu0 %v885
        %v964 = vpop.f32.mrf.mxu0
        %v965 = vadd.f32 %v924, %v964
        %966 = vmatmul.f32.gmra.mxu0 %v887
        %v967 = vpop.f32.mrf.mxu0
        %v968 = vadd.f32 %v927, %v967
        %969 = vdwg.mxu0
        %v970 = vmax.f32 %v848, %v947
        %v971 = vmax.f32 %v851, %v950
        %v972 = vmax.f32 %v854, %v953
        %v973 = vmax.f32 %v857, %v956
        %v974 = vmax.f32 %v860, %v959
        %v975 = vmax.f32 %v863, %v962
        %v976 = vmax.f32 %v866, %v965
        %v977 = vmax.f32 %v869, %v968
        %s978 = scalar_lea.vmem %s4, 256
        %v979 = vld [vmem:[%s978] sm:$0xff]
        %v980 = vld [vmem:[%s978 + $0x8] sm:$0xff]
        %v981 = vld [vmem:[%s978 + $0x10] sm:$0xff]
        %v982 = vld [vmem:[%s978 + $0x18] sm:$0xff]
        %v983 = vld [vmem:[%s978 + $0x20] sm:$0xff]
        %v984 = vld [vmem:[%s978 + $0x28] sm:$0xff]
        %v985 = vld [vmem:[%s978 + $0x30] sm:$0xff]
        %v986 = vld [vmem:[%s978 + $0x38] sm:$0xff]
        %v987 = vld [vmem:[%s978 + $0x40] sm:$0xff]
        %v988 = vld [vmem:[%s978 + $0x48] sm:$0xff]
        %v989 = vld [vmem:[%s978 + $0x50] sm:$0xff]
        %v990 = vld [vmem:[%s978 + $0x58] sm:$0xff]
        %v991 = vld [vmem:[%s978 + $0x60] sm:$0xff]
        %v992 = vld [vmem:[%s978 + $0x68] sm:$0xff]
        %v993 = vld [vmem:[%s978 + $0x70] sm:$0xff]
        %v994 = vld [vmem:[%s978 + $0x78] sm:$0xff]
        %995 = vmatpush.msra.mxu0 %v756
        %996 = vmatpush.msra.mxu0 %v755
        %997 = vmatpush.msra.mxu0 %v754
        %998 = vmatpush.msra.mxu0 %v753
        %999 = vmatpush.msra.mxu0 %v752
        %1000 = vmatpush.msra.mxu0 %v751
        %1001 = vmatpush.msra.mxu0 %v750
        %1002 = vmatpush.msra.mxu0 %v749
        %1003 = vmatpush.msra.mxu0 %v748
        %1004 = vmatpush.msra.mxu0 %v747
        %1005 = vmatpush.msra.mxu0 %v746
        %1006 = vmatpush.msra.mxu0 %v745
        %1007 = vmatpush.msra.mxu0 %v744
        %1008 = vmatpush.msra.mxu0 %v743
        %1009 = vmatpush.msra.mxu0 %v742
        %1010 = vmatpush.msra.mxu0 %v741
        %1011 = vmatmul.f32.gmra.mxu0 %v979
        %v1012 = vpop.f32.mrf.mxu0
        %v1013 = vadd.f32 0.0, %v1012
        %1014 = vmatmul.f32.gmra.mxu0 %v981
        %v1015 = vpop.f32.mrf.mxu0
        %v1016 = vadd.f32 0.0, %v1015
        %1017 = vmatmul.f32.gmra.mxu0 %v983
        %v1018 = vpop.f32.mrf.mxu0
        %v1019 = vadd.f32 0.0, %v1018
        %1020 = vmatmul.f32.gmra.mxu0 %v985
        %v1021 = vpop.f32.mrf.mxu0
        %v1022 = vadd.f32 0.0, %v1021
        %1023 = vmatmul.f32.gmra.mxu0 %v987
        %v1024 = vpop.f32.mrf.mxu0
        %v1025 = vadd.f32 0.0, %v1024
        %1026 = vmatmul.f32.gmra.mxu0 %v989
        %v1027 = vpop.f32.mrf.mxu0
        %v1028 = vadd.f32 0.0, %v1027
        %1029 = vmatmul.f32.gmra.mxu0 %v991
        %v1030 = vpop.f32.mrf.mxu0
        %v1031 = vadd.f32 0.0, %v1030
        %1032 = vmatmul.f32.gmra.mxu0 %v993
        %v1033 = vpop.f32.mrf.mxu0
        %v1034 = vadd.f32 0.0, %v1033
        %1035 = vdwg.mxu0
        %1036 = vmatpush.msra.mxu0 %v772
        %1037 = vmatpush.msra.mxu0 %v771
        %1038 = vmatpush.msra.mxu0 %v770
        %1039 = vmatpush.msra.mxu0 %v769
        %1040 = vmatpush.msra.mxu0 %v768
        %1041 = vmatpush.msra.mxu0 %v767
        %1042 = vmatpush.msra.mxu0 %v766
        %1043 = vmatpush.msra.mxu0 %v765
        %1044 = vmatpush.msra.mxu0 %v764
        %1045 = vmatpush.msra.mxu0 %v763
        %1046 = vmatpush.msra.mxu0 %v762
        %1047 = vmatpush.msra.mxu0 %v761
        %1048 = vmatpush.msra.mxu0 %v760
        %1049 = vmatpush.msra.mxu0 %v759
        %1050 = vmatpush.msra.mxu0 %v758
        %1051 = vmatpush.msra.mxu0 %v757
        %1052 = vmatmul.f32.gmra.mxu0 %v980
        %v1053 = vpop.f32.mrf.mxu0
        %v1054 = vadd.f32 %v1013, %v1053
        %1055 = vmatmul.f32.gmra.mxu0 %v982
        %v1056 = vpop.f32.mrf.mxu0
        %v1057 = vadd.f32 %v1016, %v1056
        %1058 = vmatmul.f32.gmra.mxu0 %v984
        %v1059 = vpop.f32.mrf.mxu0
        %v1060 = vadd.f32 %v1019, %v1059
        %1061 = vmatmul.f32.gmra.mxu0 %v986
        %v1062 = vpop.f32.mrf.mxu0
        %v1063 = vadd.f32 %v1022, %v1062
        %1064 = vmatmul.f32.gmra.mxu0 %v988
        %v1065 = vpop.f32.mrf.mxu0
        %v1066 = vadd.f32 %v1025, %v1065
        %1067 = vmatmul.f32.gmra.mxu0 %v990
        %v1068 = vpop.f32.mrf.mxu0
        %v1069 = vadd.f32 %v1028, %v1068
        %1070 = vmatmul.f32.gmra.mxu0 %v992
        %v1071 = vpop.f32.mrf.mxu0
        %v1072 = vadd.f32 %v1031, %v1071
        %1073 = vmatmul.f32.gmra.mxu0 %v994
        %v1074 = vpop.f32.mrf.mxu0
        %v1075 = vadd.f32 %v1034, %v1074
        %1076 = vdwg.mxu0
        %v1077 = vmax.f32 %v970, %v1054
        %v1078 = vmax.f32 %v971, %v1057
        %v1079 = vmax.f32 %v972, %v1060
        %v1080 = vmax.f32 %v973, %v1063
        %v1081 = vmax.f32 %v974, %v1066
        %v1082 = vmax.f32 %v975, %v1069
        %v1083 = vmax.f32 %v976, %v1072
        %v1084 = vmax.f32 %v977, %v1075
        %s1085 = scalar_lea.vmem %s4, 384
        %v1086 = vld [vmem:[%s1085] sm:$0xff]
        %v1087 = vld [vmem:[%s1085 + $0x8] sm:$0xff]
        %v1088 = vld [vmem:[%s1085 + $0x10] sm:$0xff]
        %v1089 = vld [vmem:[%s1085 + $0x18] sm:$0xff]
        %v1090 = vld [vmem:[%s1085 + $0x20] sm:$0xff]
        %v1091 = vld [vmem:[%s1085 + $0x28] sm:$0xff]
        %v1092 = vld [vmem:[%s1085 + $0x30] sm:$0xff]
        %v1093 = vld [vmem:[%s1085 + $0x38] sm:$0xff]
        %v1094 = vld [vmem:[%s1085 + $0x40] sm:$0xff]
        %v1095 = vld [vmem:[%s1085 + $0x48] sm:$0xff]
        %v1096 = vld [vmem:[%s1085 + $0x50] sm:$0xff]
        %v1097 = vld [vmem:[%s1085 + $0x58] sm:$0xff]
        %v1098 = vld [vmem:[%s1085 + $0x60] sm:$0xff]
        %v1099 = vld [vmem:[%s1085 + $0x68] sm:$0xff]
        %v1100 = vld [vmem:[%s1085 + $0x70] sm:$0xff]
        %v1101 = vld [vmem:[%s1085 + $0x78] sm:$0xff]
        %1102 = vmatpush.msra.mxu0 %v756
        %1103 = vmatpush.msra.mxu0 %v755
        %1104 = vmatpush.msra.mxu0 %v754
        %1105 = vmatpush.msra.mxu0 %v753
        %1106 = vmatpush.msra.mxu0 %v752
        %1107 = vmatpush.msra.mxu0 %v751
        %1108 = vmatpush.msra.mxu0 %v750
        %1109 = vmatpush.msra.mxu0 %v749
        %1110 = vmatpush.msra.mxu0 %v748
        %1111 = vmatpush.msra.mxu0 %v747
        %1112 = vmatpush.msra.mxu0 %v746
        %1113 = vmatpush.msra.mxu0 %v745
        %1114 = vmatpush.msra.mxu0 %v744
        %1115 = vmatpush.msra.mxu0 %v743
        %1116 = vmatpush.msra.mxu0 %v742
        %1117 = vmatpush.msra.mxu0 %v741
        %1118 = vmatmul.f32.gmra.mxu0 %v1086
        %v1119 = vpop.f32.mrf.mxu0
        %v1120 = vadd.f32 0.0, %v1119
        %1121 = vmatmul.f32.gmra.mxu0 %v1088
        %v1122 = vpop.f32.mrf.mxu0
        %v1123 = vadd.f32 0.0, %v1122
        %1124 = vmatmul.f32.gmra.mxu0 %v1090
        %v1125 = vpop.f32.mrf.mxu0
        %v1126 = vadd.f32 0.0, %v1125
        %1127 = vmatmul.f32.gmra.mxu0 %v1092
        %v1128 = vpop.f32.mrf.mxu0
        %v1129 = vadd.f32 0.0, %v1128
        %1130 = vmatmul.f32.gmra.mxu0 %v1094
        %v1131 = vpop.f32.mrf.mxu0
        %v1132 = vadd.f32 0.0, %v1131
        %1133 = vmatmul.f32.gmra.mxu0 %v1096
        %v1134 = vpop.f32.mrf.mxu0
        %v1135 = vadd.f32 0.0, %v1134
        %1136 = vmatmul.f32.gmra.mxu0 %v1098
        %v1137 = vpop.f32.mrf.mxu0
        %v1138 = vadd.f32 0.0, %v1137
        %1139 = vmatmul.f32.gmra.mxu0 %v1100
        %v1140 = vpop.f32.mrf.mxu0
        %v1141 = vadd.f32 0.0, %v1140
        %1142 = vdwg.mxu0
        %1143 = vmatpush.msra.mxu0 %v772
        %1144 = vmatpush.msra.mxu0 %v771
        %1145 = vmatpush.msra.mxu0 %v770
        %1146 = vmatpush.msra.mxu0 %v769
        %1147 = vmatpush.msra.mxu0 %v768
        %1148 = vmatpush.msra.mxu0 %v767
        %1149 = vmatpush.msra.mxu0 %v766
        %1150 = vmatpush.msra.mxu0 %v765
        %1151 = vmatpush.msra.mxu0 %v764
        %1152 = vmatpush.msra.mxu0 %v763
        %1153 = vmatpush.msra.mxu0 %v762
        %1154 = vmatpush.msra.mxu0 %v761
        %1155 = vmatpush.msra.mxu0 %v760
        %1156 = vmatpush.msra.mxu0 %v759
        %1157 = vmatpush.msra.mxu0 %v758
        %1158 = vmatpush.msra.mxu0 %v757
        %1159 = vmatmul.f32.gmra.mxu0 %v1087
        %v1160 = vpop.f32.mrf.mxu0
        %v1161 = vadd.f32 %v1120, %v1160
        %1162 = vmatmul.f32.gmra.mxu0 %v1089
        %v1163 = vpop.f32.mrf.mxu0
        %v1164 = vadd.f32 %v1123, %v1163
        %1165 = vmatmul.f32.gmra.mxu0 %v1091
        %v1166 = vpop.f32.mrf.mxu0
        %v1167 = vadd.f32 %v1126, %v1166
        %1168 = vmatmul.f32.gmra.mxu0 %v1093
        %v1169 = vpop.f32.mrf.mxu0
        %v1170 = vadd.f32 %v1129, %v1169
        %1171 = vmatmul.f32.gmra.mxu0 %v1095
        %v1172 = vpop.f32.mrf.mxu0
        %v1173 = vadd.f32 %v1132, %v1172
        %1174 = vmatmul.f32.gmra.mxu0 %v1097
        %v1175 = vpop.f32.mrf.mxu0
        %v1176 = vadd.f32 %v1135, %v1175
        %1177 = vmatmul.f32.gmra.mxu0 %v1099
        %v1178 = vpop.f32.mrf.mxu0
        %v1179 = vadd.f32 %v1138, %v1178
        %1180 = vmatmul.f32.gmra.mxu0 %v1101
        %v1181 = vpop.f32.mrf.mxu0
        %v1182 = vadd.f32 %v1141, %v1181
        %1183 = vdwg.mxu0
        %v1184 = vmax.f32 %v1077, %v1161
        %v1185 = vmax.f32 %v1078, %v1164
        %v1186 = vmax.f32 %v1079, %v1167
        %v1187 = vmax.f32 %v1080, %v1170
        %v1188 = vmax.f32 %v1081, %v1173
        %v1189 = vmax.f32 %v1082, %v1176
        %v1190 = vmax.f32 %v1083, %v1179
        %v1191 = vmax.f32 %v1084, %v1182
        %s1192 = scalar_lea.vmem %s4, 512
        %v1193 = vld [vmem:[%s1192] sm:$0xff]
        %v1194 = vld [vmem:[%s1192 + $0x8] sm:$0xff]
        %v1195 = vld [vmem:[%s1192 + $0x10] sm:$0xff]
        %v1196 = vld [vmem:[%s1192 + $0x18] sm:$0xff]
        %v1197 = vld [vmem:[%s1192 + $0x20] sm:$0xff]
        %v1198 = vld [vmem:[%s1192 + $0x28] sm:$0xff]
        %v1199 = vld [vmem:[%s1192 + $0x30] sm:$0xff]
        %v1200 = vld [vmem:[%s1192 + $0x38] sm:$0xff]
        %v1201 = vld [vmem:[%s1192 + $0x40] sm:$0xff]
        %v1202 = vld [vmem:[%s1192 + $0x48] sm:$0xff]
        %v1203 = vld [vmem:[%s1192 + $0x50] sm:$0xff]
        %v1204 = vld [vmem:[%s1192 + $0x58] sm:$0xff]
        %v1205 = vld [vmem:[%s1192 + $0x60] sm:$0xff]
        %v1206 = vld [vmem:[%s1192 + $0x68] sm:$0xff]
        %v1207 = vld [vmem:[%s1192 + $0x70] sm:$0xff]
        %v1208 = vld [vmem:[%s1192 + $0x78] sm:$0xff]
        %1209 = vmatpush.msra.mxu0 %v756
        %1210 = vmatpush.msra.mxu0 %v755
        %1211 = vmatpush.msra.mxu0 %v754
        %1212 = vmatpush.msra.mxu0 %v753
        %1213 = vmatpush.msra.mxu0 %v752
        %1214 = vmatpush.msra.mxu0 %v751
        %1215 = vmatpush.msra.mxu0 %v750
        %1216 = vmatpush.msra.mxu0 %v749
        %1217 = vmatpush.msra.mxu0 %v748
        %1218 = vmatpush.msra.mxu0 %v747
        %1219 = vmatpush.msra.mxu0 %v746
        %1220 = vmatpush.msra.mxu0 %v745
        %1221 = vmatpush.msra.mxu0 %v744
        %1222 = vmatpush.msra.mxu0 %v743
        %1223 = vmatpush.msra.mxu0 %v742
        %1224 = vmatpush.msra.mxu0 %v741
        %1225 = vmatmul.f32.gmra.mxu0 %v1193
        %v1226 = vpop.f32.mrf.mxu0
        %v1227 = vadd.f32 0.0, %v1226
        %1228 = vmatmul.f32.gmra.mxu0 %v1195
        %v1229 = vpop.f32.mrf.mxu0
        %v1230 = vadd.f32 0.0, %v1229
        %1231 = vmatmul.f32.gmra.mxu0 %v1197
        %v1232 = vpop.f32.mrf.mxu0
        %v1233 = vadd.f32 0.0, %v1232
        %1234 = vmatmul.f32.gmra.mxu0 %v1199
        %v1235 = vpop.f32.mrf.mxu0
        %v1236 = vadd.f32 0.0, %v1235
        %1237 = vmatmul.f32.gmra.mxu0 %v1201
        %v1238 = vpop.f32.mrf.mxu0
        %v1239 = vadd.f32 0.0, %v1238
        %1240 = vmatmul.f32.gmra.mxu0 %v1203
        %v1241 = vpop.f32.mrf.mxu0
        %v1242 = vadd.f32 0.0, %v1241
        %1243 = vmatmul.f32.gmra.mxu0 %v1205
        %v1244 = vpop.f32.mrf.mxu0
        %v1245 = vadd.f32 0.0, %v1244
        %1246 = vmatmul.f32.gmra.mxu0 %v1207
        %v1247 = vpop.f32.mrf.mxu0
        %v1248 = vadd.f32 0.0, %v1247
        %1249 = vdwg.mxu0
        %1250 = vmatpush.msra.mxu0 %v772
        %1251 = vmatpush.msra.mxu0 %v771
        %1252 = vmatpush.msra.mxu0 %v770
        %1253 = vmatpush.msra.mxu0 %v769
        %1254 = vmatpush.msra.mxu0 %v768
        %1255 = vmatpush.msra.mxu0 %v767
        %1256 = vmatpush.msra.mxu0 %v766
        %1257 = vmatpush.msra.mxu0 %v765
        %1258 = vmatpush.msra.mxu0 %v764
        %1259 = vmatpush.msra.mxu0 %v763
        %1260 = vmatpush.msra.mxu0 %v762
        %1261 = vmatpush.msra.mxu0 %v761
        %1262 = vmatpush.msra.mxu0 %v760
        %1263 = vmatpush.msra.mxu0 %v759
        %1264 = vmatpush.msra.mxu0 %v758
        %1265 = vmatpush.msra.mxu0 %v757
        %1266 = vmatmul.f32.gmra.mxu0 %v1194
        %v1267 = vpop.f32.mrf.mxu0
        %v1268 = vadd.f32 %v1227, %v1267
        %1269 = vmatmul.f32.gmra.mxu0 %v1196
        %v1270 = vpop.f32.mrf.mxu0
        %v1271 = vadd.f32 %v1230, %v1270
        %1272 = vmatmul.f32.gmra.mxu0 %v1198
        %v1273 = vpop.f32.mrf.mxu0
        %v1274 = vadd.f32 %v1233, %v1273
        %1275 = vmatmul.f32.gmra.mxu0 %v1200
        %v1276 = vpop.f32.mrf.mxu0
        %v1277 = vadd.f32 %v1236, %v1276
        %1278 = vmatmul.f32.gmra.mxu0 %v1202
        %v1279 = vpop.f32.mrf.mxu0
        %v1280 = vadd.f32 %v1239, %v1279
        %1281 = vmatmul.f32.gmra.mxu0 %v1204
        %v1282 = vpop.f32.mrf.mxu0
        %v1283 = vadd.f32 %v1242, %v1282
        %1284 = vmatmul.f32.gmra.mxu0 %v1206
        %v1285 = vpop.f32.mrf.mxu0
        %v1286 = vadd.f32 %v1245, %v1285
        %1287 = vmatmul.f32.gmra.mxu0 %v1208
        %v1288 = vpop.f32.mrf.mxu0
        %v1289 = vadd.f32 %v1248, %v1288
        %1290 = vdwg.mxu0
        %v1291 = vmax.f32 %v1184, %v1268
        %v1292 = vmax.f32 %v1185, %v1271
        %v1293 = vmax.f32 %v1186, %v1274
        %v1294 = vmax.f32 %v1187, %v1277
        %v1295 = vmax.f32 %v1188, %v1280
        %v1296 = vmax.f32 %v1189, %v1283
        %v1297 = vmax.f32 %v1190, %v1286
        %v1298 = vmax.f32 %v1191, %v1289
        %s1299 = scalar_lea.vmem %s4, 640
        %v1300 = vld [vmem:[%s1299] sm:$0xff]
        %v1301 = vld [vmem:[%s1299 + $0x8] sm:$0xff]
        %v1302 = vld [vmem:[%s1299 + $0x10] sm:$0xff]
        %v1303 = vld [vmem:[%s1299 + $0x18] sm:$0xff]
        %v1304 = vld [vmem:[%s1299 + $0x20] sm:$0xff]
        %v1305 = vld [vmem:[%s1299 + $0x28] sm:$0xff]
        %v1306 = vld [vmem:[%s1299 + $0x30] sm:$0xff]
        %v1307 = vld [vmem:[%s1299 + $0x38] sm:$0xff]
        %v1308 = vld [vmem:[%s1299 + $0x40] sm:$0xff]
        %v1309 = vld [vmem:[%s1299 + $0x48] sm:$0xff]
        %v1310 = vld [vmem:[%s1299 + $0x50] sm:$0xff]
        %v1311 = vld [vmem:[%s1299 + $0x58] sm:$0xff]
        %v1312 = vld [vmem:[%s1299 + $0x60] sm:$0xff]
        %v1313 = vld [vmem:[%s1299 + $0x68] sm:$0xff]
        %v1314 = vld [vmem:[%s1299 + $0x70] sm:$0xff]
        %v1315 = vld [vmem:[%s1299 + $0x78] sm:$0xff]
        %1316 = vmatpush.msra.mxu0 %v756
        %1317 = vmatpush.msra.mxu0 %v755
        %1318 = vmatpush.msra.mxu0 %v754
        %1319 = vmatpush.msra.mxu0 %v753
        %1320 = vmatpush.msra.mxu0 %v752
        %1321 = vmatpush.msra.mxu0 %v751
        %1322 = vmatpush.msra.mxu0 %v750
        %1323 = vmatpush.msra.mxu0 %v749
        %1324 = vmatpush.msra.mxu0 %v748
        %1325 = vmatpush.msra.mxu0 %v747
        %1326 = vmatpush.msra.mxu0 %v746
        %1327 = vmatpush.msra.mxu0 %v745
        %1328 = vmatpush.msra.mxu0 %v744
        %1329 = vmatpush.msra.mxu0 %v743
        %1330 = vmatpush.msra.mxu0 %v742
        %1331 = vmatpush.msra.mxu0 %v741
        %1332 = vmatmul.f32.gmra.mxu0 %v1300
        %v1333 = vpop.f32.mrf.mxu0
        %v1334 = vadd.f32 0.0, %v1333
        %1335 = vmatmul.f32.gmra.mxu0 %v1302
        %v1336 = vpop.f32.mrf.mxu0
        %v1337 = vadd.f32 0.0, %v1336
        %1338 = vmatmul.f32.gmra.mxu0 %v1304
        %v1339 = vpop.f32.mrf.mxu0
        %v1340 = vadd.f32 0.0, %v1339
        %1341 = vmatmul.f32.gmra.mxu0 %v1306
        %v1342 = vpop.f32.mrf.mxu0
        %v1343 = vadd.f32 0.0, %v1342
        %1344 = vmatmul.f32.gmra.mxu0 %v1308
        %v1345 = vpop.f32.mrf.mxu0
        %v1346 = vadd.f32 0.0, %v1345
        %1347 = vmatmul.f32.gmra.mxu0 %v1310
        %v1348 = vpop.f32.mrf.mxu0
        %v1349 = vadd.f32 0.0, %v1348
        %1350 = vmatmul.f32.gmra.mxu0 %v1312
        %v1351 = vpop.f32.mrf.mxu0
        %v1352 = vadd.f32 0.0, %v1351
        %1353 = vmatmul.f32.gmra.mxu0 %v1314
        %v1354 = vpop.f32.mrf.mxu0
        %v1355 = vadd.f32 0.0, %v1354
        %1356 = vdwg.mxu0
        %1357 = vmatpush.msra.mxu0 %v772
        %1358 = vmatpush.msra.mxu0 %v771
        %1359 = vmatpush.msra.mxu0 %v770
        %1360 = vmatpush.msra.mxu0 %v769
        %1361 = vmatpush.msra.mxu0 %v768
        %1362 = vmatpush.msra.mxu0 %v767
        %1363 = vmatpush.msra.mxu0 %v766
        %1364 = vmatpush.msra.mxu0 %v765
        %1365 = vmatpush.msra.mxu0 %v764
        %1366 = vmatpush.msra.mxu0 %v763
        %1367 = vmatpush.msra.mxu0 %v762
        %1368 = vmatpush.msra.mxu0 %v761
        %1369 = vmatpush.msra.mxu0 %v760
        %1370 = vmatpush.msra.mxu0 %v759
        %1371 = vmatpush.msra.mxu0 %v758
        %1372 = vmatpush.msra.mxu0 %v757
        %1373 = vmatmul.f32.gmra.mxu0 %v1301
        %v1374 = vpop.f32.mrf.mxu0
        %v1375 = vadd.f32 %v1334, %v1374
        %1376 = vmatmul.f32.gmra.mxu0 %v1303
        %v1377 = vpop.f32.mrf.mxu0
        %v1378 = vadd.f32 %v1337, %v1377
        %1379 = vmatmul.f32.gmra.mxu0 %v1305
        %v1380 = vpop.f32.mrf.mxu0
        %v1381 = vadd.f32 %v1340, %v1380
        %1382 = vmatmul.f32.gmra.mxu0 %v1307
        %v1383 = vpop.f32.mrf.mxu0
        %v1384 = vadd.f32 %v1343, %v1383
        %1385 = vmatmul.f32.gmra.mxu0 %v1309
        %v1386 = vpop.f32.mrf.mxu0
        %v1387 = vadd.f32 %v1346, %v1386
        %1388 = vmatmul.f32.gmra.mxu0 %v1311
        %v1389 = vpop.f32.mrf.mxu0
        %v1390 = vadd.f32 %v1349, %v1389
        %1391 = vmatmul.f32.gmra.mxu0 %v1313
        %v1392 = vpop.f32.mrf.mxu0
        %v1393 = vadd.f32 %v1352, %v1392
        %1394 = vmatmul.f32.gmra.mxu0 %v1315
        %v1395 = vpop.f32.mrf.mxu0
        %v1396 = vadd.f32 %v1355, %v1395
        %1397 = vdwg.mxu0
        %v1398 = vmax.f32 %v1291, %v1375
        %v1399 = vmax.f32 %v1292, %v1378
        %v1400 = vmax.f32 %v1293, %v1381
        %v1401 = vmax.f32 %v1294, %v1384
        %v1402 = vmax.f32 %v1295, %v1387
        %v1403 = vmax.f32 %v1296, %v1390
        %v1404 = vmax.f32 %v1297, %v1393
        %v1405 = vmax.f32 %v1298, %v1396
        %s1406 = scalar_lea.vmem %s4, 768
        %v1407 = vld [vmem:[%s1406] sm:$0xff]
        %v1408 = vld [vmem:[%s1406 + $0x8] sm:$0xff]
        %v1409 = vld [vmem:[%s1406 + $0x10] sm:$0xff]
        %v1410 = vld [vmem:[%s1406 + $0x18] sm:$0xff]
        %v1411 = vld [vmem:[%s1406 + $0x20] sm:$0xff]
        %v1412 = vld [vmem:[%s1406 + $0x28] sm:$0xff]
        %v1413 = vld [vmem:[%s1406 + $0x30] sm:$0xff]
        %v1414 = vld [vmem:[%s1406 + $0x38] sm:$0xff]
        %v1415 = vld [vmem:[%s1406 + $0x40] sm:$0xff]
        %v1416 = vld [vmem:[%s1406 + $0x48] sm:$0xff]
        %v1417 = vld [vmem:[%s1406 + $0x50] sm:$0xff]
        %v1418 = vld [vmem:[%s1406 + $0x58] sm:$0xff]
        %v1419 = vld [vmem:[%s1406 + $0x60] sm:$0xff]
        %v1420 = vld [vmem:[%s1406 + $0x68] sm:$0xff]
        %v1421 = vld [vmem:[%s1406 + $0x70] sm:$0xff]
        %v1422 = vld [vmem:[%s1406 + $0x78] sm:$0xff]
        %1423 = vmatpush.msra.mxu0 %v756
        %1424 = vmatpush.msra.mxu0 %v755
        %1425 = vmatpush.msra.mxu0 %v754
        %1426 = vmatpush.msra.mxu0 %v753
        %1427 = vmatpush.msra.mxu0 %v752
        %1428 = vmatpush.msra.mxu0 %v751
        %1429 = vmatpush.msra.mxu0 %v750
        %1430 = vmatpush.msra.mxu0 %v749
        %1431 = vmatpush.msra.mxu0 %v748
        %1432 = vmatpush.msra.mxu0 %v747
        %1433 = vmatpush.msra.mxu0 %v746
        %1434 = vmatpush.msra.mxu0 %v745
        %1435 = vmatpush.msra.mxu0 %v744
        %1436 = vmatpush.msra.mxu0 %v743
        %1437 = vmatpush.msra.mxu0 %v742
        %1438 = vmatpush.msra.mxu0 %v741
        %1439 = vmatmul.f32.gmra.mxu0 %v1407
        %v1440 = vpop.f32.mrf.mxu0
        %v1441 = vadd.f32 0.0, %v1440
        %1442 = vmatmul.f32.gmra.mxu0 %v1409
        %v1443 = vpop.f32.mrf.mxu0
        %v1444 = vadd.f32 0.0, %v1443
        %1445 = vmatmul.f32.gmra.mxu0 %v1411
        %v1446 = vpop.f32.mrf.mxu0
        %v1447 = vadd.f32 0.0, %v1446
        %1448 = vmatmul.f32.gmra.mxu0 %v1413
        %v1449 = vpop.f32.mrf.mxu0
        %v1450 = vadd.f32 0.0, %v1449
        %1451 = vmatmul.f32.gmra.mxu0 %v1415
        %v1452 = vpop.f32.mrf.mxu0
        %v1453 = vadd.f32 0.0, %v1452
        %1454 = vmatmul.f32.gmra.mxu0 %v1417
        %v1455 = vpop.f32.mrf.mxu0
        %v1456 = vadd.f32 0.0, %v1455
        %1457 = vmatmul.f32.gmra.mxu0 %v1419
        %v1458 = vpop.f32.mrf.mxu0
        %v1459 = vadd.f32 0.0, %v1458
        %1460 = vmatmul.f32.gmra.mxu0 %v1421
        %v1461 = vpop.f32.mrf.mxu0
        %v1462 = vadd.f32 0.0, %v1461
        %1463 = vdwg.mxu0
        %1464 = vmatpush.msra.mxu0 %v772
        %1465 = vmatpush.msra.mxu0 %v771
        %1466 = vmatpush.msra.mxu0 %v770
        %1467 = vmatpush.msra.mxu0 %v769
        %1468 = vmatpush.msra.mxu0 %v768
        %1469 = vmatpush.msra.mxu0 %v767
        %1470 = vmatpush.msra.mxu0 %v766
        %1471 = vmatpush.msra.mxu0 %v765
        %1472 = vmatpush.msra.mxu0 %v764
        %1473 = vmatpush.msra.mxu0 %v763
        %1474 = vmatpush.msra.mxu0 %v762
        %1475 = vmatpush.msra.mxu0 %v761
        %1476 = vmatpush.msra.mxu0 %v760
        %1477 = vmatpush.msra.mxu0 %v759
        %1478 = vmatpush.msra.mxu0 %v758
        %1479 = vmatpush.msra.mxu0 %v757
        %1480 = vmatmul.f32.gmra.mxu0 %v1408
        %v1481 = vpop.f32.mrf.mxu0
        %v1482 = vadd.f32 %v1441, %v1481
        %1483 = vmatmul.f32.gmra.mxu0 %v1410
        %v1484 = vpop.f32.mrf.mxu0
        %v1485 = vadd.f32 %v1444, %v1484
        %1486 = vmatmul.f32.gmra.mxu0 %v1412
        %v1487 = vpop.f32.mrf.mxu0
        %v1488 = vadd.f32 %v1447, %v1487
        %1489 = vmatmul.f32.gmra.mxu0 %v1414
        %v1490 = vpop.f32.mrf.mxu0
        %v1491 = vadd.f32 %v1450, %v1490
        %1492 = vmatmul.f32.gmra.mxu0 %v1416
        %v1493 = vpop.f32.mrf.mxu0
        %v1494 = vadd.f32 %v1453, %v1493
        %1495 = vmatmul.f32.gmra.mxu0 %v1418
        %v1496 = vpop.f32.mrf.mxu0
        %v1497 = vadd.f32 %v1456, %v1496
        %1498 = vmatmul.f32.gmra.mxu0 %v1420
        %v1499 = vpop.f32.mrf.mxu0
        %v1500 = vadd.f32 %v1459, %v1499
        %1501 = vmatmul.f32.gmra.mxu0 %v1422
        %v1502 = vpop.f32.mrf.mxu0
        %v1503 = vadd.f32 %v1462, %v1502
        %1504 = vdwg.mxu0
        %v1505 = vmax.f32 %v1398, %v1482
        %v1506 = vmax.f32 %v1399, %v1485
        %v1507 = vmax.f32 %v1400, %v1488
        %v1508 = vmax.f32 %v1401, %v1491
        %v1509 = vmax.f32 %v1402, %v1494
        %v1510 = vmax.f32 %v1403, %v1497
        %v1511 = vmax.f32 %v1404, %v1500
        %v1512 = vmax.f32 %v1405, %v1503
        %s1513 = scalar_lea.vmem %s4, 896
        %v1514 = vld [vmem:[%s1513] sm:$0xff]
        %v1515 = vld [vmem:[%s1513 + $0x8] sm:$0xff]
        %v1516 = vld [vmem:[%s1513 + $0x10] sm:$0xff]
        %v1517 = vld [vmem:[%s1513 + $0x18] sm:$0xff]
        %v1518 = vld [vmem:[%s1513 + $0x20] sm:$0xff]
        %v1519 = vld [vmem:[%s1513 + $0x28] sm:$0xff]
        %v1520 = vld [vmem:[%s1513 + $0x30] sm:$0xff]
        %v1521 = vld [vmem:[%s1513 + $0x38] sm:$0xff]
        %v1522 = vld [vmem:[%s1513 + $0x40] sm:$0xff]
        %v1523 = vld [vmem:[%s1513 + $0x48] sm:$0xff]
        %v1524 = vld [vmem:[%s1513 + $0x50] sm:$0xff]
        %v1525 = vld [vmem:[%s1513 + $0x58] sm:$0xff]
        %v1526 = vld [vmem:[%s1513 + $0x60] sm:$0xff]
        %v1527 = vld [vmem:[%s1513 + $0x68] sm:$0xff]
        %v1528 = vld [vmem:[%s1513 + $0x70] sm:$0xff]
        %v1529 = vld [vmem:[%s1513 + $0x78] sm:$0xff]
        %1530 = vmatpush.msra.mxu0 %v756
        %1531 = vmatpush.msra.mxu0 %v755
        %1532 = vmatpush.msra.mxu0 %v754
        %1533 = vmatpush.msra.mxu0 %v753
        %1534 = vmatpush.msra.mxu0 %v752
        %1535 = vmatpush.msra.mxu0 %v751
        %1536 = vmatpush.msra.mxu0 %v750
        %1537 = vmatpush.msra.mxu0 %v749
        %1538 = vmatpush.msra.mxu0 %v748
        %1539 = vmatpush.msra.mxu0 %v747
        %1540 = vmatpush.msra.mxu0 %v746
        %1541 = vmatpush.msra.mxu0 %v745
        %1542 = vmatpush.msra.mxu0 %v744
        %1543 = vmatpush.msra.mxu0 %v743
        %1544 = vmatpush.msra.mxu0 %v742
        %1545 = vmatpush.msra.mxu0 %v741
        %1546 = vmatmul.f32.gmra.mxu0 %v1514
        %v1547 = vpop.f32.mrf.mxu0
        %v1548 = vadd.f32 0.0, %v1547
        %1549 = vmatmul.f32.gmra.mxu0 %v1516
        %v1550 = vpop.f32.mrf.mxu0
        %v1551 = vadd.f32 0.0, %v1550
        %1552 = vmatmul.f32.gmra.mxu0 %v1518
        %v1553 = vpop.f32.mrf.mxu0
        %v1554 = vadd.f32 0.0, %v1553
        %1555 = vmatmul.f32.gmra.mxu0 %v1520
        %v1556 = vpop.f32.mrf.mxu0
        %v1557 = vadd.f32 0.0, %v1556
        %1558 = vmatmul.f32.gmra.mxu0 %v1522
        %v1559 = vpop.f32.mrf.mxu0
        %v1560 = vadd.f32 0.0, %v1559
        %1561 = vmatmul.f32.gmra.mxu0 %v1524
        %v1562 = vpop.f32.mrf.mxu0
        %v1563 = vadd.f32 0.0, %v1562
        %1564 = vmatmul.f32.gmra.mxu0 %v1526
        %v1565 = vpop.f32.mrf.mxu0
        %v1566 = vadd.f32 0.0, %v1565
        %1567 = vmatmul.f32.gmra.mxu0 %v1528
        %v1568 = vpop.f32.mrf.mxu0
        %v1569 = vadd.f32 0.0, %v1568
        %1570 = vdwg.mxu0
        %1571 = vmatpush.msra.mxu0 %v772
        %1572 = vmatpush.msra.mxu0 %v771
        %1573 = vmatpush.msra.mxu0 %v770
        %1574 = vmatpush.msra.mxu0 %v769
        %1575 = vmatpush.msra.mxu0 %v768
        %1576 = vmatpush.msra.mxu0 %v767
        %1577 = vmatpush.msra.mxu0 %v766
        %1578 = vmatpush.msra.mxu0 %v765
        %1579 = vmatpush.msra.mxu0 %v764
        %1580 = vmatpush.msra.mxu0 %v763
        %1581 = vmatpush.msra.mxu0 %v762
        %1582 = vmatpush.msra.mxu0 %v761
        %1583 = vmatpush.msra.mxu0 %v760
        %1584 = vmatpush.msra.mxu0 %v759
        %1585 = vmatpush.msra.mxu0 %v758
        %1586 = vmatpush.msra.mxu0 %v757
        %1587 = vmatmul.f32.gmra.mxu0 %v1515
        %v1588 = vpop.f32.mrf.mxu0
        %v1589 = vadd.f32 %v1548, %v1588
        %1590 = vmatmul.f32.gmra.mxu0 %v1517
        %v1591 = vpop.f32.mrf.mxu0
        %v1592 = vadd.f32 %v1551, %v1591
        %1593 = vmatmul.f32.gmra.mxu0 %v1519
        %v1594 = vpop.f32.mrf.mxu0
        %v1595 = vadd.f32 %v1554, %v1594
        %1596 = vmatmul.f32.gmra.mxu0 %v1521
        %v1597 = vpop.f32.mrf.mxu0
        %v1598 = vadd.f32 %v1557, %v1597
        %1599 = vmatmul.f32.gmra.mxu0 %v1523
        %v1600 = vpop.f32.mrf.mxu0
        %v1601 = vadd.f32 %v1560, %v1600
        %1602 = vmatmul.f32.gmra.mxu0 %v1525
        %v1603 = vpop.f32.mrf.mxu0
        %v1604 = vadd.f32 %v1563, %v1603
        %1605 = vmatmul.f32.gmra.mxu0 %v1527
        %v1606 = vpop.f32.mrf.mxu0
        %v1607 = vadd.f32 %v1566, %v1606
        %1608 = vmatmul.f32.gmra.mxu0 %v1529
        %v1609 = vpop.f32.mrf.mxu0
        %v1610 = vadd.f32 %v1569, %v1609
        %1611 = vdwg.mxu0
        %v1612 = vmax.f32 %v1505, %v1589
        %v1613 = vmax.f32 %v1506, %v1592
        %v1614 = vmax.f32 %v1507, %v1595
        %v1615 = vmax.f32 %v1508, %v1598
        %v1616 = vmax.f32 %v1509, %v1601
        %v1617 = vmax.f32 %v1510, %v1604
        %v1618 = vmax.f32 %v1511, %v1607
        %v1619 = vmax.f32 %v1512, %v1610
        %s1620 = scalar_lea.vmem %s4, 1024
        %v1621 = vld [vmem:[%s1620] sm:$0xff]
        %v1622 = vld [vmem:[%s1620 + $0x8] sm:$0xff]
        %v1623 = vld [vmem:[%s1620 + $0x10] sm:$0xff]
        %v1624 = vld [vmem:[%s1620 + $0x18] sm:$0xff]
        %v1625 = vld [vmem:[%s1620 + $0x20] sm:$0xff]
        %v1626 = vld [vmem:[%s1620 + $0x28] sm:$0xff]
        %v1627 = vld [vmem:[%s1620 + $0x30] sm:$0xff]
        %v1628 = vld [vmem:[%s1620 + $0x38] sm:$0xff]
        %v1629 = vld [vmem:[%s1620 + $0x40] sm:$0xff]
        %v1630 = vld [vmem:[%s1620 + $0x48] sm:$0xff]
        %v1631 = vld [vmem:[%s1620 + $0x50] sm:$0xff]
        %v1632 = vld [vmem:[%s1620 + $0x58] sm:$0xff]
        %v1633 = vld [vmem:[%s1620 + $0x60] sm:$0xff]
        %v1634 = vld [vmem:[%s1620 + $0x68] sm:$0xff]
        %v1635 = vld [vmem:[%s1620 + $0x70] sm:$0xff]
        %v1636 = vld [vmem:[%s1620 + $0x78] sm:$0xff]
        %1637 = vmatpush.msra.mxu0 %v756
        %1638 = vmatpush.msra.mxu0 %v755
        %1639 = vmatpush.msra.mxu0 %v754
        %1640 = vmatpush.msra.mxu0 %v753
        %1641 = vmatpush.msra.mxu0 %v752
        %1642 = vmatpush.msra.mxu0 %v751
        %1643 = vmatpush.msra.mxu0 %v750
        %1644 = vmatpush.msra.mxu0 %v749
        %1645 = vmatpush.msra.mxu0 %v748
        %1646 = vmatpush.msra.mxu0 %v747
        %1647 = vmatpush.msra.mxu0 %v746
        %1648 = vmatpush.msra.mxu0 %v745
        %1649 = vmatpush.msra.mxu0 %v744
        %1650 = vmatpush.msra.mxu0 %v743
        %1651 = vmatpush.msra.mxu0 %v742
        %1652 = vmatpush.msra.mxu0 %v741
        %1653 = vmatmul.f32.gmra.mxu0 %v1621
        %v1654 = vpop.f32.mrf.mxu0
        %v1655 = vadd.f32 0.0, %v1654
        %1656 = vmatmul.f32.gmra.mxu0 %v1623
        %v1657 = vpop.f32.mrf.mxu0
        %v1658 = vadd.f32 0.0, %v1657
        %1659 = vmatmul.f32.gmra.mxu0 %v1625
        %v1660 = vpop.f32.mrf.mxu0
        %v1661 = vadd.f32 0.0, %v1660
        %1662 = vmatmul.f32.gmra.mxu0 %v1627
        %v1663 = vpop.f32.mrf.mxu0
        %v1664 = vadd.f32 0.0, %v1663
        %1665 = vmatmul.f32.gmra.mxu0 %v1629
        %v1666 = vpop.f32.mrf.mxu0
        %v1667 = vadd.f32 0.0, %v1666
        %1668 = vmatmul.f32.gmra.mxu0 %v1631
        %v1669 = vpop.f32.mrf.mxu0
        %v1670 = vadd.f32 0.0, %v1669
        %1671 = vmatmul.f32.gmra.mxu0 %v1633
        %v1672 = vpop.f32.mrf.mxu0
        %v1673 = vadd.f32 0.0, %v1672
        %1674 = vmatmul.f32.gmra.mxu0 %v1635
        %v1675 = vpop.f32.mrf.mxu0
        %v1676 = vadd.f32 0.0, %v1675
        %1677 = vdwg.mxu0
        %1678 = vmatpush.msra.mxu0 %v772
        %1679 = vmatpush.msra.mxu0 %v771
        %1680 = vmatpush.msra.mxu0 %v770
        %1681 = vmatpush.msra.mxu0 %v769
        %1682 = vmatpush.msra.mxu0 %v768
        %1683 = vmatpush.msra.mxu0 %v767
        %1684 = vmatpush.msra.mxu0 %v766
        %1685 = vmatpush.msra.mxu0 %v765
        %1686 = vmatpush.msra.mxu0 %v764
        %1687 = vmatpush.msra.mxu0 %v763
        %1688 = vmatpush.msra.mxu0 %v762
        %1689 = vmatpush.msra.mxu0 %v761
        %1690 = vmatpush.msra.mxu0 %v760
        %1691 = vmatpush.msra.mxu0 %v759
        %1692 = vmatpush.msra.mxu0 %v758
        %1693 = vmatpush.msra.mxu0 %v757
        %1694 = vmatmul.f32.gmra.mxu0 %v1622
        %v1695 = vpop.f32.mrf.mxu0
        %v1696 = vadd.f32 %v1655, %v1695
        %1697 = vmatmul.f32.gmra.mxu0 %v1624
        %v1698 = vpop.f32.mrf.mxu0
        %v1699 = vadd.f32 %v1658, %v1698
        %1700 = vmatmul.f32.gmra.mxu0 %v1626
        %v1701 = vpop.f32.mrf.mxu0
        %v1702 = vadd.f32 %v1661, %v1701
        %1703 = vmatmul.f32.gmra.mxu0 %v1628
        %v1704 = vpop.f32.mrf.mxu0
        %v1705 = vadd.f32 %v1664, %v1704
        %1706 = vmatmul.f32.gmra.mxu0 %v1630
        %v1707 = vpop.f32.mrf.mxu0
        %v1708 = vadd.f32 %v1667, %v1707
        %1709 = vmatmul.f32.gmra.mxu0 %v1632
        %v1710 = vpop.f32.mrf.mxu0
        %v1711 = vadd.f32 %v1670, %v1710
        %1712 = vmatmul.f32.gmra.mxu0 %v1634
        %v1713 = vpop.f32.mrf.mxu0
        %v1714 = vadd.f32 %v1673, %v1713
        %1715 = vmatmul.f32.gmra.mxu0 %v1636
        %v1716 = vpop.f32.mrf.mxu0
        %v1717 = vadd.f32 %v1676, %v1716
        %1718 = vdwg.mxu0
        %v1719 = vmax.f32 %v1612, %v1696
        %v1720 = vmax.f32 %v1613, %v1699
        %v1721 = vmax.f32 %v1614, %v1702
        %v1722 = vmax.f32 %v1615, %v1705
        %v1723 = vmax.f32 %v1616, %v1708
        %v1724 = vmax.f32 %v1617, %v1711
        %v1725 = vmax.f32 %v1618, %v1714
        %v1726 = vmax.f32 %v1619, %v1717
        %v1727 = vpack.c.bf16 %v1720, %v1719
        %v1728 = vpack.c.bf16 %v1722, %v1721
        %v1729 = vpack.c.bf16 %v1724, %v1723
        %v1730 = vpack.c.bf16 %v1726, %v1725
        %v1731 = vld [vmem:[%s5] sm:$0xf]
        %v1732 = vld [vmem:[%s5 + $0x4] sm:$0xf]
        %v1733 = vld [vmem:[%s5 + $0x8] sm:$0xf]
        %v1734 = vld [vmem:[%s5 + $0xc] sm:$0xf]
        %v1735 = vld [vmem:[%s5 + $0x10] sm:$0xf]
        %v1736 = vld [vmem:[%s5 + $0x14] sm:$0xf]
        %v1737 = vld [vmem:[%s5 + $0x18] sm:$0xf]
        %v1738 = vld [vmem:[%s5 + $0x1c] sm:$0xf]
        %v1747 = vunpack.c.l.b16 %v1731
        %v1748 = vunpack.c.l.b16 %v1732
        %v1749 = vunpack.c.l.b16 %v1733
        %v1750 = vunpack.c.l.b16 %v1734
        %v1751 = vunpack.c.l.b16 %v1735
        %v1752 = vunpack.c.l.b16 %v1736
        %v1753 = vunpack.c.l.b16 %v1737
        %v1754 = vunpack.c.l.b16 %v1738
        %v1755 = vpack.c.b16 %v1748, %v1747
        %v1756 = vpack.c.b16 %v1750, %v1749
        %v1757 = vpack.c.b16 %v1752, %v1751
        %v1758 = vpack.c.b16 %v1754, %v1753
        %vm1759 = vcmask 523264
        %v1761 = vsel %vm1759, %v1755, 0
        %v1764 = vsel %vm1759, %v1756, 0
        %v1767 = vsel %vm1759, %v1757, 0
        %v1770 = vsel %vm1759, %v1758, 0
        %1772 = vmatpush.bf16.msra.mxu0 0
        %1773 = vmatpush.bf16.msra.mxu0 0
        %1774 = vmatpush.bf16.msra.mxu0 0
        %1775 = vmatpush.bf16.msra.mxu0 0
        %1776 = vmatpush.bf16.msra.mxu0 %v1730
        %1777 = vmatpush.bf16.msra.mxu0 %v1729
        %1778 = vmatpush.bf16.msra.mxu0 %v1728
        %1779 = vmatpush.bf16.msra.mxu0 %v1727
        %1780 = vmatmul.bf16.gmra.mxu0 %v1761
        %v1781 = vpop.f32.mrf.mxu0
        %v1782 = vadd.f32 0.0, %v1781
        %v1783 = vpop.f32.mrf.mxu0
        %v1784 = vadd.f32 0.0, %v1783
        %1785 = vmatmul.bf16.gmra.mxu0 %v1764
        %v1786 = vpop.f32.mrf.mxu0
        %v1787 = vadd.f32 0.0, %v1786
        %v1788 = vpop.f32.mrf.mxu0
        %v1789 = vadd.f32 0.0, %v1788
        %1790 = vmatmul.bf16.gmra.mxu0 %v1767
        %v1791 = vpop.f32.mrf.mxu0
        %v1792 = vadd.f32 0.0, %v1791
        %v1793 = vpop.f32.mrf.mxu0
        %v1794 = vadd.f32 0.0, %v1793
        %1795 = vmatmul.bf16.gmra.mxu0 %v1770
        %v1796 = vpop.f32.mrf.mxu0
        %v1797 = vadd.f32 0.0, %v1796
        %v1798 = vpop.f32.mrf.mxu0
        %v1799 = vadd.f32 0.0, %v1798
        %1800 = vdwg.mxu0
        %v1801 = vpack.c.bf16 %v1784, %v1782
        %v1802 = vpack.c.bf16 %v1789, %v1787
        %v1803 = vpack.c.bf16 %v1794, %v1792
        %v1804 = vpack.c.bf16 %v1799, %v1797
        %v1805 = vld [vmem:[%s2] sm:$0xf]
        %v1806 = vld [vmem:[%s2 + $0x4] sm:$0xf]
        %s1807 = scalar_lea.vmem %s5, 32
        %v1808 = vld [vmem:[%s1807] sm:$0xf]
        %v1809 = vld [vmem:[%s1807 + $0x4] sm:$0xf]
        %v1810 = vld [vmem:[%s1807 + $0x8] sm:$0xf]
        %v1811 = vld [vmem:[%s1807 + $0xc] sm:$0xf]
        %v1812 = vld [vmem:[%s1807 + $0x10] sm:$0xf]
        %v1813 = vld [vmem:[%s1807 + $0x14] sm:$0xf]
        %v1814 = vld [vmem:[%s1807 + $0x18] sm:$0xf]
        %v1815 = vld [vmem:[%s1807 + $0x1c] sm:$0xf]
        %v1824 = vunpack.c.l.b16 %v1808
        %v1825 = vunpack.c.l.b16 %v1809
        %v1826 = vunpack.c.l.b16 %v1810
        %v1827 = vunpack.c.l.b16 %v1811
        %v1828 = vunpack.c.l.b16 %v1812
        %v1829 = vunpack.c.l.b16 %v1813
        %v1830 = vunpack.c.l.b16 %v1814
        %v1831 = vunpack.c.l.b16 %v1815
        %v1832 = vpack.c.b16 %v1825, %v1824
        %v1833 = vpack.c.b16 %v1827, %v1826
        %v1834 = vpack.c.b16 %v1829, %v1828
        %v1835 = vpack.c.b16 %v1831, %v1830
        %v1837 = vsel %vm1759, %v1832, 0
        %v1840 = vsel %vm1759, %v1833, 0
        %v1843 = vsel %vm1759, %v1834, 0
        %v1846 = vsel %vm1759, %v1835, 0
        %1848 = vmatpush.bf16.msra.mxu0 0
        %1849 = vmatpush.bf16.msra.mxu0 0
        %1850 = vmatpush.bf16.msra.mxu0 0
        %1851 = vmatpush.bf16.msra.mxu0 0
        %1852 = vmatpush.bf16.msra.mxu0 %v1730
        %1853 = vmatpush.bf16.msra.mxu0 %v1729
        %1854 = vmatpush.bf16.msra.mxu0 %v1728
        %1855 = vmatpush.bf16.msra.mxu0 %v1727
        %1856 = vmatmul.bf16.gmra.mxu0 %v1837
        %v1857 = vpop.f32.mrf.mxu0
        %v1858 = vadd.f32 0.0, %v1857
        %v1859 = vpop.f32.mrf.mxu0
        %v1860 = vadd.f32 0.0, %v1859
        %1861 = vmatmul.bf16.gmra.mxu0 %v1840
        %v1862 = vpop.f32.mrf.mxu0
        %v1863 = vadd.f32 0.0, %v1862
        %v1864 = vpop.f32.mrf.mxu0
        %v1865 = vadd.f32 0.0, %v1864
        %1866 = vmatmul.bf16.gmra.mxu0 %v1843
        %v1867 = vpop.f32.mrf.mxu0
        %v1868 = vadd.f32 0.0, %v1867
        %v1869 = vpop.f32.mrf.mxu0
        %v1870 = vadd.f32 0.0, %v1869
        %1871 = vmatmul.bf16.gmra.mxu0 %v1846
        %v1872 = vpop.f32.mrf.mxu0
        %v1873 = vadd.f32 0.0, %v1872
        %v1874 = vpop.f32.mrf.mxu0
        %v1875 = vadd.f32 0.0, %v1874
        %1876 = vdwg.mxu0
        %v1877 = vpack.c.bf16 %v1860, %v1858
        %v1878 = vpack.c.bf16 %v1865, %v1863
        %v1879 = vpack.c.bf16 %v1870, %v1868
        %v1880 = vpack.c.bf16 %v1875, %v1873
        %s1881 = scalar_lea.vmem %s2, 8
        %v1882 = vld [vmem:[%s1881] sm:$0xf]
        %v1883 = vld [vmem:[%s1881 + $0x4] sm:$0xf]
        %v1886 = vunpack.c.l.b16 %v1882
        %v1887 = vunpack.c.l.b16 %v1883
        %v1888 = vpack.c.b16 %v1887, %v1886
        %vm1890 = vcmask 130048
        %v1892 = vsel %vm1890, %v1877, 0
        %v1895 = vsel %vm1890, %v1878, 0
        %v1898 = vsel %vm1890, %v1879, 0
        %v1901 = vsel %vm1890, %v1880, 0
        %1903 = vmatpush.bf16.msra.mxu0 0
        %1904 = vmatpush.bf16.msra.mxu0 0
        %1905 = vmatpush.bf16.msra.mxu0 0
        %1906 = vmatpush.bf16.msra.mxu0 0
        %1907 = vmatpush.bf16.msra.mxu0 0
        %1908 = vmatpush.bf16.msra.mxu0 0
        %1909 = vmatpush.bf16.msra.mxu0 0
        %1910 = vmatpush.bf16.msra.mxu0 %v1888
        %1911 = vmatmul.bf16.gmra.mxu0 %v1892
        %v1912 = vpop.f32.mrf.mxu0
        %v1913 = vadd.f32 0.0, %v1912
        %v1914 = vpop.f32.mrf.mxu0
        %v1915 = vadd.f32 0.0, %v1914
        %1916 = vmatmul.bf16.gmra.mxu0 %v1895
        %v1917 = vpop.f32.mrf.mxu0
        %v1918 = vadd.f32 0.0, %v1917
        %v1919 = vpop.f32.mrf.mxu0
        %v1920 = vadd.f32 0.0, %v1919
        %1921 = vmatmul.bf16.gmra.mxu0 %v1898
        %v1922 = vpop.f32.mrf.mxu0
        %v1923 = vadd.f32 0.0, %v1922
        %v1924 = vpop.f32.mrf.mxu0
        %v1925 = vadd.f32 0.0, %v1924
        %1926 = vmatmul.bf16.gmra.mxu0 %v1901
        %v1927 = vpop.f32.mrf.mxu0
        %v1928 = vadd.f32 0.0, %v1927
        %v1929 = vpop.f32.mrf.mxu0
        %v1930 = vadd.f32 0.0, %v1929
        %1931 = vdwg.mxu0
        %v1934 = vunpack.c.l.b16 %v1805
        %v1935 = vunpack.c.l.b16 %v1806
        %v1936 = vpack.c.b16 %v1935, %v1934
        %v1939 = vsel %vm1890, %v1801, 0
        %v1942 = vsel %vm1890, %v1802, 0
        %v1945 = vsel %vm1890, %v1803, 0
        %v1948 = vsel %vm1890, %v1804, 0
        %1950 = vmatpush.bf16.msra.mxu0 0
        %1951 = vmatpush.bf16.msra.mxu0 0
        %1952 = vmatpush.bf16.msra.mxu0 0
        %1953 = vmatpush.bf16.msra.mxu0 0
        %1954 = vmatpush.bf16.msra.mxu0 0
        %1955 = vmatpush.bf16.msra.mxu0 0
        %1956 = vmatpush.bf16.msra.mxu0 0
        %1957 = vmatpush.bf16.msra.mxu0 %v1936
        %1958 = vmatmul.bf16.gmra.mxu0 %v1939
        %v1959 = vpop.f32.mrf.mxu0
        %v1960 = vadd.f32 %v1913, %v1959
        %v1961 = vpop.f32.mrf.mxu0
        %v1962 = vadd.f32 %v1915, %v1961
        %1963 = vmatmul.bf16.gmra.mxu0 %v1942
        %v1964 = vpop.f32.mrf.mxu0
        %v1965 = vadd.f32 %v1918, %v1964
        %v1966 = vpop.f32.mrf.mxu0
        %v1967 = vadd.f32 %v1920, %v1966
        %1968 = vmatmul.bf16.gmra.mxu0 %v1945
        %v1969 = vpop.f32.mrf.mxu0
        %v1970 = vadd.f32 %v1923, %v1969
        %v1971 = vpop.f32.mrf.mxu0
        %v1972 = vadd.f32 %v1925, %v1971
        %1973 = vmatmul.bf16.gmra.mxu0 %v1948
        %v1974 = vpop.f32.mrf.mxu0
        %v1975 = vadd.f32 %v1928, %v1974
        %v1976 = vpop.f32.mrf.mxu0
        %v1977 = vadd.f32 %v1930, %v1976
        %1978 = vdwg.mxu0
        %s1979 = scalar_lea.vmem %s5, 64
        %v1980 = vld [vmem:[%s1979] sm:$0xf]
        %v1981 = vld [vmem:[%s1979 + $0x4] sm:$0xf]
        %v1982 = vld [vmem:[%s1979 + $0x8] sm:$0xf]
        %v1983 = vld [vmem:[%s1979 + $0xc] sm:$0xf]
        %v1984 = vld [vmem:[%s1979 + $0x10] sm:$0xf]
        %v1985 = vld [vmem:[%s1979 + $0x14] sm:$0xf]
        %v1986 = vld [vmem:[%s1979 + $0x18] sm:$0xf]
        %v1987 = vld [vmem:[%s1979 + $0x1c] sm:$0xf]
        %v1996 = vunpack.c.l.b16 %v1980
        %v1997 = vunpack.c.l.b16 %v1981
        %v1998 = vunpack.c.l.b16 %v1982
        %v1999 = vunpack.c.l.b16 %v1983
        %v2000 = vunpack.c.l.b16 %v1984
        %v2001 = vunpack.c.l.b16 %v1985
        %v2002 = vunpack.c.l.b16 %v1986
        %v2003 = vunpack.c.l.b16 %v1987
        %v2004 = vpack.c.b16 %v1997, %v1996
        %v2005 = vpack.c.b16 %v1999, %v1998
        %v2006 = vpack.c.b16 %v2001, %v2000
        %v2007 = vpack.c.b16 %v2003, %v2002
        %v2009 = vsel %vm1759, %v2004, 0
        %v2012 = vsel %vm1759, %v2005, 0
        %v2015 = vsel %vm1759, %v2006, 0
        %v2018 = vsel %vm1759, %v2007, 0
        %2020 = vmatpush.bf16.msra.mxu0 0
        %2021 = vmatpush.bf16.msra.mxu0 0
        %2022 = vmatpush.bf16.msra.mxu0 0
        %2023 = vmatpush.bf16.msra.mxu0 0
        %2024 = vmatpush.bf16.msra.mxu0 %v1730
        %2025 = vmatpush.bf16.msra.mxu0 %v1729
        %2026 = vmatpush.bf16.msra.mxu0 %v1728
        %2027 = vmatpush.bf16.msra.mxu0 %v1727
        %2028 = vmatmul.bf16.gmra.mxu0 %v2009
        %v2029 = vpop.f32.mrf.mxu0
        %v2030 = vadd.f32 0.0, %v2029
        %v2031 = vpop.f32.mrf.mxu0
        %v2032 = vadd.f32 0.0, %v2031
        %2033 = vmatmul.bf16.gmra.mxu0 %v2012
        %v2034 = vpop.f32.mrf.mxu0
        %v2035 = vadd.f32 0.0, %v2034
        %v2036 = vpop.f32.mrf.mxu0
        %v2037 = vadd.f32 0.0, %v2036
        %2038 = vmatmul.bf16.gmra.mxu0 %v2015
        %v2039 = vpop.f32.mrf.mxu0
        %v2040 = vadd.f32 0.0, %v2039
        %v2041 = vpop.f32.mrf.mxu0
        %v2042 = vadd.f32 0.0, %v2041
        %2043 = vmatmul.bf16.gmra.mxu0 %v2018
        %v2044 = vpop.f32.mrf.mxu0
        %v2045 = vadd.f32 0.0, %v2044
        %v2046 = vpop.f32.mrf.mxu0
        %v2047 = vadd.f32 0.0, %v2046
        %2048 = vdwg.mxu0
        %v2049 = vpack.c.bf16 %v2032, %v2030
        %v2050 = vpack.c.bf16 %v2037, %v2035
        %v2051 = vpack.c.bf16 %v2042, %v2040
        %v2052 = vpack.c.bf16 %v2047, %v2045
        %s2053 = scalar_lea.vmem %s2, 16
        %v2054 = vld [vmem:[%s2053] sm:$0xf]
        %v2055 = vld [vmem:[%s2053 + $0x4] sm:$0xf]
        %v2058 = vunpack.c.l.b16 %v2054
        %v2059 = vunpack.c.l.b16 %v2055
        %v2060 = vpack.c.b16 %v2059, %v2058
        %v2063 = vsel %vm1890, %v2049, 0
        %v2066 = vsel %vm1890, %v2050, 0
        %v2069 = vsel %vm1890, %v2051, 0
        %v2072 = vsel %vm1890, %v2052, 0
        %2074 = vmatpush.bf16.msra.mxu0 0
        %2075 = vmatpush.bf16.msra.mxu0 0
        %2076 = vmatpush.bf16.msra.mxu0 0
        %2077 = vmatpush.bf16.msra.mxu0 0
        %2078 = vmatpush.bf16.msra.mxu0 0
        %2079 = vmatpush.bf16.msra.mxu0 0
        %2080 = vmatpush.bf16.msra.mxu0 0
        %2081 = vmatpush.bf16.msra.mxu0 %v2060
        %2082 = vmatmul.bf16.gmra.mxu0 %v2063
        %v2083 = vpop.f32.mrf.mxu0
        %v2084 = vadd.f32 0.0, %v2083
        %v2085 = vpop.f32.mrf.mxu0
        %v2086 = vadd.f32 0.0, %v2085
        %2087 = vmatmul.bf16.gmra.mxu0 %v2066
        %v2088 = vpop.f32.mrf.mxu0
        %v2089 = vadd.f32 0.0, %v2088
        %v2090 = vpop.f32.mrf.mxu0
        %v2091 = vadd.f32 0.0, %v2090
        %2092 = vmatmul.bf16.gmra.mxu0 %v2069
        %v2093 = vpop.f32.mrf.mxu0
        %v2094 = vadd.f32 0.0, %v2093
        %v2095 = vpop.f32.mrf.mxu0
        %v2096 = vadd.f32 0.0, %v2095
        %2097 = vmatmul.bf16.gmra.mxu0 %v2072
        %v2098 = vpop.f32.mrf.mxu0
        %v2099 = vadd.f32 0.0, %v2098
        %v2100 = vpop.f32.mrf.mxu0
        %v2101 = vadd.f32 0.0, %v2100
        %2102 = vdwg.mxu0
        %v2103 = vadd.f32 %v1960, %v2084
        %v2104 = vadd.f32 %v1962, %v2086
        %v2105 = vadd.f32 %v1965, %v2089
        %v2106 = vadd.f32 %v1967, %v2091
        %v2107 = vadd.f32 %v1970, %v2094
        %v2108 = vadd.f32 %v1972, %v2096
        %v2109 = vadd.f32 %v1975, %v2099
        %v2110 = vadd.f32 %v1977, %v2101
        %s2111 = scalar_lea.vmem %s5, 96
        %v2112 = vld [vmem:[%s2111] sm:$0xf]
        %v2113 = vld [vmem:[%s2111 + $0x4] sm:$0xf]
        %v2114 = vld [vmem:[%s2111 + $0x8] sm:$0xf]
        %v2115 = vld [vmem:[%s2111 + $0xc] sm:$0xf]
        %v2116 = vld [vmem:[%s2111 + $0x10] sm:$0xf]
        %v2117 = vld [vmem:[%s2111 + $0x14] sm:$0xf]
        %v2118 = vld [vmem:[%s2111 + $0x18] sm:$0xf]
        %v2119 = vld [vmem:[%s2111 + $0x1c] sm:$0xf]
        %v2128 = vunpack.c.l.b16 %v2112
        %v2129 = vunpack.c.l.b16 %v2113
        %v2130 = vunpack.c.l.b16 %v2114
        %v2131 = vunpack.c.l.b16 %v2115
        %v2132 = vunpack.c.l.b16 %v2116
        %v2133 = vunpack.c.l.b16 %v2117
        %v2134 = vunpack.c.l.b16 %v2118
        %v2135 = vunpack.c.l.b16 %v2119
        %v2136 = vpack.c.b16 %v2129, %v2128
        %v2137 = vpack.c.b16 %v2131, %v2130
        %v2138 = vpack.c.b16 %v2133, %v2132
        %v2139 = vpack.c.b16 %v2135, %v2134
        %v2141 = vsel %vm1759, %v2136, 0
        %v2144 = vsel %vm1759, %v2137, 0
        %v2147 = vsel %vm1759, %v2138, 0
        %v2150 = vsel %vm1759, %v2139, 0
        %2152 = vmatpush.bf16.msra.mxu0 0
        %2153 = vmatpush.bf16.msra.mxu0 0
        %2154 = vmatpush.bf16.msra.mxu0 0
        %2155 = vmatpush.bf16.msra.mxu0 0
        %2156 = vmatpush.bf16.msra.mxu0 %v1730
        %2157 = vmatpush.bf16.msra.mxu0 %v1729
        %2158 = vmatpush.bf16.msra.mxu0 %v1728
        %2159 = vmatpush.bf16.msra.mxu0 %v1727
        %2160 = vmatmul.bf16.gmra.mxu0 %v2141
        %v2161 = vpop.f32.mrf.mxu0
        %v2162 = vadd.f32 0.0, %v2161
        %v2163 = vpop.f32.mrf.mxu0
        %v2164 = vadd.f32 0.0, %v2163
        %2165 = vmatmul.bf16.gmra.mxu0 %v2144
        %v2166 = vpop.f32.mrf.mxu0
        %v2167 = vadd.f32 0.0, %v2166
        %v2168 = vpop.f32.mrf.mxu0
        %v2169 = vadd.f32 0.0, %v2168
        %2170 = vmatmul.bf16.gmra.mxu0 %v2147
        %v2171 = vpop.f32.mrf.mxu0
        %v2172 = vadd.f32 0.0, %v2171
        %v2173 = vpop.f32.mrf.mxu0
        %v2174 = vadd.f32 0.0, %v2173
        %2175 = vmatmul.bf16.gmra.mxu0 %v2150
        %v2176 = vpop.f32.mrf.mxu0
        %v2177 = vadd.f32 0.0, %v2176
        %v2178 = vpop.f32.mrf.mxu0
        %v2179 = vadd.f32 0.0, %v2178
        %2180 = vdwg.mxu0
        %v2181 = vpack.c.bf16 %v2164, %v2162
        %v2182 = vpack.c.bf16 %v2169, %v2167
        %v2183 = vpack.c.bf16 %v2174, %v2172
        %v2184 = vpack.c.bf16 %v2179, %v2177
        %s2185 = scalar_lea.vmem %s2, 24
        %v2186 = vld [vmem:[%s2185] sm:$0xf]
        %v2187 = vld [vmem:[%s2185 + $0x4] sm:$0xf]
        %v2190 = vunpack.c.l.b16 %v2186
        %v2191 = vunpack.c.l.b16 %v2187
        %v2192 = vpack.c.b16 %v2191, %v2190
        %v2195 = vsel %vm1890, %v2181, 0
        %v2198 = vsel %vm1890, %v2182, 0
        %v2201 = vsel %vm1890, %v2183, 0
        %v2204 = vsel %vm1890, %v2184, 0
        %2206 = vmatpush.bf16.msra.mxu0 0
        %2207 = vmatpush.bf16.msra.mxu0 0
        %2208 = vmatpush.bf16.msra.mxu0 0
        %2209 = vmatpush.bf16.msra.mxu0 0
        %2210 = vmatpush.bf16.msra.mxu0 0
        %2211 = vmatpush.bf16.msra.mxu0 0
        %2212 = vmatpush.bf16.msra.mxu0 0
        %2213 = vmatpush.bf16.msra.mxu0 %v2192
        %2214 = vmatmul.bf16.gmra.mxu0 %v2195
        %v2215 = vpop.f32.mrf.mxu0
        %v2216 = vadd.f32 0.0, %v2215
        %v2217 = vpop.f32.mrf.mxu0
        %v2218 = vadd.f32 0.0, %v2217
        %2219 = vmatmul.bf16.gmra.mxu0 %v2198
        %v2220 = vpop.f32.mrf.mxu0
        %v2221 = vadd.f32 0.0, %v2220
        %v2222 = vpop.f32.mrf.mxu0
        %v2223 = vadd.f32 0.0, %v2222
        %2224 = vmatmul.bf16.gmra.mxu0 %v2201
        %v2225 = vpop.f32.mrf.mxu0
        %v2226 = vadd.f32 0.0, %v2225
        %v2227 = vpop.f32.mrf.mxu0
        %v2228 = vadd.f32 0.0, %v2227
        %2229 = vmatmul.bf16.gmra.mxu0 %v2204
        %v2230 = vpop.f32.mrf.mxu0
        %v2231 = vadd.f32 0.0, %v2230
        %v2232 = vpop.f32.mrf.mxu0
        %v2233 = vadd.f32 0.0, %v2232
        %2234 = vdwg.mxu0
        %v2235 = vadd.f32 %v2103, %v2216
        %v2236 = vadd.f32 %v2104, %v2218
        %v2237 = vadd.f32 %v2105, %v2221
        %v2238 = vadd.f32 %v2106, %v2223
        %v2239 = vadd.f32 %v2107, %v2226
        %v2240 = vadd.f32 %v2108, %v2228
        %v2241 = vadd.f32 %v2109, %v2231
        %v2242 = vadd.f32 %v2110, %v2233
        %s2243 = scalar_lea.vmem %s2, 32
        %v2244 = vld [vmem:[%s2243] sm:$0xf]
        %v2245 = vld [vmem:[%s2243 + $0x4] sm:$0xf]
        %v2248 = vunpack.c.l.b16 %v2244
        %v2249 = vunpack.c.l.b16 %v2245
        %v2250 = vpack.c.b16 %v2249, %v2248
        %v2253 = vsel %vm1890, %v1727, 0
        %v2256 = vsel %vm1890, %v1728, 0
        %v2259 = vsel %vm1890, %v1729, 0
        %v2262 = vsel %vm1890, %v1730, 0
        %2264 = vmatpush.bf16.msra.mxu0 0
        %2265 = vmatpush.bf16.msra.mxu0 0
        %2266 = vmatpush.bf16.msra.mxu0 0
        %2267 = vmatpush.bf16.msra.mxu0 0
        %2268 = vmatpush.bf16.msra.mxu0 0
        %2269 = vmatpush.bf16.msra.mxu0 0
        %2270 = vmatpush.bf16.msra.mxu0 0
        %2271 = vmatpush.bf16.msra.mxu0 %v2250
        %2272 = vmatmul.bf16.gmra.mxu0 %v2253
        %v2273 = vpop.f32.mrf.mxu0
        %v2274 = vadd.f32 0.0, %v2273
        %v2275 = vpop.f32.mrf.mxu0
        %v2276 = vadd.f32 0.0, %v2275
        %2277 = vmatmul.bf16.gmra.mxu0 %v2256
        %v2278 = vpop.f32.mrf.mxu0
        %v2279 = vadd.f32 0.0, %v2278
        %v2280 = vpop.f32.mrf.mxu0
        %v2281 = vadd.f32 0.0, %v2280
        %2282 = vmatmul.bf16.gmra.mxu0 %v2259
        %v2283 = vpop.f32.mrf.mxu0
        %v2284 = vadd.f32 0.0, %v2283
        %v2285 = vpop.f32.mrf.mxu0
        %v2286 = vadd.f32 0.0, %v2285
        %2287 = vmatmul.bf16.gmra.mxu0 %v2262
        %v2288 = vpop.f32.mrf.mxu0
        %v2289 = vadd.f32 0.0, %v2288
        %v2290 = vpop.f32.mrf.mxu0
        %v2291 = vadd.f32 0.0, %v2290
        %2292 = vdwg.mxu0
        %v2293 = vadd.f32 %v2235, %v2274
        %v2294 = vadd.f32 %v2236, %v2276
        %v2295 = vadd.f32 %v2237, %v2279
        %v2296 = vadd.f32 %v2238, %v2281
        %v2297 = vadd.f32 %v2239, %v2284
        %v2298 = vadd.f32 %v2240, %v2286
        %v2299 = vadd.f32 %v2241, %v2289
        %v2300 = vadd.f32 %v2242, %v2291
        %s2301 = scalar_lea.vmem %s5, 160
        %v2302 = vld [vmem:[%s2301] sm:$0xf]
        %v2303 = vld [vmem:[%s2301 + $0x4] sm:$0xf]
        %v2304 = vld [vmem:[%s2301 + $0x8] sm:$0xf]
        %v2305 = vld [vmem:[%s2301 + $0xc] sm:$0xf]
        %v2306 = vld [vmem:[%s2301 + $0x10] sm:$0xf]
        %v2307 = vld [vmem:[%s2301 + $0x14] sm:$0xf]
        %v2308 = vld [vmem:[%s2301 + $0x18] sm:$0xf]
        %v2309 = vld [vmem:[%s2301 + $0x1c] sm:$0xf]
        %v2318 = vunpack.c.l.b16 %v2302
        %v2319 = vunpack.c.l.b16 %v2303
        %v2320 = vunpack.c.l.b16 %v2304
        %v2321 = vunpack.c.l.b16 %v2305
        %v2322 = vunpack.c.l.b16 %v2306
        %v2323 = vunpack.c.l.b16 %v2307
        %v2324 = vunpack.c.l.b16 %v2308
        %v2325 = vunpack.c.l.b16 %v2309
        %v2326 = vpack.c.b16 %v2319, %v2318
        %v2327 = vpack.c.b16 %v2321, %v2320
        %v2328 = vpack.c.b16 %v2323, %v2322
        %v2329 = vpack.c.b16 %v2325, %v2324
        %v2331 = vsel %vm1759, %v2326, 0
        %v2334 = vsel %vm1759, %v2327, 0
        %v2337 = vsel %vm1759, %v2328, 0
        %v2340 = vsel %vm1759, %v2329, 0
        %2342 = vmatpush.bf16.msra.mxu0 0
        %2343 = vmatpush.bf16.msra.mxu0 0
        %2344 = vmatpush.bf16.msra.mxu0 0
        %2345 = vmatpush.bf16.msra.mxu0 0
        %2346 = vmatpush.bf16.msra.mxu0 %v1730
        %2347 = vmatpush.bf16.msra.mxu0 %v1729
        %2348 = vmatpush.bf16.msra.mxu0 %v1728
        %2349 = vmatpush.bf16.msra.mxu0 %v1727
        %2350 = vmatmul.bf16.gmra.mxu0 %v2331
        %v2351 = vpop.f32.mrf.mxu0
        %v2352 = vadd.f32 0.0, %v2351
        %v2353 = vpop.f32.mrf.mxu0
        %v2354 = vadd.f32 0.0, %v2353
        %2355 = vmatmul.bf16.gmra.mxu0 %v2334
        %v2356 = vpop.f32.mrf.mxu0
        %v2357 = vadd.f32 0.0, %v2356
        %v2358 = vpop.f32.mrf.mxu0
        %v2359 = vadd.f32 0.0, %v2358
        %2360 = vmatmul.bf16.gmra.mxu0 %v2337
        %v2361 = vpop.f32.mrf.mxu0
        %v2362 = vadd.f32 0.0, %v2361
        %v2363 = vpop.f32.mrf.mxu0
        %v2364 = vadd.f32 0.0, %v2363
        %2365 = vmatmul.bf16.gmra.mxu0 %v2340
        %v2366 = vpop.f32.mrf.mxu0
        %v2367 = vadd.f32 0.0, %v2366
        %v2368 = vpop.f32.mrf.mxu0
        %v2369 = vadd.f32 0.0, %v2368
        %2370 = vdwg.mxu0
        %v2371 = vpack.c.bf16 %v2354, %v2352
        %v2372 = vpack.c.bf16 %v2359, %v2357
        %v2373 = vpack.c.bf16 %v2364, %v2362
        %v2374 = vpack.c.bf16 %v2369, %v2367
        %s2375 = scalar_lea.vmem %s2, 40
        %v2376 = vld [vmem:[%s2375] sm:$0xf]
        %v2377 = vld [vmem:[%s2375 + $0x4] sm:$0xf]
        %v2380 = vunpack.c.l.b16 %v2376
        %v2381 = vunpack.c.l.b16 %v2377
        %v2382 = vpack.c.b16 %v2381, %v2380
        %v2385 = vsel %vm1890, %v2371, 0
        %v2388 = vsel %vm1890, %v2372, 0
        %v2391 = vsel %vm1890, %v2373, 0
        %v2394 = vsel %vm1890, %v2374, 0
        %2396 = vmatpush.bf16.msra.mxu0 0
        %2397 = vmatpush.bf16.msra.mxu0 0
        %2398 = vmatpush.bf16.msra.mxu0 0
        %2399 = vmatpush.bf16.msra.mxu0 0
        %2400 = vmatpush.bf16.msra.mxu0 0
        %2401 = vmatpush.bf16.msra.mxu0 0
        %2402 = vmatpush.bf16.msra.mxu0 0
        %2403 = vmatpush.bf16.msra.mxu0 %v2382
        %2404 = vmatmul.bf16.gmra.mxu0 %v2385
        %v2405 = vpop.f32.mrf.mxu0
        %v2406 = vadd.f32 0.0, %v2405
        %v2407 = vpop.f32.mrf.mxu0
        %v2408 = vadd.f32 0.0, %v2407
        %2409 = vmatmul.bf16.gmra.mxu0 %v2388
        %v2410 = vpop.f32.mrf.mxu0
        %v2411 = vadd.f32 0.0, %v2410
        %v2412 = vpop.f32.mrf.mxu0
        %v2413 = vadd.f32 0.0, %v2412
        %2414 = vmatmul.bf16.gmra.mxu0 %v2391
        %v2415 = vpop.f32.mrf.mxu0
        %v2416 = vadd.f32 0.0, %v2415
        %v2417 = vpop.f32.mrf.mxu0
        %v2418 = vadd.f32 0.0, %v2417
        %2419 = vmatmul.bf16.gmra.mxu0 %v2394
        %v2420 = vpop.f32.mrf.mxu0
        %v2421 = vadd.f32 0.0, %v2420
        %v2422 = vpop.f32.mrf.mxu0
        %v2423 = vadd.f32 0.0, %v2422
        %2424 = vdwg.mxu0
        %v2425 = vadd.f32 %v2293, %v2406
        %v2426 = vadd.f32 %v2294, %v2408
        %v2427 = vadd.f32 %v2295, %v2411
        %v2428 = vadd.f32 %v2296, %v2413
        %v2429 = vadd.f32 %v2297, %v2416
        %v2430 = vadd.f32 %v2298, %v2418
        %v2431 = vadd.f32 %v2299, %v2421
        %v2432 = vadd.f32 %v2300, %v2423
        %s2433 = scalar_lea.vmem %s5, 192
        %v2434 = vld [vmem:[%s2433] sm:$0xf]
        %v2435 = vld [vmem:[%s2433 + $0x4] sm:$0xf]
        %v2436 = vld [vmem:[%s2433 + $0x8] sm:$0xf]
        %v2437 = vld [vmem:[%s2433 + $0xc] sm:$0xf]
        %v2438 = vld [vmem:[%s2433 + $0x10] sm:$0xf]
        %v2439 = vld [vmem:[%s2433 + $0x14] sm:$0xf]
        %v2440 = vld [vmem:[%s2433 + $0x18] sm:$0xf]
        %v2441 = vld [vmem:[%s2433 + $0x1c] sm:$0xf]
        %v2450 = vunpack.c.l.b16 %v2434
        %v2451 = vunpack.c.l.b16 %v2435
        %v2452 = vunpack.c.l.b16 %v2436
        %v2453 = vunpack.c.l.b16 %v2437
        %v2454 = vunpack.c.l.b16 %v2438
        %v2455 = vunpack.c.l.b16 %v2439
        %v2456 = vunpack.c.l.b16 %v2440
        %v2457 = vunpack.c.l.b16 %v2441
        %v2458 = vpack.c.b16 %v2451, %v2450
        %v2459 = vpack.c.b16 %v2453, %v2452
        %v2460 = vpack.c.b16 %v2455, %v2454
        %v2461 = vpack.c.b16 %v2457, %v2456
        %v2463 = vsel %vm1759, %v2458, 0
        %v2466 = vsel %vm1759, %v2459, 0
        %v2469 = vsel %vm1759, %v2460, 0
        %v2472 = vsel %vm1759, %v2461, 0
        %2474 = vmatpush.bf16.msra.mxu0 0
        %2475 = vmatpush.bf16.msra.mxu0 0
        %2476 = vmatpush.bf16.msra.mxu0 0
        %2477 = vmatpush.bf16.msra.mxu0 0
        %2478 = vmatpush.bf16.msra.mxu0 %v1730
        %2479 = vmatpush.bf16.msra.mxu0 %v1729
        %2480 = vmatpush.bf16.msra.mxu0 %v1728
        %2481 = vmatpush.bf16.msra.mxu0 %v1727
        %2482 = vmatmul.bf16.gmra.mxu0 %v2463
        %v2483 = vpop.f32.mrf.mxu0
        %v2484 = vadd.f32 0.0, %v2483
        %v2485 = vpop.f32.mrf.mxu0
        %v2486 = vadd.f32 0.0, %v2485
        %2487 = vmatmul.bf16.gmra.mxu0 %v2466
        %v2488 = vpop.f32.mrf.mxu0
        %v2489 = vadd.f32 0.0, %v2488
        %v2490 = vpop.f32.mrf.mxu0
        %v2491 = vadd.f32 0.0, %v2490
        %2492 = vmatmul.bf16.gmra.mxu0 %v2469
        %v2493 = vpop.f32.mrf.mxu0
        %v2494 = vadd.f32 0.0, %v2493
        %v2495 = vpop.f32.mrf.mxu0
        %v2496 = vadd.f32 0.0, %v2495
        %2497 = vmatmul.bf16.gmra.mxu0 %v2472
        %v2498 = vpop.f32.mrf.mxu0
        %v2499 = vadd.f32 0.0, %v2498
        %v2500 = vpop.f32.mrf.mxu0
        %v2501 = vadd.f32 0.0, %v2500
        %2502 = vdwg.mxu0
        %v2503 = vpack.c.bf16 %v2486, %v2484
        %v2504 = vpack.c.bf16 %v2491, %v2489
        %v2505 = vpack.c.bf16 %v2496, %v2494
        %v2506 = vpack.c.bf16 %v2501, %v2499
        %s2507 = scalar_lea.vmem %s2, 48
        %v2508 = vld [vmem:[%s2507] sm:$0xf]
        %v2509 = vld [vmem:[%s2507 + $0x4] sm:$0xf]
        %v2512 = vunpack.c.l.b16 %v2508
        %v2513 = vunpack.c.l.b16 %v2509
        %v2514 = vpack.c.b16 %v2513, %v2512
        %v2517 = vsel %vm1890, %v2503, 0
        %v2520 = vsel %vm1890, %v2504, 0
        %v2523 = vsel %vm1890, %v2505, 0
        %v2526 = vsel %vm1890, %v2506, 0
        %2528 = vmatpush.bf16.msra.mxu0 0
        %2529 = vmatpush.bf16.msra.mxu0 0
        %2530 = vmatpush.bf16.msra.mxu0 0
        %2531 = vmatpush.bf16.msra.mxu0 0
        %2532 = vmatpush.bf16.msra.mxu0 0
        %2533 = vmatpush.bf16.msra.mxu0 0
        %2534 = vmatpush.bf16.msra.mxu0 0
        %2535 = vmatpush.bf16.msra.mxu0 %v2514
        %2536 = vmatmul.bf16.gmra.mxu0 %v2517
        %v2537 = vpop.f32.mrf.mxu0
        %v2538 = vadd.f32 0.0, %v2537
        %v2539 = vpop.f32.mrf.mxu0
        %v2540 = vadd.f32 0.0, %v2539
        %2541 = vmatmul.bf16.gmra.mxu0 %v2520
        %v2542 = vpop.f32.mrf.mxu0
        %v2543 = vadd.f32 0.0, %v2542
        %v2544 = vpop.f32.mrf.mxu0
        %v2545 = vadd.f32 0.0, %v2544
        %2546 = vmatmul.bf16.gmra.mxu0 %v2523
        %v2547 = vpop.f32.mrf.mxu0
        %v2548 = vadd.f32 0.0, %v2547
        %v2549 = vpop.f32.mrf.mxu0
        %v2550 = vadd.f32 0.0, %v2549
        %2551 = vmatmul.bf16.gmra.mxu0 %v2526
        %v2552 = vpop.f32.mrf.mxu0
        %v2553 = vadd.f32 0.0, %v2552
        %v2554 = vpop.f32.mrf.mxu0
        %v2555 = vadd.f32 0.0, %v2554
        %2556 = vdwg.mxu0
        %v2557 = vadd.f32 %v2425, %v2538
        %v2558 = vadd.f32 %v2426, %v2540
        %v2559 = vadd.f32 %v2427, %v2543
        %v2560 = vadd.f32 %v2428, %v2545
        %v2561 = vadd.f32 %v2429, %v2548
        %v2562 = vadd.f32 %v2430, %v2550
        %v2563 = vadd.f32 %v2431, %v2553
        %v2564 = vadd.f32 %v2432, %v2555
        %s2565 = scalar_lea.vmem %s5, 224
        %v2566 = vld [vmem:[%s2565] sm:$0xf]
        %v2567 = vld [vmem:[%s2565 + $0x4] sm:$0xf]
        %v2568 = vld [vmem:[%s2565 + $0x8] sm:$0xf]
        %v2569 = vld [vmem:[%s2565 + $0xc] sm:$0xf]
        %v2570 = vld [vmem:[%s2565 + $0x10] sm:$0xf]
        %v2571 = vld [vmem:[%s2565 + $0x14] sm:$0xf]
        %v2572 = vld [vmem:[%s2565 + $0x18] sm:$0xf]
        %v2573 = vld [vmem:[%s2565 + $0x1c] sm:$0xf]
        %v2582 = vunpack.c.l.b16 %v2566
        %v2583 = vunpack.c.l.b16 %v2567
        %v2584 = vunpack.c.l.b16 %v2568
        %v2585 = vunpack.c.l.b16 %v2569
        %v2586 = vunpack.c.l.b16 %v2570
        %v2587 = vunpack.c.l.b16 %v2571
        %v2588 = vunpack.c.l.b16 %v2572
        %v2589 = vunpack.c.l.b16 %v2573
        %v2590 = vpack.c.b16 %v2583, %v2582
        %v2591 = vpack.c.b16 %v2585, %v2584
        %v2592 = vpack.c.b16 %v2587, %v2586
        %v2593 = vpack.c.b16 %v2589, %v2588
        %v2595 = vsel %vm1759, %v2590, 0
        %v2598 = vsel %vm1759, %v2591, 0
        %v2601 = vsel %vm1759, %v2592, 0
        %v2604 = vsel %vm1759, %v2593, 0
        %2606 = vmatpush.bf16.msra.mxu0 0
        %2607 = vmatpush.bf16.msra.mxu0 0
        %2608 = vmatpush.bf16.msra.mxu0 0
        %2609 = vmatpush.bf16.msra.mxu0 0
        %2610 = vmatpush.bf16.msra.mxu0 %v1730
        %2611 = vmatpush.bf16.msra.mxu0 %v1729
        %2612 = vmatpush.bf16.msra.mxu0 %v1728
        %2613 = vmatpush.bf16.msra.mxu0 %v1727
        %2614 = vmatmul.bf16.gmra.mxu0 %v2595
        %v2615 = vpop.f32.mrf.mxu0
        %v2616 = vadd.f32 0.0, %v2615
        %v2617 = vpop.f32.mrf.mxu0
        %v2618 = vadd.f32 0.0, %v2617
        %2619 = vmatmul.bf16.gmra.mxu0 %v2598
        %v2620 = vpop.f32.mrf.mxu0
        %v2621 = vadd.f32 0.0, %v2620
        %v2622 = vpop.f32.mrf.mxu0
        %v2623 = vadd.f32 0.0, %v2622
        %2624 = vmatmul.bf16.gmra.mxu0 %v2601
        %v2625 = vpop.f32.mrf.mxu0
        %v2626 = vadd.f32 0.0, %v2625
        %v2627 = vpop.f32.mrf.mxu0
        %v2628 = vadd.f32 0.0, %v2627
        %2629 = vmatmul.bf16.gmra.mxu0 %v2604
        %v2630 = vpop.f32.mrf.mxu0
        %v2631 = vadd.f32 0.0, %v2630
        %v2632 = vpop.f32.mrf.mxu0
        %v2633 = vadd.f32 0.0, %v2632
        %2634 = vdwg.mxu0
        %v2635 = vpack.c.bf16 %v2618, %v2616
        %v2636 = vpack.c.bf16 %v2623, %v2621
        %v2637 = vpack.c.bf16 %v2628, %v2626
        %v2638 = vpack.c.bf16 %v2633, %v2631
        %s2639 = scalar_lea.vmem %s2, 56
        %v2640 = vld [vmem:[%s2639] sm:$0xf]
        %v2641 = vld [vmem:[%s2639 + $0x4] sm:$0xf]
        %v2644 = vunpack.c.l.b16 %v2640
        %v2645 = vunpack.c.l.b16 %v2641
        %v2646 = vpack.c.b16 %v2645, %v2644
        %v2649 = vsel %vm1890, %v2635, 0
        %v2652 = vsel %vm1890, %v2636, 0
        %v2655 = vsel %vm1890, %v2637, 0
        %v2658 = vsel %vm1890, %v2638, 0
        %2660 = vmatpush.bf16.msra.mxu0 0
        %2661 = vmatpush.bf16.msra.mxu0 0
        %2662 = vmatpush.bf16.msra.mxu0 0
        %2663 = vmatpush.bf16.msra.mxu0 0
        %2664 = vmatpush.bf16.msra.mxu0 0
        %2665 = vmatpush.bf16.msra.mxu0 0
        %2666 = vmatpush.bf16.msra.mxu0 0
        %2667 = vmatpush.bf16.msra.mxu0 %v2646
        %2668 = vmatmul.bf16.gmra.mxu0 %v2649
        %v2669 = vpop.f32.mrf.mxu0
        %v2670 = vadd.f32 0.0, %v2669
        %v2671 = vpop.f32.mrf.mxu0
        %v2672 = vadd.f32 0.0, %v2671
        %2673 = vmatmul.bf16.gmra.mxu0 %v2652
        %v2674 = vpop.f32.mrf.mxu0
        %v2675 = vadd.f32 0.0, %v2674
        %v2676 = vpop.f32.mrf.mxu0
        %v2677 = vadd.f32 0.0, %v2676
        %2678 = vmatmul.bf16.gmra.mxu0 %v2655
        %v2679 = vpop.f32.mrf.mxu0
        %v2680 = vadd.f32 0.0, %v2679
        %v2681 = vpop.f32.mrf.mxu0
        %v2682 = vadd.f32 0.0, %v2681
        %2683 = vmatmul.bf16.gmra.mxu0 %v2658
        %v2684 = vpop.f32.mrf.mxu0
        %v2685 = vadd.f32 0.0, %v2684
        %v2686 = vpop.f32.mrf.mxu0
        %v2687 = vadd.f32 0.0, %v2686
        %2688 = vdwg.mxu0
        %v2689 = vadd.f32 %v2557, %v2670
        %v2690 = vadd.f32 %v2558, %v2672
        %v2691 = vadd.f32 %v2559, %v2675
        %v2692 = vadd.f32 %v2560, %v2677
        %v2693 = vadd.f32 %v2561, %v2680
        %v2694 = vadd.f32 %v2562, %v2682
        %v2695 = vadd.f32 %v2563, %v2685
        %v2696 = vadd.f32 %v2564, %v2687
        %s2697 = scalar_lea.vmem %s5, 256
        %v2698 = vld [vmem:[%s2697] sm:$0xf]
        %v2699 = vld [vmem:[%s2697 + $0x4] sm:$0xf]
        %v2700 = vld [vmem:[%s2697 + $0x8] sm:$0xf]
        %v2701 = vld [vmem:[%s2697 + $0xc] sm:$0xf]
        %v2702 = vld [vmem:[%s2697 + $0x10] sm:$0xf]
        %v2703 = vld [vmem:[%s2697 + $0x14] sm:$0xf]
        %v2704 = vld [vmem:[%s2697 + $0x18] sm:$0xf]
        %v2705 = vld [vmem:[%s2697 + $0x1c] sm:$0xf]
        %v2714 = vunpack.c.l.b16 %v2698
        %v2715 = vunpack.c.l.b16 %v2699
        %v2716 = vunpack.c.l.b16 %v2700
        %v2717 = vunpack.c.l.b16 %v2701
        %v2718 = vunpack.c.l.b16 %v2702
        %v2719 = vunpack.c.l.b16 %v2703
        %v2720 = vunpack.c.l.b16 %v2704
        %v2721 = vunpack.c.l.b16 %v2705
        %v2722 = vpack.c.b16 %v2715, %v2714
        %v2723 = vpack.c.b16 %v2717, %v2716
        %v2724 = vpack.c.b16 %v2719, %v2718
        %v2725 = vpack.c.b16 %v2721, %v2720
        %v2727 = vsel %vm1759, %v2722, 0
        %v2730 = vsel %vm1759, %v2723, 0
        %v2733 = vsel %vm1759, %v2724, 0
        %v2736 = vsel %vm1759, %v2725, 0
        %2738 = vmatpush.bf16.msra.mxu0 0
        %2739 = vmatpush.bf16.msra.mxu0 0
        %2740 = vmatpush.bf16.msra.mxu0 0
        %2741 = vmatpush.bf16.msra.mxu0 0
        %2742 = vmatpush.bf16.msra.mxu0 %v1730
        %2743 = vmatpush.bf16.msra.mxu0 %v1729
        %2744 = vmatpush.bf16.msra.mxu0 %v1728
        %2745 = vmatpush.bf16.msra.mxu0 %v1727
        %2746 = vmatmul.bf16.gmra.mxu0 %v2727
        %v2747 = vpop.f32.mrf.mxu0
        %v2748 = vadd.f32 0.0, %v2747
        %v2749 = vpop.f32.mrf.mxu0
        %v2750 = vadd.f32 0.0, %v2749
        %2751 = vmatmul.bf16.gmra.mxu0 %v2730
        %v2752 = vpop.f32.mrf.mxu0
        %v2753 = vadd.f32 0.0, %v2752
        %v2754 = vpop.f32.mrf.mxu0
        %v2755 = vadd.f32 0.0, %v2754
        %2756 = vmatmul.bf16.gmra.mxu0 %v2733
        %v2757 = vpop.f32.mrf.mxu0
        %v2758 = vadd.f32 0.0, %v2757
        %v2759 = vpop.f32.mrf.mxu0
        %v2760 = vadd.f32 0.0, %v2759
        %2761 = vmatmul.bf16.gmra.mxu0 %v2736
        %v2762 = vpop.f32.mrf.mxu0
        %v2763 = vadd.f32 0.0, %v2762
        %v2764 = vpop.f32.mrf.mxu0
        %v2765 = vadd.f32 0.0, %v2764
        %2766 = vdwg.mxu0
        %v2767 = vpack.c.bf16 %v2750, %v2748
        %v2768 = vpack.c.bf16 %v2755, %v2753
        %v2769 = vpack.c.bf16 %v2760, %v2758
        %v2770 = vpack.c.bf16 %v2765, %v2763
        %s2771 = scalar_lea.vmem %s2, 64
        %v2772 = vld [vmem:[%s2771] sm:$0xf]
        %v2773 = vld [vmem:[%s2771 + $0x4] sm:$0xf]
        %v2776 = vunpack.c.l.b16 %v2772
        %v2777 = vunpack.c.l.b16 %v2773
        %v2778 = vpack.c.b16 %v2777, %v2776
        %v2781 = vsel %vm1890, %v2767, 0
        %v2784 = vsel %vm1890, %v2768, 0
        %v2787 = vsel %vm1890, %v2769, 0
        %v2790 = vsel %vm1890, %v2770, 0
        %2792 = vmatpush.bf16.msra.mxu0 0
        %2793 = vmatpush.bf16.msra.mxu0 0
        %2794 = vmatpush.bf16.msra.mxu0 0
        %2795 = vmatpush.bf16.msra.mxu0 0
        %2796 = vmatpush.bf16.msra.mxu0 0
        %2797 = vmatpush.bf16.msra.mxu0 0
        %2798 = vmatpush.bf16.msra.mxu0 0
        %2799 = vmatpush.bf16.msra.mxu0 %v2778
        %2800 = vmatmul.bf16.gmra.mxu0 %v2781
        %v2801 = vpop.f32.mrf.mxu0
        %v2802 = vadd.f32 0.0, %v2801
        %v2803 = vpop.f32.mrf.mxu0
        %v2804 = vadd.f32 0.0, %v2803
        %2805 = vmatmul.bf16.gmra.mxu0 %v2784
        %v2806 = vpop.f32.mrf.mxu0
        %v2807 = vadd.f32 0.0, %v2806
        %v2808 = vpop.f32.mrf.mxu0
        %v2809 = vadd.f32 0.0, %v2808
        %2810 = vmatmul.bf16.gmra.mxu0 %v2787
        %v2811 = vpop.f32.mrf.mxu0
        %v2812 = vadd.f32 0.0, %v2811
        %v2813 = vpop.f32.mrf.mxu0
        %v2814 = vadd.f32 0.0, %v2813
        %2815 = vmatmul.bf16.gmra.mxu0 %v2790
        %v2816 = vpop.f32.mrf.mxu0
        %v2817 = vadd.f32 0.0, %v2816
        %v2818 = vpop.f32.mrf.mxu0
        %v2819 = vadd.f32 0.0, %v2818
        %2820 = vdwg.mxu0
        %v2821 = vadd.f32 %v2689, %v2802
        %v2822 = vadd.f32 %v2690, %v2804
        %v2823 = vadd.f32 %v2691, %v2807
        %v2824 = vadd.f32 %v2692, %v2809
        %v2825 = vadd.f32 %v2693, %v2812
        %v2826 = vadd.f32 %v2694, %v2814
        %v2827 = vadd.f32 %v2695, %v2817
        %v2828 = vadd.f32 %v2696, %v2819
        %s2829 = scalar_lea.vmem %s3, 1
        %v2830 = vld [vmem:[%s2829] sm:$0x1]
        %v2832 = vperm.slane %v2830, 0
        %v2834 = vadd.f32 %v2821, %v2832
        %v2835 = vadd.f32 %v2822, %v2832
        %v2836 = vadd.f32 %v2823, %v2832
        %v2837 = vadd.f32 %v2824, %v2832
        %v2838 = vadd.f32 %v2825, %v2832
        %v2839 = vadd.f32 %v2826, %v2832
        %v2840 = vadd.f32 %v2827, %v2832
        %v2841 = vadd.f32 %v2828, %v2832
        %v2842 = vmax.f32 %v2834, 0.0
        %v2843 = vmax.f32 %v2835, 0.0
        %v2844 = vmax.f32 %v2836, 0.0
        %v2845 = vmax.f32 %v2837, 0.0
        %v2846 = vmax.f32 %v2838, 0.0
        %v2847 = vmax.f32 %v2839, 0.0
        %v2848 = vmax.f32 %v2840, 0.0
        %v2849 = vmax.f32 %v2841, 0.0
        %v2850 = vpack.c.bf16 %v2843, %v2842
        %v2851 = vpack.c.bf16 %v2845, %v2844
        %v2852 = vpack.c.bf16 %v2847, %v2846
        %v2853 = vpack.c.bf16 %v2849, %v2848
        %2854 = vmatpush.bf16.msra.mxu0 0
        %2855 = vmatpush.bf16.msra.mxu0 0
        %2856 = vmatpush.bf16.msra.mxu0 0
        %2857 = vmatpush.bf16.msra.mxu0 0
        %2858 = vmatpush.bf16.msra.mxu0 %v2853
        %2859 = vmatpush.bf16.msra.mxu0 %v2852
        %2860 = vmatpush.bf16.msra.mxu0 %v2851
        %2861 = vmatpush.bf16.msra.mxu0 %v2850
        %2862 = vmatmul.bf16.gmra.mxu0 %v1761
        %v2863 = vpop.f32.mrf.mxu0
        %v2864 = vadd.f32 0.0, %v2863
        %v2865 = vpop.f32.mrf.mxu0
        %v2866 = vadd.f32 0.0, %v2865
        %2867 = vmatmul.bf16.gmra.mxu0 %v1764
        %v2868 = vpop.f32.mrf.mxu0
        %v2869 = vadd.f32 0.0, %v2868
        %v2870 = vpop.f32.mrf.mxu0
        %v2871 = vadd.f32 0.0, %v2870
        %2872 = vmatmul.bf16.gmra.mxu0 %v1767
        %v2873 = vpop.f32.mrf.mxu0
        %v2874 = vadd.f32 0.0, %v2873
        %v2875 = vpop.f32.mrf.mxu0
        %v2876 = vadd.f32 0.0, %v2875
        %2877 = vmatmul.bf16.gmra.mxu0 %v1770
        %v2878 = vpop.f32.mrf.mxu0
        %v2879 = vadd.f32 0.0, %v2878
        %v2880 = vpop.f32.mrf.mxu0
        %v2881 = vadd.f32 0.0, %v2880
        %2882 = vdwg.mxu0
        %v2883 = vpack.c.bf16 %v2866, %v2864
        %v2884 = vpack.c.bf16 %v2871, %v2869
        %v2885 = vpack.c.bf16 %v2876, %v2874
        %v2886 = vpack.c.bf16 %v2881, %v2879
        %s2887 = scalar_lea.vmem %s2, 72
        %v2888 = vld [vmem:[%s2887] sm:$0xf]
        %v2889 = vld [vmem:[%s2887 + $0x4] sm:$0xf]
        %2890 = vmatpush.bf16.msra.mxu0 0
        %2891 = vmatpush.bf16.msra.mxu0 0
        %2892 = vmatpush.bf16.msra.mxu0 0
        %2893 = vmatpush.bf16.msra.mxu0 0
        %2894 = vmatpush.bf16.msra.mxu0 %v2853
        %2895 = vmatpush.bf16.msra.mxu0 %v2852
        %2896 = vmatpush.bf16.msra.mxu0 %v2851
        %2897 = vmatpush.bf16.msra.mxu0 %v2850
        %2898 = vmatmul.bf16.gmra.mxu0 %v1837
        %v2899 = vpop.f32.mrf.mxu0
        %v2900 = vadd.f32 0.0, %v2899
        %v2901 = vpop.f32.mrf.mxu0
        %v2902 = vadd.f32 0.0, %v2901
        %2903 = vmatmul.bf16.gmra.mxu0 %v1840
        %v2904 = vpop.f32.mrf.mxu0
        %v2905 = vadd.f32 0.0, %v2904
        %v2906 = vpop.f32.mrf.mxu0
        %v2907 = vadd.f32 0.0, %v2906
        %2908 = vmatmul.bf16.gmra.mxu0 %v1843
        %v2909 = vpop.f32.mrf.mxu0
        %v2910 = vadd.f32 0.0, %v2909
        %v2911 = vpop.f32.mrf.mxu0
        %v2912 = vadd.f32 0.0, %v2911
        %2913 = vmatmul.bf16.gmra.mxu0 %v1846
        %v2914 = vpop.f32.mrf.mxu0
        %v2915 = vadd.f32 0.0, %v2914
        %v2916 = vpop.f32.mrf.mxu0
        %v2917 = vadd.f32 0.0, %v2916
        %2918 = vdwg.mxu0
        %v2919 = vpack.c.bf16 %v2902, %v2900
        %v2920 = vpack.c.bf16 %v2907, %v2905
        %v2921 = vpack.c.bf16 %v2912, %v2910
        %v2922 = vpack.c.bf16 %v2917, %v2915
        %s2923 = scalar_lea.vmem %s2, 80
        %v2924 = vld [vmem:[%s2923] sm:$0xf]
        %v2925 = vld [vmem:[%s2923 + $0x4] sm:$0xf]
        %v2928 = vunpack.c.l.b16 %v2924
        %v2929 = vunpack.c.l.b16 %v2925
        %v2930 = vpack.c.b16 %v2929, %v2928
        %v2933 = vsel %vm1890, %v2919, 0
        %v2936 = vsel %vm1890, %v2920, 0
        %v2939 = vsel %vm1890, %v2921, 0
        %v2942 = vsel %vm1890, %v2922, 0
        %2944 = vmatpush.bf16.msra.mxu0 0
        %2945 = vmatpush.bf16.msra.mxu0 0
        %2946 = vmatpush.bf16.msra.mxu0 0
        %2947 = vmatpush.bf16.msra.mxu0 0
        %2948 = vmatpush.bf16.msra.mxu0 0
        %2949 = vmatpush.bf16.msra.mxu0 0
        %2950 = vmatpush.bf16.msra.mxu0 0
        %2951 = vmatpush.bf16.msra.mxu0 %v2930
        %2952 = vmatmul.bf16.gmra.mxu0 %v2933
        %v2953 = vpop.f32.mrf.mxu0
        %v2954 = vadd.f32 0.0, %v2953
        %v2955 = vpop.f32.mrf.mxu0
        %v2956 = vadd.f32 0.0, %v2955
        %2957 = vmatmul.bf16.gmra.mxu0 %v2936
        %v2958 = vpop.f32.mrf.mxu0
        %v2959 = vadd.f32 0.0, %v2958
        %v2960 = vpop.f32.mrf.mxu0
        %v2961 = vadd.f32 0.0, %v2960
        %2962 = vmatmul.bf16.gmra.mxu0 %v2939
        %v2963 = vpop.f32.mrf.mxu0
        %v2964 = vadd.f32 0.0, %v2963
        %v2965 = vpop.f32.mrf.mxu0
        %v2966 = vadd.f32 0.0, %v2965
        %2967 = vmatmul.bf16.gmra.mxu0 %v2942
        %v2968 = vpop.f32.mrf.mxu0
        %v2969 = vadd.f32 0.0, %v2968
        %v2970 = vpop.f32.mrf.mxu0
        %v2971 = vadd.f32 0.0, %v2970
        %2972 = vdwg.mxu0
        %v2975 = vunpack.c.l.b16 %v2888
        %v2976 = vunpack.c.l.b16 %v2889
        %v2977 = vpack.c.b16 %v2976, %v2975
        %v2980 = vsel %vm1890, %v2883, 0
        %v2983 = vsel %vm1890, %v2884, 0
        %v2986 = vsel %vm1890, %v2885, 0
        %v2989 = vsel %vm1890, %v2886, 0
        %2991 = vmatpush.bf16.msra.mxu0 0
        %2992 = vmatpush.bf16.msra.mxu0 0
        %2993 = vmatpush.bf16.msra.mxu0 0
        %2994 = vmatpush.bf16.msra.mxu0 0
        %2995 = vmatpush.bf16.msra.mxu0 0
        %2996 = vmatpush.bf16.msra.mxu0 0
        %2997 = vmatpush.bf16.msra.mxu0 0
        %2998 = vmatpush.bf16.msra.mxu0 %v2977
        %2999 = vmatmul.bf16.gmra.mxu0 %v2980
        %v3000 = vpop.f32.mrf.mxu0
        %v3001 = vadd.f32 %v2954, %v3000
        %v3002 = vpop.f32.mrf.mxu0
        %v3003 = vadd.f32 %v2956, %v3002
        %3004 = vmatmul.bf16.gmra.mxu0 %v2983
        %v3005 = vpop.f32.mrf.mxu0
        %v3006 = vadd.f32 %v2959, %v3005
        %v3007 = vpop.f32.mrf.mxu0
        %v3008 = vadd.f32 %v2961, %v3007
        %3009 = vmatmul.bf16.gmra.mxu0 %v2986
        %v3010 = vpop.f32.mrf.mxu0
        %v3011 = vadd.f32 %v2964, %v3010
        %v3012 = vpop.f32.mrf.mxu0
        %v3013 = vadd.f32 %v2966, %v3012
        %3014 = vmatmul.bf16.gmra.mxu0 %v2989
        %v3015 = vpop.f32.mrf.mxu0
        %v3016 = vadd.f32 %v2969, %v3015
        %v3017 = vpop.f32.mrf.mxu0
        %v3018 = vadd.f32 %v2971, %v3017
        %3019 = vdwg.mxu0
        %3020 = vmatpush.bf16.msra.mxu0 0
        %3021 = vmatpush.bf16.msra.mxu0 0
        %3022 = vmatpush.bf16.msra.mxu0 0
        %3023 = vmatpush.bf16.msra.mxu0 0
        %3024 = vmatpush.bf16.msra.mxu0 %v2853
        %3025 = vmatpush.bf16.msra.mxu0 %v2852
        %3026 = vmatpush.bf16.msra.mxu0 %v2851
        %3027 = vmatpush.bf16.msra.mxu0 %v2850
        %3028 = vmatmul.bf16.gmra.mxu0 %v2009
        %v3029 = vpop.f32.mrf.mxu0
        %v3030 = vadd.f32 0.0, %v3029
        %v3031 = vpop.f32.mrf.mxu0
        %v3032 = vadd.f32 0.0, %v3031
        %3033 = vmatmul.bf16.gmra.mxu0 %v2012
        %v3034 = vpop.f32.mrf.mxu0
        %v3035 = vadd.f32 0.0, %v3034
        %v3036 = vpop.f32.mrf.mxu0
        %v3037 = vadd.f32 0.0, %v3036
        %3038 = vmatmul.bf16.gmra.mxu0 %v2015
        %v3039 = vpop.f32.mrf.mxu0
        %v3040 = vadd.f32 0.0, %v3039
        %v3041 = vpop.f32.mrf.mxu0
        %v3042 = vadd.f32 0.0, %v3041
        %3043 = vmatmul.bf16.gmra.mxu0 %v2018
        %v3044 = vpop.f32.mrf.mxu0
        %v3045 = vadd.f32 0.0, %v3044
        %v3046 = vpop.f32.mrf.mxu0
        %v3047 = vadd.f32 0.0, %v3046
        %3048 = vdwg.mxu0
        %v3049 = vpack.c.bf16 %v3032, %v3030
        %v3050 = vpack.c.bf16 %v3037, %v3035
        %v3051 = vpack.c.bf16 %v3042, %v3040
        %v3052 = vpack.c.bf16 %v3047, %v3045
        %s3053 = scalar_lea.vmem %s2, 88
        %v3054 = vld [vmem:[%s3053] sm:$0xf]
        %v3055 = vld [vmem:[%s3053 + $0x4] sm:$0xf]
        %v3058 = vunpack.c.l.b16 %v3054
        %v3059 = vunpack.c.l.b16 %v3055
        %v3060 = vpack.c.b16 %v3059, %v3058
        %v3063 = vsel %vm1890, %v3049, 0
        %v3066 = vsel %vm1890, %v3050, 0
        %v3069 = vsel %vm1890, %v3051, 0
        %v3072 = vsel %vm1890, %v3052, 0
        %3074 = vmatpush.bf16.msra.mxu0 0
        %3075 = vmatpush.bf16.msra.mxu0 0
        %3076 = vmatpush.bf16.msra.mxu0 0
        %3077 = vmatpush.bf16.msra.mxu0 0
        %3078 = vmatpush.bf16.msra.mxu0 0
        %3079 = vmatpush.bf16.msra.mxu0 0
        %3080 = vmatpush.bf16.msra.mxu0 0
        %3081 = vmatpush.bf16.msra.mxu0 %v3060
        %3082 = vmatmul.bf16.gmra.mxu0 %v3063
        %v3083 = vpop.f32.mrf.mxu0
        %v3084 = vadd.f32 0.0, %v3083
        %v3085 = vpop.f32.mrf.mxu0
        %v3086 = vadd.f32 0.0, %v3085
        %3087 = vmatmul.bf16.gmra.mxu0 %v3066
        %v3088 = vpop.f32.mrf.mxu0
        %v3089 = vadd.f32 0.0, %v3088
        %v3090 = vpop.f32.mrf.mxu0
        %v3091 = vadd.f32 0.0, %v3090
        %3092 = vmatmul.bf16.gmra.mxu0 %v3069
        %v3093 = vpop.f32.mrf.mxu0
        %v3094 = vadd.f32 0.0, %v3093
        %v3095 = vpop.f32.mrf.mxu0
        %v3096 = vadd.f32 0.0, %v3095
        %3097 = vmatmul.bf16.gmra.mxu0 %v3072
        %v3098 = vpop.f32.mrf.mxu0
        %v3099 = vadd.f32 0.0, %v3098
        %v3100 = vpop.f32.mrf.mxu0
        %v3101 = vadd.f32 0.0, %v3100
        %3102 = vdwg.mxu0
        %v3103 = vadd.f32 %v3001, %v3084
        %v3104 = vadd.f32 %v3003, %v3086
        %v3105 = vadd.f32 %v3006, %v3089
        %v3106 = vadd.f32 %v3008, %v3091
        %v3107 = vadd.f32 %v3011, %v3094
        %v3108 = vadd.f32 %v3013, %v3096
        %v3109 = vadd.f32 %v3016, %v3099
        %v3110 = vadd.f32 %v3018, %v3101
        %3111 = vmatpush.bf16.msra.mxu0 0
        %3112 = vmatpush.bf16.msra.mxu0 0
        %3113 = vmatpush.bf16.msra.mxu0 0
        %3114 = vmatpush.bf16.msra.mxu0 0
        %3115 = vmatpush.bf16.msra.mxu0 %v2853
        %3116 = vmatpush.bf16.msra.mxu0 %v2852
        %3117 = vmatpush.bf16.msra.mxu0 %v2851
        %3118 = vmatpush.bf16.msra.mxu0 %v2850
        %3119 = vmatmul.bf16.gmra.mxu0 %v2141
        %v3120 = vpop.f32.mrf.mxu0
        %v3121 = vadd.f32 0.0, %v3120
        %v3122 = vpop.f32.mrf.mxu0
        %v3123 = vadd.f32 0.0, %v3122
        %3124 = vmatmul.bf16.gmra.mxu0 %v2144
        %v3125 = vpop.f32.mrf.mxu0
        %v3126 = vadd.f32 0.0, %v3125
        %v3127 = vpop.f32.mrf.mxu0
        %v3128 = vadd.f32 0.0, %v3127
        %3129 = vmatmul.bf16.gmra.mxu0 %v2147
        %v3130 = vpop.f32.mrf.mxu0
        %v3131 = vadd.f32 0.0, %v3130
        %v3132 = vpop.f32.mrf.mxu0
        %v3133 = vadd.f32 0.0, %v3132
        %3134 = vmatmul.bf16.gmra.mxu0 %v2150
        %v3135 = vpop.f32.mrf.mxu0
        %v3136 = vadd.f32 0.0, %v3135
        %v3137 = vpop.f32.mrf.mxu0
        %v3138 = vadd.f32 0.0, %v3137
        %3139 = vdwg.mxu0
        %v3140 = vpack.c.bf16 %v3123, %v3121
        %v3141 = vpack.c.bf16 %v3128, %v3126
        %v3142 = vpack.c.bf16 %v3133, %v3131
        %v3143 = vpack.c.bf16 %v3138, %v3136
        %s3144 = scalar_lea.vmem %s2, 96
        %v3145 = vld [vmem:[%s3144] sm:$0xf]
        %v3146 = vld [vmem:[%s3144 + $0x4] sm:$0xf]
        %v3149 = vunpack.c.l.b16 %v3145
        %v3150 = vunpack.c.l.b16 %v3146
        %v3151 = vpack.c.b16 %v3150, %v3149
        %v3154 = vsel %vm1890, %v3140, 0
        %v3157 = vsel %vm1890, %v3141, 0
        %v3160 = vsel %vm1890, %v3142, 0
        %v3163 = vsel %vm1890, %v3143, 0
        %3165 = vmatpush.bf16.msra.mxu0 0
        %3166 = vmatpush.bf16.msra.mxu0 0
        %3167 = vmatpush.bf16.msra.mxu0 0
        %3168 = vmatpush.bf16.msra.mxu0 0
        %3169 = vmatpush.bf16.msra.mxu0 0
        %3170 = vmatpush.bf16.msra.mxu0 0
        %3171 = vmatpush.bf16.msra.mxu0 0
        %3172 = vmatpush.bf16.msra.mxu0 %v3151
        %3173 = vmatmul.bf16.gmra.mxu0 %v3154
        %v3174 = vpop.f32.mrf.mxu0
        %v3175 = vadd.f32 0.0, %v3174
        %v3176 = vpop.f32.mrf.mxu0
        %v3177 = vadd.f32 0.0, %v3176
        %3178 = vmatmul.bf16.gmra.mxu0 %v3157
        %v3179 = vpop.f32.mrf.mxu0
        %v3180 = vadd.f32 0.0, %v3179
        %v3181 = vpop.f32.mrf.mxu0
        %v3182 = vadd.f32 0.0, %v3181
        %3183 = vmatmul.bf16.gmra.mxu0 %v3160
        %v3184 = vpop.f32.mrf.mxu0
        %v3185 = vadd.f32 0.0, %v3184
        %v3186 = vpop.f32.mrf.mxu0
        %v3187 = vadd.f32 0.0, %v3186
        %3188 = vmatmul.bf16.gmra.mxu0 %v3163
        %v3189 = vpop.f32.mrf.mxu0
        %v3190 = vadd.f32 0.0, %v3189
        %v3191 = vpop.f32.mrf.mxu0
        %v3192 = vadd.f32 0.0, %v3191
        %3193 = vdwg.mxu0
        %v3194 = vadd.f32 %v3103, %v3175
        %v3195 = vadd.f32 %v3104, %v3177
        %v3196 = vadd.f32 %v3105, %v3180
        %v3197 = vadd.f32 %v3106, %v3182
        %v3198 = vadd.f32 %v3107, %v3185
        %v3199 = vadd.f32 %v3108, %v3187
        %v3200 = vadd.f32 %v3109, %v3190
        %v3201 = vadd.f32 %v3110, %v3192
        %s3202 = scalar_lea.vmem %s2, 104
        %v3203 = vld [vmem:[%s3202] sm:$0xf]
        %v3204 = vld [vmem:[%s3202 + $0x4] sm:$0xf]
        %v3207 = vunpack.c.l.b16 %v3203
        %v3208 = vunpack.c.l.b16 %v3204
        %v3209 = vpack.c.b16 %v3208, %v3207
        %v3212 = vsel %vm1890, %v2850, 0
        %v3215 = vsel %vm1890, %v2851, 0
        %v3218 = vsel %vm1890, %v2852, 0
        %v3221 = vsel %vm1890, %v2853, 0
        %3223 = vmatpush.bf16.msra.mxu0 0
        %3224 = vmatpush.bf16.msra.mxu0 0
        %3225 = vmatpush.bf16.msra.mxu0 0
        %3226 = vmatpush.bf16.msra.mxu0 0
        %3227 = vmatpush.bf16.msra.mxu0 0
        %3228 = vmatpush.bf16.msra.mxu0 0
        %3229 = vmatpush.bf16.msra.mxu0 0
        %3230 = vmatpush.bf16.msra.mxu0 %v3209
        %3231 = vmatmul.bf16.gmra.mxu0 %v3212
        %v3232 = vpop.f32.mrf.mxu0
        %v3233 = vadd.f32 0.0, %v3232
        %v3234 = vpop.f32.mrf.mxu0
        %v3235 = vadd.f32 0.0, %v3234
        %3236 = vmatmul.bf16.gmra.mxu0 %v3215
        %v3237 = vpop.f32.mrf.mxu0
        %v3238 = vadd.f32 0.0, %v3237
        %v3239 = vpop.f32.mrf.mxu0
        %v3240 = vadd.f32 0.0, %v3239
        %3241 = vmatmul.bf16.gmra.mxu0 %v3218
        %v3242 = vpop.f32.mrf.mxu0
        %v3243 = vadd.f32 0.0, %v3242
        %v3244 = vpop.f32.mrf.mxu0
        %v3245 = vadd.f32 0.0, %v3244
        %3246 = vmatmul.bf16.gmra.mxu0 %v3221
        %v3247 = vpop.f32.mrf.mxu0
        %v3248 = vadd.f32 0.0, %v3247
        %v3249 = vpop.f32.mrf.mxu0
        %v3250 = vadd.f32 0.0, %v3249
        %3251 = vdwg.mxu0
        %v3252 = vadd.f32 %v3194, %v3233
        %v3253 = vadd.f32 %v3195, %v3235
        %v3254 = vadd.f32 %v3196, %v3238
        %v3255 = vadd.f32 %v3197, %v3240
        %v3256 = vadd.f32 %v3198, %v3243
        %v3257 = vadd.f32 %v3199, %v3245
        %v3258 = vadd.f32 %v3200, %v3248
        %v3259 = vadd.f32 %v3201, %v3250
        %3260 = vmatpush.bf16.msra.mxu0 0
        %3261 = vmatpush.bf16.msra.mxu0 0
        %3262 = vmatpush.bf16.msra.mxu0 0
        %3263 = vmatpush.bf16.msra.mxu0 0
        %3264 = vmatpush.bf16.msra.mxu0 %v2853
        %3265 = vmatpush.bf16.msra.mxu0 %v2852
        %3266 = vmatpush.bf16.msra.mxu0 %v2851
        %3267 = vmatpush.bf16.msra.mxu0 %v2850
        %3268 = vmatmul.bf16.gmra.mxu0 %v2331
        %v3269 = vpop.f32.mrf.mxu0
        %v3270 = vadd.f32 0.0, %v3269
        %v3271 = vpop.f32.mrf.mxu0
        %v3272 = vadd.f32 0.0, %v3271
        %3273 = vmatmul.bf16.gmra.mxu0 %v2334
        %v3274 = vpop.f32.mrf.mxu0
        %v3275 = vadd.f32 0.0, %v3274
        %v3276 = vpop.f32.mrf.mxu0
        %v3277 = vadd.f32 0.0, %v3276
        %3278 = vmatmul.bf16.gmra.mxu0 %v2337
        %v3279 = vpop.f32.mrf.mxu0
        %v3280 = vadd.f32 0.0, %v3279
        %v3281 = vpop.f32.mrf.mxu0
        %v3282 = vadd.f32 0.0, %v3281
        %3283 = vmatmul.bf16.gmra.mxu0 %v2340
        %v3284 = vpop.f32.mrf.mxu0
        %v3285 = vadd.f32 0.0, %v3284
        %v3286 = vpop.f32.mrf.mxu0
        %v3287 = vadd.f32 0.0, %v3286
        %3288 = vdwg.mxu0
        %v3289 = vpack.c.bf16 %v3272, %v3270
        %v3290 = vpack.c.bf16 %v3277, %v3275
        %v3291 = vpack.c.bf16 %v3282, %v3280
        %v3292 = vpack.c.bf16 %v3287, %v3285
        %s3293 = scalar_lea.vmem %s2, 112
        %v3294 = vld [vmem:[%s3293] sm:$0xf]
        %v3295 = vld [vmem:[%s3293 + $0x4] sm:$0xf]
        %v3298 = vunpack.c.l.b16 %v3294
        %v3299 = vunpack.c.l.b16 %v3295
        %v3300 = vpack.c.b16 %v3299, %v3298
        %v3303 = vsel %vm1890, %v3289, 0
        %v3306 = vsel %vm1890, %v3290, 0
        %v3309 = vsel %vm1890, %v3291, 0
        %v3312 = vsel %vm1890, %v3292, 0
        %3314 = vmatpush.bf16.msra.mxu0 0
        %3315 = vmatpush.bf16.msra.mxu0 0
        %3316 = vmatpush.bf16.msra.mxu0 0
        %3317 = vmatpush.bf16.msra.mxu0 0
        %3318 = vmatpush.bf16.msra.mxu0 0
        %3319 = vmatpush.bf16.msra.mxu0 0
        %3320 = vmatpush.bf16.msra.mxu0 0
        %3321 = vmatpush.bf16.msra.mxu0 %v3300
        %3322 = vmatmul.bf16.gmra.mxu0 %v3303
        %v3323 = vpop.f32.mrf.mxu0
        %v3324 = vadd.f32 0.0, %v3323
        %v3325 = vpop.f32.mrf.mxu0
        %v3326 = vadd.f32 0.0, %v3325
        %3327 = vmatmul.bf16.gmra.mxu0 %v3306
        %v3328 = vpop.f32.mrf.mxu0
        %v3329 = vadd.f32 0.0, %v3328
        %v3330 = vpop.f32.mrf.mxu0
        %v3331 = vadd.f32 0.0, %v3330
        %3332 = vmatmul.bf16.gmra.mxu0 %v3309
        %v3333 = vpop.f32.mrf.mxu0
        %v3334 = vadd.f32 0.0, %v3333
        %v3335 = vpop.f32.mrf.mxu0
        %v3336 = vadd.f32 0.0, %v3335
        %3337 = vmatmul.bf16.gmra.mxu0 %v3312
        %v3338 = vpop.f32.mrf.mxu0
        %v3339 = vadd.f32 0.0, %v3338
        %v3340 = vpop.f32.mrf.mxu0
        %v3341 = vadd.f32 0.0, %v3340
        %3342 = vdwg.mxu0
        %v3343 = vadd.f32 %v3252, %v3324
        %v3344 = vadd.f32 %v3253, %v3326
        %v3345 = vadd.f32 %v3254, %v3329
        %v3346 = vadd.f32 %v3255, %v3331
        %v3347 = vadd.f32 %v3256, %v3334
        %v3348 = vadd.f32 %v3257, %v3336
        %v3349 = vadd.f32 %v3258, %v3339
        %v3350 = vadd.f32 %v3259, %v3341
        %3351 = vmatpush.bf16.msra.mxu0 0
        %3352 = vmatpush.bf16.msra.mxu0 0
        %3353 = vmatpush.bf16.msra.mxu0 0
        %3354 = vmatpush.bf16.msra.mxu0 0
        %3355 = vmatpush.bf16.msra.mxu0 %v2853
        %3356 = vmatpush.bf16.msra.mxu0 %v2852
        %3357 = vmatpush.bf16.msra.mxu0 %v2851
        %3358 = vmatpush.bf16.msra.mxu0 %v2850
        %3359 = vmatmul.bf16.gmra.mxu0 %v2463
        %v3360 = vpop.f32.mrf.mxu0
        %v3361 = vadd.f32 0.0, %v3360
        %v3362 = vpop.f32.mrf.mxu0
        %v3363 = vadd.f32 0.0, %v3362
        %3364 = vmatmul.bf16.gmra.mxu0 %v2466
        %v3365 = vpop.f32.mrf.mxu0
        %v3366 = vadd.f32 0.0, %v3365
        %v3367 = vpop.f32.mrf.mxu0
        %v3368 = vadd.f32 0.0, %v3367
        %3369 = vmatmul.bf16.gmra.mxu0 %v2469
        %v3370 = vpop.f32.mrf.mxu0
        %v3371 = vadd.f32 0.0, %v3370
        %v3372 = vpop.f32.mrf.mxu0
        %v3373 = vadd.f32 0.0, %v3372
        %3374 = vmatmul.bf16.gmra.mxu0 %v2472
        %v3375 = vpop.f32.mrf.mxu0
        %v3376 = vadd.f32 0.0, %v3375
        %v3377 = vpop.f32.mrf.mxu0
        %v3378 = vadd.f32 0.0, %v3377
        %3379 = vdwg.mxu0
        %v3380 = vpack.c.bf16 %v3363, %v3361
        %v3381 = vpack.c.bf16 %v3368, %v3366
        %v3382 = vpack.c.bf16 %v3373, %v3371
        %v3383 = vpack.c.bf16 %v3378, %v3376
        %s3384 = scalar_lea.vmem %s2, 120
        %v3385 = vld [vmem:[%s3384] sm:$0xf]
        %v3386 = vld [vmem:[%s3384 + $0x4] sm:$0xf]
        %v3389 = vunpack.c.l.b16 %v3385
        %v3390 = vunpack.c.l.b16 %v3386
        %v3391 = vpack.c.b16 %v3390, %v3389
        %v3394 = vsel %vm1890, %v3380, 0
        %v3397 = vsel %vm1890, %v3381, 0
        %v3400 = vsel %vm1890, %v3382, 0
        %v3403 = vsel %vm1890, %v3383, 0
        %3405 = vmatpush.bf16.msra.mxu0 0
        %3406 = vmatpush.bf16.msra.mxu0 0
        %3407 = vmatpush.bf16.msra.mxu0 0
        %3408 = vmatpush.bf16.msra.mxu0 0
        %3409 = vmatpush.bf16.msra.mxu0 0
        %3410 = vmatpush.bf16.msra.mxu0 0
        %3411 = vmatpush.bf16.msra.mxu0 0
        %3412 = vmatpush.bf16.msra.mxu0 %v3391
        %3413 = vmatmul.bf16.gmra.mxu0 %v3394
        %v3414 = vpop.f32.mrf.mxu0
        %v3415 = vadd.f32 0.0, %v3414
        %v3416 = vpop.f32.mrf.mxu0
        %v3417 = vadd.f32 0.0, %v3416
        %3418 = vmatmul.bf16.gmra.mxu0 %v3397
        %v3419 = vpop.f32.mrf.mxu0
        %v3420 = vadd.f32 0.0, %v3419
        %v3421 = vpop.f32.mrf.mxu0
        %v3422 = vadd.f32 0.0, %v3421
        %3423 = vmatmul.bf16.gmra.mxu0 %v3400
        %v3424 = vpop.f32.mrf.mxu0
        %v3425 = vadd.f32 0.0, %v3424
        %v3426 = vpop.f32.mrf.mxu0
        %v3427 = vadd.f32 0.0, %v3426
        %3428 = vmatmul.bf16.gmra.mxu0 %v3403
        %v3429 = vpop.f32.mrf.mxu0
        %v3430 = vadd.f32 0.0, %v3429
        %v3431 = vpop.f32.mrf.mxu0
        %v3432 = vadd.f32 0.0, %v3431
        %3433 = vdwg.mxu0
        %v3434 = vadd.f32 %v3343, %v3415
        %v3435 = vadd.f32 %v3344, %v3417
        %v3436 = vadd.f32 %v3345, %v3420
        %v3437 = vadd.f32 %v3346, %v3422
        %v3438 = vadd.f32 %v3347, %v3425
        %v3439 = vadd.f32 %v3348, %v3427
        %v3440 = vadd.f32 %v3349, %v3430
        %v3441 = vadd.f32 %v3350, %v3432
        %3442 = vmatpush.bf16.msra.mxu0 0
        %3443 = vmatpush.bf16.msra.mxu0 0
        %3444 = vmatpush.bf16.msra.mxu0 0
        %3445 = vmatpush.bf16.msra.mxu0 0
        %3446 = vmatpush.bf16.msra.mxu0 %v2853
        %3447 = vmatpush.bf16.msra.mxu0 %v2852
        %3448 = vmatpush.bf16.msra.mxu0 %v2851
        %3449 = vmatpush.bf16.msra.mxu0 %v2850
        %3450 = vmatmul.bf16.gmra.mxu0 %v2595
        %v3451 = vpop.f32.mrf.mxu0
        %v3452 = vadd.f32 0.0, %v3451
        %v3453 = vpop.f32.mrf.mxu0
        %v3454 = vadd.f32 0.0, %v3453
        %3455 = vmatmul.bf16.gmra.mxu0 %v2598
        %v3456 = vpop.f32.mrf.mxu0
        %v3457 = vadd.f32 0.0, %v3456
        %v3458 = vpop.f32.mrf.mxu0
        %v3459 = vadd.f32 0.0, %v3458
        %3460 = vmatmul.bf16.gmra.mxu0 %v2601
        %v3461 = vpop.f32.mrf.mxu0
        %v3462 = vadd.f32 0.0, %v3461
        %v3463 = vpop.f32.mrf.mxu0
        %v3464 = vadd.f32 0.0, %v3463
        %3465 = vmatmul.bf16.gmra.mxu0 %v2604
        %v3466 = vpop.f32.mrf.mxu0
        %v3467 = vadd.f32 0.0, %v3466
        %v3468 = vpop.f32.mrf.mxu0
        %v3469 = vadd.f32 0.0, %v3468
        %3470 = vdwg.mxu0
        %v3471 = vpack.c.bf16 %v3454, %v3452
        %v3472 = vpack.c.bf16 %v3459, %v3457
        %v3473 = vpack.c.bf16 %v3464, %v3462
        %v3474 = vpack.c.bf16 %v3469, %v3467
        %s3475 = scalar_lea.vmem %s2, 128
        %v3476 = vld [vmem:[%s3475] sm:$0xf]
        %v3477 = vld [vmem:[%s3475 + $0x4] sm:$0xf]
        %v3480 = vunpack.c.l.b16 %v3476
        %v3481 = vunpack.c.l.b16 %v3477
        %v3482 = vpack.c.b16 %v3481, %v3480
        %v3485 = vsel %vm1890, %v3471, 0
        %v3488 = vsel %vm1890, %v3472, 0
        %v3491 = vsel %vm1890, %v3473, 0
        %v3494 = vsel %vm1890, %v3474, 0
        %3496 = vmatpush.bf16.msra.mxu0 0
        %3497 = vmatpush.bf16.msra.mxu0 0
        %3498 = vmatpush.bf16.msra.mxu0 0
        %3499 = vmatpush.bf16.msra.mxu0 0
        %3500 = vmatpush.bf16.msra.mxu0 0
        %3501 = vmatpush.bf16.msra.mxu0 0
        %3502 = vmatpush.bf16.msra.mxu0 0
        %3503 = vmatpush.bf16.msra.mxu0 %v3482
        %3504 = vmatmul.bf16.gmra.mxu0 %v3485
        %v3505 = vpop.f32.mrf.mxu0
        %v3506 = vadd.f32 0.0, %v3505
        %v3507 = vpop.f32.mrf.mxu0
        %v3508 = vadd.f32 0.0, %v3507
        %3509 = vmatmul.bf16.gmra.mxu0 %v3488
        %v3510 = vpop.f32.mrf.mxu0
        %v3511 = vadd.f32 0.0, %v3510
        %v3512 = vpop.f32.mrf.mxu0
        %v3513 = vadd.f32 0.0, %v3512
        %3514 = vmatmul.bf16.gmra.mxu0 %v3491
        %v3515 = vpop.f32.mrf.mxu0
        %v3516 = vadd.f32 0.0, %v3515
        %v3517 = vpop.f32.mrf.mxu0
        %v3518 = vadd.f32 0.0, %v3517
        %3519 = vmatmul.bf16.gmra.mxu0 %v3494
        %v3520 = vpop.f32.mrf.mxu0
        %v3521 = vadd.f32 0.0, %v3520
        %v3522 = vpop.f32.mrf.mxu0
        %v3523 = vadd.f32 0.0, %v3522
        %3524 = vdwg.mxu0
        %v3525 = vadd.f32 %v3434, %v3506
        %v3526 = vadd.f32 %v3435, %v3508
        %v3527 = vadd.f32 %v3436, %v3511
        %v3528 = vadd.f32 %v3437, %v3513
        %v3529 = vadd.f32 %v3438, %v3516
        %v3530 = vadd.f32 %v3439, %v3518
        %v3531 = vadd.f32 %v3440, %v3521
        %v3532 = vadd.f32 %v3441, %v3523
        %3533 = vmatpush.bf16.msra.mxu0 0
        %3534 = vmatpush.bf16.msra.mxu0 0
        %3535 = vmatpush.bf16.msra.mxu0 0
        %3536 = vmatpush.bf16.msra.mxu0 0
        %3537 = vmatpush.bf16.msra.mxu0 %v2853
        %3538 = vmatpush.bf16.msra.mxu0 %v2852
        %3539 = vmatpush.bf16.msra.mxu0 %v2851
        %3540 = vmatpush.bf16.msra.mxu0 %v2850
        %3541 = vmatmul.bf16.gmra.mxu0 %v2727
        %v3542 = vpop.f32.mrf.mxu0
        %v3543 = vadd.f32 0.0, %v3542
        %v3544 = vpop.f32.mrf.mxu0
        %v3545 = vadd.f32 0.0, %v3544
        %3546 = vmatmul.bf16.gmra.mxu0 %v2730
        %v3547 = vpop.f32.mrf.mxu0
        %v3548 = vadd.f32 0.0, %v3547
        %v3549 = vpop.f32.mrf.mxu0
        %v3550 = vadd.f32 0.0, %v3549
        %3551 = vmatmul.bf16.gmra.mxu0 %v2733
        %v3552 = vpop.f32.mrf.mxu0
        %v3553 = vadd.f32 0.0, %v3552
        %v3554 = vpop.f32.mrf.mxu0
        %v3555 = vadd.f32 0.0, %v3554
        %3556 = vmatmul.bf16.gmra.mxu0 %v2736
        %v3557 = vpop.f32.mrf.mxu0
        %v3558 = vadd.f32 0.0, %v3557
        %v3559 = vpop.f32.mrf.mxu0
        %v3560 = vadd.f32 0.0, %v3559
        %3561 = vdwg.mxu0
        %v3562 = vpack.c.bf16 %v3545, %v3543
        %v3563 = vpack.c.bf16 %v3550, %v3548
        %v3564 = vpack.c.bf16 %v3555, %v3553
        %v3565 = vpack.c.bf16 %v3560, %v3558
        %s3566 = scalar_lea.vmem %s2, 136
        %v3567 = vld [vmem:[%s3566] sm:$0xf]
        %v3568 = vld [vmem:[%s3566 + $0x4] sm:$0xf]
        %v3571 = vunpack.c.l.b16 %v3567
        %v3572 = vunpack.c.l.b16 %v3568
        %v3573 = vpack.c.b16 %v3572, %v3571
        %v3576 = vsel %vm1890, %v3562, 0
        %v3579 = vsel %vm1890, %v3563, 0
        %v3582 = vsel %vm1890, %v3564, 0
        %v3585 = vsel %vm1890, %v3565, 0
        %3587 = vmatpush.bf16.msra.mxu0 0
        %3588 = vmatpush.bf16.msra.mxu0 0
        %3589 = vmatpush.bf16.msra.mxu0 0
        %3590 = vmatpush.bf16.msra.mxu0 0
        %3591 = vmatpush.bf16.msra.mxu0 0
        %3592 = vmatpush.bf16.msra.mxu0 0
        %3593 = vmatpush.bf16.msra.mxu0 0
        %3594 = vmatpush.bf16.msra.mxu0 %v3573
        %3595 = vmatmul.bf16.gmra.mxu0 %v3576
        %v3596 = vpop.f32.mrf.mxu0
        %v3597 = vadd.f32 0.0, %v3596
        %v3598 = vpop.f32.mrf.mxu0
        %v3599 = vadd.f32 0.0, %v3598
        %3600 = vmatmul.bf16.gmra.mxu0 %v3579
        %v3601 = vpop.f32.mrf.mxu0
        %v3602 = vadd.f32 0.0, %v3601
        %v3603 = vpop.f32.mrf.mxu0
        %v3604 = vadd.f32 0.0, %v3603
        %3605 = vmatmul.bf16.gmra.mxu0 %v3582
        %v3606 = vpop.f32.mrf.mxu0
        %v3607 = vadd.f32 0.0, %v3606
        %v3608 = vpop.f32.mrf.mxu0
        %v3609 = vadd.f32 0.0, %v3608
        %3610 = vmatmul.bf16.gmra.mxu0 %v3585
        %v3611 = vpop.f32.mrf.mxu0
        %v3612 = vadd.f32 0.0, %v3611
        %v3613 = vpop.f32.mrf.mxu0
        %v3614 = vadd.f32 0.0, %v3613
        %3615 = vdwg.mxu0
        %v3616 = vadd.f32 %v3525, %v3597
        %v3617 = vadd.f32 %v3526, %v3599
        %v3618 = vadd.f32 %v3527, %v3602
        %v3619 = vadd.f32 %v3528, %v3604
        %v3620 = vadd.f32 %v3529, %v3607
        %v3621 = vadd.f32 %v3530, %v3609
        %v3622 = vadd.f32 %v3531, %v3612
        %v3623 = vadd.f32 %v3532, %v3614
        %s3624 = scalar_lea.vmem %s3, 2
        %v3625 = vld [vmem:[%s3624] sm:$0x1]
        %v3627 = vperm.slane %v3625, 0
        %v3629 = vadd.f32 %v3616, %v3627
        %v3630 = vadd.f32 %v3617, %v3627
        %v3631 = vadd.f32 %v3618, %v3627
        %v3632 = vadd.f32 %v3619, %v3627
        %v3633 = vadd.f32 %v3620, %v3627
        %v3634 = vadd.f32 %v3621, %v3627
        %v3635 = vadd.f32 %v3622, %v3627
        %v3636 = vadd.f32 %v3623, %v3627
        %v3637 = vadd.f32 %v3629, %v1719
        %v3638 = vadd.f32 %v3630, %v1720
        %v3639 = vadd.f32 %v3631, %v1721
        %v3640 = vadd.f32 %v3632, %v1722
        %v3641 = vadd.f32 %v3633, %v1723
        %v3642 = vadd.f32 %v3634, %v1724
        %v3643 = vadd.f32 %v3635, %v1725
        %v3644 = vadd.f32 %v3636, %v1726
        %v3645 = vmax.f32 %v3637, 0.0
        %v3646 = vmax.f32 %v3638, 0.0
        %v3647 = vmax.f32 %v3639, 0.0
        %v3648 = vmax.f32 %v3640, 0.0
        %v3649 = vmax.f32 %v3641, 0.0
        %v3650 = vmax.f32 %v3642, 0.0
        %v3651 = vmax.f32 %v3643, 0.0
        %v3652 = vmax.f32 %v3644, 0.0
        %v3653 = vpack.c.bf16 %v3646, %v3645
        %v3654 = vpack.c.bf16 %v3648, %v3647
        %v3655 = vpack.c.bf16 %v3650, %v3649
        %v3656 = vpack.c.bf16 %v3652, %v3651
        %3657 = vmatpush.bf16.msra.mxu0 0
        %3658 = vmatpush.bf16.msra.mxu0 0
        %3659 = vmatpush.bf16.msra.mxu0 0
        %3660 = vmatpush.bf16.msra.mxu0 0
        %3661 = vmatpush.bf16.msra.mxu0 %v3656
        %3662 = vmatpush.bf16.msra.mxu0 %v3655
        %3663 = vmatpush.bf16.msra.mxu0 %v3654
        %3664 = vmatpush.bf16.msra.mxu0 %v3653
        %3665 = vmatmul.bf16.gmra.mxu0 %v1761
        %v3666 = vpop.f32.mrf.mxu0
        %v3667 = vadd.f32 0.0, %v3666
        %v3668 = vpop.f32.mrf.mxu0
        %v3669 = vadd.f32 0.0, %v3668
        %3670 = vmatmul.bf16.gmra.mxu0 %v1764
        %v3671 = vpop.f32.mrf.mxu0
        %v3672 = vadd.f32 0.0, %v3671
        %v3673 = vpop.f32.mrf.mxu0
        %v3674 = vadd.f32 0.0, %v3673
        %3675 = vmatmul.bf16.gmra.mxu0 %v1767
        %v3676 = vpop.f32.mrf.mxu0
        %v3677 = vadd.f32 0.0, %v3676
        %v3678 = vpop.f32.mrf.mxu0
        %v3679 = vadd.f32 0.0, %v3678
        %3680 = vmatmul.bf16.gmra.mxu0 %v1770
        %v3681 = vpop.f32.mrf.mxu0
        %v3682 = vadd.f32 0.0, %v3681
        %v3683 = vpop.f32.mrf.mxu0
        %v3684 = vadd.f32 0.0, %v3683
        %3685 = vdwg.mxu0
        %v3686 = vpack.c.bf16 %v3669, %v3667
        %v3687 = vpack.c.bf16 %v3674, %v3672
        %v3688 = vpack.c.bf16 %v3679, %v3677
        %v3689 = vpack.c.bf16 %v3684, %v3682
        %s3690 = scalar_lea.vmem %s2, 144
        %v3691 = vld [vmem:[%s3690] sm:$0xf]
        %v3692 = vld [vmem:[%s3690 + $0x4] sm:$0xf]
        %3693 = vmatpush.bf16.msra.mxu0 0
        %3694 = vmatpush.bf16.msra.mxu0 0
        %3695 = vmatpush.bf16.msra.mxu0 0
        %3696 = vmatpush.bf16.msra.mxu0 0
        %3697 = vmatpush.bf16.msra.mxu0 %v3656
        %3698 = vmatpush.bf16.msra.mxu0 %v3655
        %3699 = vmatpush.bf16.msra.mxu0 %v3654
        %3700 = vmatpush.bf16.msra.mxu0 %v3653
        %3701 = vmatmul.bf16.gmra.mxu0 %v1837
        %v3702 = vpop.f32.mrf.mxu0
        %v3703 = vadd.f32 0.0, %v3702
        %v3704 = vpop.f32.mrf.mxu0
        %v3705 = vadd.f32 0.0, %v3704
        %3706 = vmatmul.bf16.gmra.mxu0 %v1840
        %v3707 = vpop.f32.mrf.mxu0
        %v3708 = vadd.f32 0.0, %v3707
        %v3709 = vpop.f32.mrf.mxu0
        %v3710 = vadd.f32 0.0, %v3709
        %3711 = vmatmul.bf16.gmra.mxu0 %v1843
        %v3712 = vpop.f32.mrf.mxu0
        %v3713 = vadd.f32 0.0, %v3712
        %v3714 = vpop.f32.mrf.mxu0
        %v3715 = vadd.f32 0.0, %v3714
        %3716 = vmatmul.bf16.gmra.mxu0 %v1846
        %v3717 = vpop.f32.mrf.mxu0
        %v3718 = vadd.f32 0.0, %v3717
        %v3719 = vpop.f32.mrf.mxu0
        %v3720 = vadd.f32 0.0, %v3719
        %3721 = vdwg.mxu0
        %v3722 = vpack.c.bf16 %v3705, %v3703
        %v3723 = vpack.c.bf16 %v3710, %v3708
        %v3724 = vpack.c.bf16 %v3715, %v3713
        %v3725 = vpack.c.bf16 %v3720, %v3718
        %s3726 = scalar_lea.vmem %s2, 152
        %v3727 = vld [vmem:[%s3726] sm:$0xf]
        %v3728 = vld [vmem:[%s3726 + $0x4] sm:$0xf]
        %v3731 = vunpack.c.l.b16 %v3727
        %v3732 = vunpack.c.l.b16 %v3728
        %v3733 = vpack.c.b16 %v3732, %v3731
        %v3736 = vsel %vm1890, %v3722, 0
        %v3739 = vsel %vm1890, %v3723, 0
        %v3742 = vsel %vm1890, %v3724, 0
        %v3745 = vsel %vm1890, %v3725, 0
        %3747 = vmatpush.bf16.msra.mxu0 0
        %3748 = vmatpush.bf16.msra.mxu0 0
        %3749 = vmatpush.bf16.msra.mxu0 0
        %3750 = vmatpush.bf16.msra.mxu0 0
        %3751 = vmatpush.bf16.msra.mxu0 0
        %3752 = vmatpush.bf16.msra.mxu0 0
        %3753 = vmatpush.bf16.msra.mxu0 0
        %3754 = vmatpush.bf16.msra.mxu0 %v3733
        %3755 = vmatmul.bf16.gmra.mxu0 %v3736
        %v3756 = vpop.f32.mrf.mxu0
        %v3757 = vadd.f32 0.0, %v3756
        %v3758 = vpop.f32.mrf.mxu0
        %v3759 = vadd.f32 0.0, %v3758
        %3760 = vmatmul.bf16.gmra.mxu0 %v3739
        %v3761 = vpop.f32.mrf.mxu0
        %v3762 = vadd.f32 0.0, %v3761
        %v3763 = vpop.f32.mrf.mxu0
        %v3764 = vadd.f32 0.0, %v3763
        %3765 = vmatmul.bf16.gmra.mxu0 %v3742
        %v3766 = vpop.f32.mrf.mxu0
        %v3767 = vadd.f32 0.0, %v3766
        %v3768 = vpop.f32.mrf.mxu0
        %v3769 = vadd.f32 0.0, %v3768
        %3770 = vmatmul.bf16.gmra.mxu0 %v3745
        %v3771 = vpop.f32.mrf.mxu0
        %v3772 = vadd.f32 0.0, %v3771
        %v3773 = vpop.f32.mrf.mxu0
        %v3774 = vadd.f32 0.0, %v3773
        %3775 = vdwg.mxu0
        %v3778 = vunpack.c.l.b16 %v3691
        %v3779 = vunpack.c.l.b16 %v3692
        %v3780 = vpack.c.b16 %v3779, %v3778
        %v3783 = vsel %vm1890, %v3686, 0
        %v3786 = vsel %vm1890, %v3687, 0
        %v3789 = vsel %vm1890, %v3688, 0
        %v3792 = vsel %vm1890, %v3689, 0
        %3794 = vmatpush.bf16.msra.mxu0 0
        %3795 = vmatpush.bf16.msra.mxu0 0
        %3796 = vmatpush.bf16.msra.mxu0 0
        %3797 = vmatpush.bf16.msra.mxu0 0
        %3798 = vmatpush.bf16.msra.mxu0 0
        %3799 = vmatpush.bf16.msra.mxu0 0
        %3800 = vmatpush.bf16.msra.mxu0 0
        %3801 = vmatpush.bf16.msra.mxu0 %v3780
        %3802 = vmatmul.bf16.gmra.mxu0 %v3783
        %v3803 = vpop.f32.mrf.mxu0
        %v3804 = vadd.f32 %v3757, %v3803
        %v3805 = vpop.f32.mrf.mxu0
        %v3806 = vadd.f32 %v3759, %v3805
        %3807 = vmatmul.bf16.gmra.mxu0 %v3786
        %v3808 = vpop.f32.mrf.mxu0
        %v3809 = vadd.f32 %v3762, %v3808
        %v3810 = vpop.f32.mrf.mxu0
        %v3811 = vadd.f32 %v3764, %v3810
        %3812 = vmatmul.bf16.gmra.mxu0 %v3789
        %v3813 = vpop.f32.mrf.mxu0
        %v3814 = vadd.f32 %v3767, %v3813
        %v3815 = vpop.f32.mrf.mxu0
        %v3816 = vadd.f32 %v3769, %v3815
        %3817 = vmatmul.bf16.gmra.mxu0 %v3792
        %v3818 = vpop.f32.mrf.mxu0
        %v3819 = vadd.f32 %v3772, %v3818
        %v3820 = vpop.f32.mrf.mxu0
        %v3821 = vadd.f32 %v3774, %v3820
        %3822 = vdwg.mxu0
        %3823 = vmatpush.bf16.msra.mxu0 0
        %3824 = vmatpush.bf16.msra.mxu0 0
        %3825 = vmatpush.bf16.msra.mxu0 0
        %3826 = vmatpush.bf16.msra.mxu0 0
        %3827 = vmatpush.bf16.msra.mxu0 %v3656
        %3828 = vmatpush.bf16.msra.mxu0 %v3655
        %3829 = vmatpush.bf16.msra.mxu0 %v3654
        %3830 = vmatpush.bf16.msra.mxu0 %v3653
        %3831 = vmatmul.bf16.gmra.mxu0 %v2009
        %v3832 = vpop.f32.mrf.mxu0
        %v3833 = vadd.f32 0.0, %v3832
        %v3834 = vpop.f32.mrf.mxu0
        %v3835 = vadd.f32 0.0, %v3834
        %3836 = vmatmul.bf16.gmra.mxu0 %v2012
        %v3837 = vpop.f32.mrf.mxu0
        %v3838 = vadd.f32 0.0, %v3837
        %v3839 = vpop.f32.mrf.mxu0
        %v3840 = vadd.f32 0.0, %v3839
        %3841 = vmatmul.bf16.gmra.mxu0 %v2015
        %v3842 = vpop.f32.mrf.mxu0
        %v3843 = vadd.f32 0.0, %v3842
        %v3844 = vpop.f32.mrf.mxu0
        %v3845 = vadd.f32 0.0, %v3844
        %3846 = vmatmul.bf16.gmra.mxu0 %v2018
        %v3847 = vpop.f32.mrf.mxu0
        %v3848 = vadd.f32 0.0, %v3847
        %v3849 = vpop.f32.mrf.mxu0
        %v3850 = vadd.f32 0.0, %v3849
        %3851 = vdwg.mxu0
        %v3852 = vpack.c.bf16 %v3835, %v3833
        %v3853 = vpack.c.bf16 %v3840, %v3838
        %v3854 = vpack.c.bf16 %v3845, %v3843
        %v3855 = vpack.c.bf16 %v3850, %v3848
        %s3856 = scalar_lea.vmem %s2, 160
        %v3857 = vld [vmem:[%s3856] sm:$0xf]
        %v3858 = vld [vmem:[%s3856 + $0x4] sm:$0xf]
        %v3861 = vunpack.c.l.b16 %v3857
        %v3862 = vunpack.c.l.b16 %v3858
        %v3863 = vpack.c.b16 %v3862, %v3861
        %v3866 = vsel %vm1890, %v3852, 0
        %v3869 = vsel %vm1890, %v3853, 0
        %v3872 = vsel %vm1890, %v3854, 0
        %v3875 = vsel %vm1890, %v3855, 0
        %3877 = vmatpush.bf16.msra.mxu0 0
        %3878 = vmatpush.bf16.msra.mxu0 0
        %3879 = vmatpush.bf16.msra.mxu0 0
        %3880 = vmatpush.bf16.msra.mxu0 0
        %3881 = vmatpush.bf16.msra.mxu0 0
        %3882 = vmatpush.bf16.msra.mxu0 0
        %3883 = vmatpush.bf16.msra.mxu0 0
        %3884 = vmatpush.bf16.msra.mxu0 %v3863
        %3885 = vmatmul.bf16.gmra.mxu0 %v3866
        %v3886 = vpop.f32.mrf.mxu0
        %v3887 = vadd.f32 0.0, %v3886
        %v3888 = vpop.f32.mrf.mxu0
        %v3889 = vadd.f32 0.0, %v3888
        %3890 = vmatmul.bf16.gmra.mxu0 %v3869
        %v3891 = vpop.f32.mrf.mxu0
        %v3892 = vadd.f32 0.0, %v3891
        %v3893 = vpop.f32.mrf.mxu0
        %v3894 = vadd.f32 0.0, %v3893
        %3895 = vmatmul.bf16.gmra.mxu0 %v3872
        %v3896 = vpop.f32.mrf.mxu0
        %v3897 = vadd.f32 0.0, %v3896
        %v3898 = vpop.f32.mrf.mxu0
        %v3899 = vadd.f32 0.0, %v3898
        %3900 = vmatmul.bf16.gmra.mxu0 %v3875
        %v3901 = vpop.f32.mrf.mxu0
        %v3902 = vadd.f32 0.0, %v3901
        %v3903 = vpop.f32.mrf.mxu0
        %v3904 = vadd.f32 0.0, %v3903
        %3905 = vdwg.mxu0
        %v3906 = vadd.f32 %v3804, %v3887
        %v3907 = vadd.f32 %v3806, %v3889
        %v3908 = vadd.f32 %v3809, %v3892
        %v3909 = vadd.f32 %v3811, %v3894
        %v3910 = vadd.f32 %v3814, %v3897
        %v3911 = vadd.f32 %v3816, %v3899
        %v3912 = vadd.f32 %v3819, %v3902
        %v3913 = vadd.f32 %v3821, %v3904
        %3914 = vmatpush.bf16.msra.mxu0 0
        %3915 = vmatpush.bf16.msra.mxu0 0
        %3916 = vmatpush.bf16.msra.mxu0 0
        %3917 = vmatpush.bf16.msra.mxu0 0
        %3918 = vmatpush.bf16.msra.mxu0 %v3656
        %3919 = vmatpush.bf16.msra.mxu0 %v3655
        %3920 = vmatpush.bf16.msra.mxu0 %v3654
        %3921 = vmatpush.bf16.msra.mxu0 %v3653
        %3922 = vmatmul.bf16.gmra.mxu0 %v2141
        %v3923 = vpop.f32.mrf.mxu0
        %v3924 = vadd.f32 0.0, %v3923
        %v3925 = vpop.f32.mrf.mxu0
        %v3926 = vadd.f32 0.0, %v3925
        %3927 = vmatmul.bf16.gmra.mxu0 %v2144
        %v3928 = vpop.f32.mrf.mxu0
        %v3929 = vadd.f32 0.0, %v3928
        %v3930 = vpop.f32.mrf.mxu0
        %v3931 = vadd.f32 0.0, %v3930
        %3932 = vmatmul.bf16.gmra.mxu0 %v2147
        %v3933 = vpop.f32.mrf.mxu0
        %v3934 = vadd.f32 0.0, %v3933
        %v3935 = vpop.f32.mrf.mxu0
        %v3936 = vadd.f32 0.0, %v3935
        %3937 = vmatmul.bf16.gmra.mxu0 %v2150
        %v3938 = vpop.f32.mrf.mxu0
        %v3939 = vadd.f32 0.0, %v3938
        %v3940 = vpop.f32.mrf.mxu0
        %v3941 = vadd.f32 0.0, %v3940
        %3942 = vdwg.mxu0
        %v3943 = vpack.c.bf16 %v3926, %v3924
        %v3944 = vpack.c.bf16 %v3931, %v3929
        %v3945 = vpack.c.bf16 %v3936, %v3934
        %v3946 = vpack.c.bf16 %v3941, %v3939
        %s3947 = scalar_lea.vmem %s2, 168
        %v3948 = vld [vmem:[%s3947] sm:$0xf]
        %v3949 = vld [vmem:[%s3947 + $0x4] sm:$0xf]
        %v3952 = vunpack.c.l.b16 %v3948
        %v3953 = vunpack.c.l.b16 %v3949
        %v3954 = vpack.c.b16 %v3953, %v3952
        %v3957 = vsel %vm1890, %v3943, 0
        %v3960 = vsel %vm1890, %v3944, 0
        %v3963 = vsel %vm1890, %v3945, 0
        %v3966 = vsel %vm1890, %v3946, 0
        %3968 = vmatpush.bf16.msra.mxu0 0
        %3969 = vmatpush.bf16.msra.mxu0 0
        %3970 = vmatpush.bf16.msra.mxu0 0
        %3971 = vmatpush.bf16.msra.mxu0 0
        %3972 = vmatpush.bf16.msra.mxu0 0
        %3973 = vmatpush.bf16.msra.mxu0 0
        %3974 = vmatpush.bf16.msra.mxu0 0
        %3975 = vmatpush.bf16.msra.mxu0 %v3954
        %3976 = vmatmul.bf16.gmra.mxu0 %v3957
        %v3977 = vpop.f32.mrf.mxu0
        %v3978 = vadd.f32 0.0, %v3977
        %v3979 = vpop.f32.mrf.mxu0
        %v3980 = vadd.f32 0.0, %v3979
        %3981 = vmatmul.bf16.gmra.mxu0 %v3960
        %v3982 = vpop.f32.mrf.mxu0
        %v3983 = vadd.f32 0.0, %v3982
        %v3984 = vpop.f32.mrf.mxu0
        %v3985 = vadd.f32 0.0, %v3984
        %3986 = vmatmul.bf16.gmra.mxu0 %v3963
        %v3987 = vpop.f32.mrf.mxu0
        %v3988 = vadd.f32 0.0, %v3987
        %v3989 = vpop.f32.mrf.mxu0
        %v3990 = vadd.f32 0.0, %v3989
        %3991 = vmatmul.bf16.gmra.mxu0 %v3966
        %v3992 = vpop.f32.mrf.mxu0
        %v3993 = vadd.f32 0.0, %v3992
        %v3994 = vpop.f32.mrf.mxu0
        %v3995 = vadd.f32 0.0, %v3994
        %3996 = vdwg.mxu0
        %v3997 = vadd.f32 %v3906, %v3978
        %v3998 = vadd.f32 %v3907, %v3980
        %v3999 = vadd.f32 %v3908, %v3983
        %v4000 = vadd.f32 %v3909, %v3985
        %v4001 = vadd.f32 %v3910, %v3988
        %v4002 = vadd.f32 %v3911, %v3990
        %v4003 = vadd.f32 %v3912, %v3993
        %v4004 = vadd.f32 %v3913, %v3995
        %s4005 = scalar_lea.vmem %s2, 176
        %v4006 = vld [vmem:[%s4005] sm:$0xf]
        %v4007 = vld [vmem:[%s4005 + $0x4] sm:$0xf]
        %v4010 = vunpack.c.l.b16 %v4006
        %v4011 = vunpack.c.l.b16 %v4007
        %v4012 = vpack.c.b16 %v4011, %v4010
        %v4015 = vsel %vm1890, %v3653, 0
        %v4018 = vsel %vm1890, %v3654, 0
        %v4021 = vsel %vm1890, %v3655, 0
        %v4024 = vsel %vm1890, %v3656, 0
        %4026 = vmatpush.bf16.msra.mxu0 0
        %4027 = vmatpush.bf16.msra.mxu0 0
        %4028 = vmatpush.bf16.msra.mxu0 0
        %4029 = vmatpush.bf16.msra.mxu0 0
        %4030 = vmatpush.bf16.msra.mxu0 0
        %4031 = vmatpush.bf16.msra.mxu0 0
        %4032 = vmatpush.bf16.msra.mxu0 0
        %4033 = vmatpush.bf16.msra.mxu0 %v4012
        %4034 = vmatmul.bf16.gmra.mxu0 %v4015
        %v4035 = vpop.f32.mrf.mxu0
        %v4036 = vadd.f32 0.0, %v4035
        %v4037 = vpop.f32.mrf.mxu0
        %v4038 = vadd.f32 0.0, %v4037
        %4039 = vmatmul.bf16.gmra.mxu0 %v4018
        %v4040 = vpop.f32.mrf.mxu0
        %v4041 = vadd.f32 0.0, %v4040
        %v4042 = vpop.f32.mrf.mxu0
        %v4043 = vadd.f32 0.0, %v4042
        %4044 = vmatmul.bf16.gmra.mxu0 %v4021
        %v4045 = vpop.f32.mrf.mxu0
        %v4046 = vadd.f32 0.0, %v4045
        %v4047 = vpop.f32.mrf.mxu0
        %v4048 = vadd.f32 0.0, %v4047
        %4049 = vmatmul.bf16.gmra.mxu0 %v4024
        %v4050 = vpop.f32.mrf.mxu0
        %v4051 = vadd.f32 0.0, %v4050
        %v4052 = vpop.f32.mrf.mxu0
        %v4053 = vadd.f32 0.0, %v4052
        %4054 = vdwg.mxu0
        %v4055 = vadd.f32 %v3997, %v4036
        %v4056 = vadd.f32 %v3998, %v4038
        %v4057 = vadd.f32 %v3999, %v4041
        %v4058 = vadd.f32 %v4000, %v4043
        %v4059 = vadd.f32 %v4001, %v4046
        %v4060 = vadd.f32 %v4002, %v4048
        %v4061 = vadd.f32 %v4003, %v4051
        %v4062 = vadd.f32 %v4004, %v4053
        %4063 = vmatpush.bf16.msra.mxu0 0
        %4064 = vmatpush.bf16.msra.mxu0 0
        %4065 = vmatpush.bf16.msra.mxu0 0
        %4066 = vmatpush.bf16.msra.mxu0 0
        %4067 = vmatpush.bf16.msra.mxu0 %v3656
        %4068 = vmatpush.bf16.msra.mxu0 %v3655
        %4069 = vmatpush.bf16.msra.mxu0 %v3654
        %4070 = vmatpush.bf16.msra.mxu0 %v3653
        %4071 = vmatmul.bf16.gmra.mxu0 %v2331
        %v4072 = vpop.f32.mrf.mxu0
        %v4073 = vadd.f32 0.0, %v4072
        %v4074 = vpop.f32.mrf.mxu0
        %v4075 = vadd.f32 0.0, %v4074
        %4076 = vmatmul.bf16.gmra.mxu0 %v2334
        %v4077 = vpop.f32.mrf.mxu0
        %v4078 = vadd.f32 0.0, %v4077
        %v4079 = vpop.f32.mrf.mxu0
        %v4080 = vadd.f32 0.0, %v4079
        %4081 = vmatmul.bf16.gmra.mxu0 %v2337
        %v4082 = vpop.f32.mrf.mxu0
        %v4083 = vadd.f32 0.0, %v4082
        %v4084 = vpop.f32.mrf.mxu0
        %v4085 = vadd.f32 0.0, %v4084
        %4086 = vmatmul.bf16.gmra.mxu0 %v2340
        %v4087 = vpop.f32.mrf.mxu0
        %v4088 = vadd.f32 0.0, %v4087
        %v4089 = vpop.f32.mrf.mxu0
        %v4090 = vadd.f32 0.0, %v4089
        %4091 = vdwg.mxu0
        %v4092 = vpack.c.bf16 %v4075, %v4073
        %v4093 = vpack.c.bf16 %v4080, %v4078
        %v4094 = vpack.c.bf16 %v4085, %v4083
        %v4095 = vpack.c.bf16 %v4090, %v4088
        %s4096 = scalar_lea.vmem %s2, 184
        %v4097 = vld [vmem:[%s4096] sm:$0xf]
        %v4098 = vld [vmem:[%s4096 + $0x4] sm:$0xf]
        %v4101 = vunpack.c.l.b16 %v4097
        %v4102 = vunpack.c.l.b16 %v4098
        %v4103 = vpack.c.b16 %v4102, %v4101
        %v4106 = vsel %vm1890, %v4092, 0
        %v4109 = vsel %vm1890, %v4093, 0
        %v4112 = vsel %vm1890, %v4094, 0
        %v4115 = vsel %vm1890, %v4095, 0
        %4117 = vmatpush.bf16.msra.mxu0 0
        %4118 = vmatpush.bf16.msra.mxu0 0
        %4119 = vmatpush.bf16.msra.mxu0 0
        %4120 = vmatpush.bf16.msra.mxu0 0
        %4121 = vmatpush.bf16.msra.mxu0 0
        %4122 = vmatpush.bf16.msra.mxu0 0
        %4123 = vmatpush.bf16.msra.mxu0 0
        %4124 = vmatpush.bf16.msra.mxu0 %v4103
        %4125 = vmatmul.bf16.gmra.mxu0 %v4106
        %v4126 = vpop.f32.mrf.mxu0
        %v4127 = vadd.f32 0.0, %v4126
        %v4128 = vpop.f32.mrf.mxu0
        %v4129 = vadd.f32 0.0, %v4128
        %4130 = vmatmul.bf16.gmra.mxu0 %v4109
        %v4131 = vpop.f32.mrf.mxu0
        %v4132 = vadd.f32 0.0, %v4131
        %v4133 = vpop.f32.mrf.mxu0
        %v4134 = vadd.f32 0.0, %v4133
        %4135 = vmatmul.bf16.gmra.mxu0 %v4112
        %v4136 = vpop.f32.mrf.mxu0
        %v4137 = vadd.f32 0.0, %v4136
        %v4138 = vpop.f32.mrf.mxu0
        %v4139 = vadd.f32 0.0, %v4138
        %4140 = vmatmul.bf16.gmra.mxu0 %v4115
        %v4141 = vpop.f32.mrf.mxu0
        %v4142 = vadd.f32 0.0, %v4141
        %v4143 = vpop.f32.mrf.mxu0
        %v4144 = vadd.f32 0.0, %v4143
        %4145 = vdwg.mxu0
        %v4146 = vadd.f32 %v4055, %v4127
        %v4147 = vadd.f32 %v4056, %v4129
        %v4148 = vadd.f32 %v4057, %v4132
        %v4149 = vadd.f32 %v4058, %v4134
        %v4150 = vadd.f32 %v4059, %v4137
        %v4151 = vadd.f32 %v4060, %v4139
        %v4152 = vadd.f32 %v4061, %v4142
        %v4153 = vadd.f32 %v4062, %v4144
        %4154 = vmatpush.bf16.msra.mxu0 0
        %4155 = vmatpush.bf16.msra.mxu0 0
        %4156 = vmatpush.bf16.msra.mxu0 0
        %4157 = vmatpush.bf16.msra.mxu0 0
        %4158 = vmatpush.bf16.msra.mxu0 %v3656
        %4159 = vmatpush.bf16.msra.mxu0 %v3655
        %4160 = vmatpush.bf16.msra.mxu0 %v3654
        %4161 = vmatpush.bf16.msra.mxu0 %v3653
        %4162 = vmatmul.bf16.gmra.mxu0 %v2463
        %v4163 = vpop.f32.mrf.mxu0
        %v4164 = vadd.f32 0.0, %v4163
        %v4165 = vpop.f32.mrf.mxu0
        %v4166 = vadd.f32 0.0, %v4165
        %4167 = vmatmul.bf16.gmra.mxu0 %v2466
        %v4168 = vpop.f32.mrf.mxu0
        %v4169 = vadd.f32 0.0, %v4168
        %v4170 = vpop.f32.mrf.mxu0
        %v4171 = vadd.f32 0.0, %v4170
        %4172 = vmatmul.bf16.gmra.mxu0 %v2469
        %v4173 = vpop.f32.mrf.mxu0
        %v4174 = vadd.f32 0.0, %v4173
        %v4175 = vpop.f32.mrf.mxu0
        %v4176 = vadd.f32 0.0, %v4175
        %4177 = vmatmul.bf16.gmra.mxu0 %v2472
        %v4178 = vpop.f32.mrf.mxu0
        %v4179 = vadd.f32 0.0, %v4178
        %v4180 = vpop.f32.mrf.mxu0
        %v4181 = vadd.f32 0.0, %v4180
        %4182 = vdwg.mxu0
        %v4183 = vpack.c.bf16 %v4166, %v4164
        %v4184 = vpack.c.bf16 %v4171, %v4169
        %v4185 = vpack.c.bf16 %v4176, %v4174
        %v4186 = vpack.c.bf16 %v4181, %v4179
        %s4187 = scalar_lea.vmem %s2, 192
        %v4188 = vld [vmem:[%s4187] sm:$0xf]
        %v4189 = vld [vmem:[%s4187 + $0x4] sm:$0xf]
        %v4192 = vunpack.c.l.b16 %v4188
        %v4193 = vunpack.c.l.b16 %v4189
        %v4194 = vpack.c.b16 %v4193, %v4192
        %v4197 = vsel %vm1890, %v4183, 0
        %v4200 = vsel %vm1890, %v4184, 0
        %v4203 = vsel %vm1890, %v4185, 0
        %v4206 = vsel %vm1890, %v4186, 0
        %4208 = vmatpush.bf16.msra.mxu0 0
        %4209 = vmatpush.bf16.msra.mxu0 0
        %4210 = vmatpush.bf16.msra.mxu0 0
        %4211 = vmatpush.bf16.msra.mxu0 0
        %4212 = vmatpush.bf16.msra.mxu0 0
        %4213 = vmatpush.bf16.msra.mxu0 0
        %4214 = vmatpush.bf16.msra.mxu0 0
        %4215 = vmatpush.bf16.msra.mxu0 %v4194
        %4216 = vmatmul.bf16.gmra.mxu0 %v4197
        %v4217 = vpop.f32.mrf.mxu0
        %v4218 = vadd.f32 0.0, %v4217
        %v4219 = vpop.f32.mrf.mxu0
        %v4220 = vadd.f32 0.0, %v4219
        %4221 = vmatmul.bf16.gmra.mxu0 %v4200
        %v4222 = vpop.f32.mrf.mxu0
        %v4223 = vadd.f32 0.0, %v4222
        %v4224 = vpop.f32.mrf.mxu0
        %v4225 = vadd.f32 0.0, %v4224
        %4226 = vmatmul.bf16.gmra.mxu0 %v4203
        %v4227 = vpop.f32.mrf.mxu0
        %v4228 = vadd.f32 0.0, %v4227
        %v4229 = vpop.f32.mrf.mxu0
        %v4230 = vadd.f32 0.0, %v4229
        %4231 = vmatmul.bf16.gmra.mxu0 %v4206
        %v4232 = vpop.f32.mrf.mxu0
        %v4233 = vadd.f32 0.0, %v4232
        %v4234 = vpop.f32.mrf.mxu0
        %v4235 = vadd.f32 0.0, %v4234
        %4236 = vdwg.mxu0
        %v4237 = vadd.f32 %v4146, %v4218
        %v4238 = vadd.f32 %v4147, %v4220
        %v4239 = vadd.f32 %v4148, %v4223
        %v4240 = vadd.f32 %v4149, %v4225
        %v4241 = vadd.f32 %v4150, %v4228
        %v4242 = vadd.f32 %v4151, %v4230
        %v4243 = vadd.f32 %v4152, %v4233
        %v4244 = vadd.f32 %v4153, %v4235
        %4245 = vmatpush.bf16.msra.mxu0 0
        %4246 = vmatpush.bf16.msra.mxu0 0
        %4247 = vmatpush.bf16.msra.mxu0 0
        %4248 = vmatpush.bf16.msra.mxu0 0
        %4249 = vmatpush.bf16.msra.mxu0 %v3656
        %4250 = vmatpush.bf16.msra.mxu0 %v3655
        %4251 = vmatpush.bf16.msra.mxu0 %v3654
        %4252 = vmatpush.bf16.msra.mxu0 %v3653
        %4253 = vmatmul.bf16.gmra.mxu0 %v2595
        %v4254 = vpop.f32.mrf.mxu0
        %v4255 = vadd.f32 0.0, %v4254
        %v4256 = vpop.f32.mrf.mxu0
        %v4257 = vadd.f32 0.0, %v4256
        %4258 = vmatmul.bf16.gmra.mxu0 %v2598
        %v4259 = vpop.f32.mrf.mxu0
        %v4260 = vadd.f32 0.0, %v4259
        %v4261 = vpop.f32.mrf.mxu0
        %v4262 = vadd.f32 0.0, %v4261
        %4263 = vmatmul.bf16.gmra.mxu0 %v2601
        %v4264 = vpop.f32.mrf.mxu0
        %v4265 = vadd.f32 0.0, %v4264
        %v4266 = vpop.f32.mrf.mxu0
        %v4267 = vadd.f32 0.0, %v4266
        %4268 = vmatmul.bf16.gmra.mxu0 %v2604
        %v4269 = vpop.f32.mrf.mxu0
        %v4270 = vadd.f32 0.0, %v4269
        %v4271 = vpop.f32.mrf.mxu0
        %v4272 = vadd.f32 0.0, %v4271
        %4273 = vdwg.mxu0
        %v4274 = vpack.c.bf16 %v4257, %v4255
        %v4275 = vpack.c.bf16 %v4262, %v4260
        %v4276 = vpack.c.bf16 %v4267, %v4265
        %v4277 = vpack.c.bf16 %v4272, %v4270
        %s4278 = scalar_lea.vmem %s2, 200
        %v4279 = vld [vmem:[%s4278] sm:$0xf]
        %v4280 = vld [vmem:[%s4278 + $0x4] sm:$0xf]
        %v4283 = vunpack.c.l.b16 %v4279
        %v4284 = vunpack.c.l.b16 %v4280
        %v4285 = vpack.c.b16 %v4284, %v4283
        %v4288 = vsel %vm1890, %v4274, 0
        %v4291 = vsel %vm1890, %v4275, 0
        %v4294 = vsel %vm1890, %v4276, 0
        %v4297 = vsel %vm1890, %v4277, 0
        %4299 = vmatpush.bf16.msra.mxu0 0
        %4300 = vmatpush.bf16.msra.mxu0 0
        %4301 = vmatpush.bf16.msra.mxu0 0
        %4302 = vmatpush.bf16.msra.mxu0 0
        %4303 = vmatpush.bf16.msra.mxu0 0
        %4304 = vmatpush.bf16.msra.mxu0 0
        %4305 = vmatpush.bf16.msra.mxu0 0
        %4306 = vmatpush.bf16.msra.mxu0 %v4285
        %4307 = vmatmul.bf16.gmra.mxu0 %v4288
        %v4308 = vpop.f32.mrf.mxu0
        %v4309 = vadd.f32 0.0, %v4308
        %v4310 = vpop.f32.mrf.mxu0
        %v4311 = vadd.f32 0.0, %v4310
        %4312 = vmatmul.bf16.gmra.mxu0 %v4291
        %v4313 = vpop.f32.mrf.mxu0
        %v4314 = vadd.f32 0.0, %v4313
        %v4315 = vpop.f32.mrf.mxu0
        %v4316 = vadd.f32 0.0, %v4315
        %4317 = vmatmul.bf16.gmra.mxu0 %v4294
        %v4318 = vpop.f32.mrf.mxu0
        %v4319 = vadd.f32 0.0, %v4318
        %v4320 = vpop.f32.mrf.mxu0
        %v4321 = vadd.f32 0.0, %v4320
        %4322 = vmatmul.bf16.gmra.mxu0 %v4297
        %v4323 = vpop.f32.mrf.mxu0
        %v4324 = vadd.f32 0.0, %v4323
        %v4325 = vpop.f32.mrf.mxu0
        %v4326 = vadd.f32 0.0, %v4325
        %4327 = vdwg.mxu0
        %v4328 = vadd.f32 %v4237, %v4309
        %v4329 = vadd.f32 %v4238, %v4311
        %v4330 = vadd.f32 %v4239, %v4314
        %v4331 = vadd.f32 %v4240, %v4316
        %v4332 = vadd.f32 %v4241, %v4319
        %v4333 = vadd.f32 %v4242, %v4321
        %v4334 = vadd.f32 %v4243, %v4324
        %v4335 = vadd.f32 %v4244, %v4326
        %4336 = vmatpush.bf16.msra.mxu0 0
        %4337 = vmatpush.bf16.msra.mxu0 0
        %4338 = vmatpush.bf16.msra.mxu0 0
        %4339 = vmatpush.bf16.msra.mxu0 0
        %4340 = vmatpush.bf16.msra.mxu0 %v3656
        %4341 = vmatpush.bf16.msra.mxu0 %v3655
        %4342 = vmatpush.bf16.msra.mxu0 %v3654
        %4343 = vmatpush.bf16.msra.mxu0 %v3653
        %4344 = vmatmul.bf16.gmra.mxu0 %v2727
        %v4345 = vpop.f32.mrf.mxu0
        %v4346 = vadd.f32 0.0, %v4345
        %v4347 = vpop.f32.mrf.mxu0
        %v4348 = vadd.f32 0.0, %v4347
        %4349 = vmatmul.bf16.gmra.mxu0 %v2730
        %v4350 = vpop.f32.mrf.mxu0
        %v4351 = vadd.f32 0.0, %v4350
        %v4352 = vpop.f32.mrf.mxu0
        %v4353 = vadd.f32 0.0, %v4352
        %4354 = vmatmul.bf16.gmra.mxu0 %v2733
        %v4355 = vpop.f32.mrf.mxu0
        %v4356 = vadd.f32 0.0, %v4355
        %v4357 = vpop.f32.mrf.mxu0
        %v4358 = vadd.f32 0.0, %v4357
        %4359 = vmatmul.bf16.gmra.mxu0 %v2736
        %v4360 = vpop.f32.mrf.mxu0
        %v4361 = vadd.f32 0.0, %v4360
        %v4362 = vpop.f32.mrf.mxu0
        %v4363 = vadd.f32 0.0, %v4362
        %4364 = vdwg.mxu0
        %v4365 = vpack.c.bf16 %v4348, %v4346
        %v4366 = vpack.c.bf16 %v4353, %v4351
        %v4367 = vpack.c.bf16 %v4358, %v4356
        %v4368 = vpack.c.bf16 %v4363, %v4361
        %s4369 = scalar_lea.vmem %s2, 208
        %v4370 = vld [vmem:[%s4369] sm:$0xf]
        %v4371 = vld [vmem:[%s4369 + $0x4] sm:$0xf]
        %v4374 = vunpack.c.l.b16 %v4370
        %v4375 = vunpack.c.l.b16 %v4371
        %v4376 = vpack.c.b16 %v4375, %v4374
        %v4379 = vsel %vm1890, %v4365, 0
        %v4382 = vsel %vm1890, %v4366, 0
        %v4385 = vsel %vm1890, %v4367, 0
        %v4388 = vsel %vm1890, %v4368, 0
        %4390 = vmatpush.bf16.msra.mxu0 0
        %4391 = vmatpush.bf16.msra.mxu0 0
        %4392 = vmatpush.bf16.msra.mxu0 0
        %4393 = vmatpush.bf16.msra.mxu0 0
        %4394 = vmatpush.bf16.msra.mxu0 0
        %4395 = vmatpush.bf16.msra.mxu0 0
        %4396 = vmatpush.bf16.msra.mxu0 0
        %4397 = vmatpush.bf16.msra.mxu0 %v4376
        %4398 = vmatmul.bf16.gmra.mxu0 %v4379
        %v4399 = vpop.f32.mrf.mxu0
        %v4400 = vadd.f32 0.0, %v4399
        %v4401 = vpop.f32.mrf.mxu0
        %v4402 = vadd.f32 0.0, %v4401
        %4403 = vmatmul.bf16.gmra.mxu0 %v4382
        %v4404 = vpop.f32.mrf.mxu0
        %v4405 = vadd.f32 0.0, %v4404
        %v4406 = vpop.f32.mrf.mxu0
        %v4407 = vadd.f32 0.0, %v4406
        %4408 = vmatmul.bf16.gmra.mxu0 %v4385
        %v4409 = vpop.f32.mrf.mxu0
        %v4410 = vadd.f32 0.0, %v4409
        %v4411 = vpop.f32.mrf.mxu0
        %v4412 = vadd.f32 0.0, %v4411
        %4413 = vmatmul.bf16.gmra.mxu0 %v4388
        %v4414 = vpop.f32.mrf.mxu0
        %v4415 = vadd.f32 0.0, %v4414
        %v4416 = vpop.f32.mrf.mxu0
        %v4417 = vadd.f32 0.0, %v4416
        %4418 = vdwg.mxu0
        %v4419 = vadd.f32 %v4328, %v4400
        %v4420 = vadd.f32 %v4329, %v4402
        %v4421 = vadd.f32 %v4330, %v4405
        %v4422 = vadd.f32 %v4331, %v4407
        %v4423 = vadd.f32 %v4332, %v4410
        %v4424 = vadd.f32 %v4333, %v4412
        %v4425 = vadd.f32 %v4334, %v4415
        %v4426 = vadd.f32 %v4335, %v4417
        %s4427 = scalar_lea.vmem %s3, 3
        %v4428 = vld [vmem:[%s4427] sm:$0x1]
        %v4430 = vperm.slane %v4428, 0
        %v4432 = vadd.f32 %v4419, %v4430
        %v4433 = vadd.f32 %v4420, %v4430
        %v4434 = vadd.f32 %v4421, %v4430
        %v4435 = vadd.f32 %v4422, %v4430
        %v4436 = vadd.f32 %v4423, %v4430
        %v4437 = vadd.f32 %v4424, %v4430
        %v4438 = vadd.f32 %v4425, %v4430
        %v4439 = vadd.f32 %v4426, %v4430
        %v4440 = vmax.f32 %v4432, 0.0
        %v4441 = vmax.f32 %v4433, 0.0
        %v4442 = vmax.f32 %v4434, 0.0
        %v4443 = vmax.f32 %v4435, 0.0
        %v4444 = vmax.f32 %v4436, 0.0
        %v4445 = vmax.f32 %v4437, 0.0
        %v4446 = vmax.f32 %v4438, 0.0
        %v4447 = vmax.f32 %v4439, 0.0
        %v4448 = vpack.c.bf16 %v4441, %v4440
        %v4449 = vpack.c.bf16 %v4443, %v4442
        %v4450 = vpack.c.bf16 %v4445, %v4444
        %v4451 = vpack.c.bf16 %v4447, %v4446
        %4452 = vmatpush.bf16.msra.mxu0 0
        %4453 = vmatpush.bf16.msra.mxu0 0
        %4454 = vmatpush.bf16.msra.mxu0 0
        %4455 = vmatpush.bf16.msra.mxu0 0
        %4456 = vmatpush.bf16.msra.mxu0 %v4451
        %4457 = vmatpush.bf16.msra.mxu0 %v4450
        %4458 = vmatpush.bf16.msra.mxu0 %v4449
        %4459 = vmatpush.bf16.msra.mxu0 %v4448
        %4460 = vmatmul.bf16.gmra.mxu0 %v1761
        %v4461 = vpop.f32.mrf.mxu0
        %v4462 = vadd.f32 0.0, %v4461
        %v4463 = vpop.f32.mrf.mxu0
        %v4464 = vadd.f32 0.0, %v4463
        %4465 = vmatmul.bf16.gmra.mxu0 %v1764
        %v4466 = vpop.f32.mrf.mxu0
        %v4467 = vadd.f32 0.0, %v4466
        %v4468 = vpop.f32.mrf.mxu0
        %v4469 = vadd.f32 0.0, %v4468
        %4470 = vmatmul.bf16.gmra.mxu0 %v1767
        %v4471 = vpop.f32.mrf.mxu0
        %v4472 = vadd.f32 0.0, %v4471
        %v4473 = vpop.f32.mrf.mxu0
        %v4474 = vadd.f32 0.0, %v4473
        %4475 = vmatmul.bf16.gmra.mxu0 %v1770
        %v4476 = vpop.f32.mrf.mxu0
        %v4477 = vadd.f32 0.0, %v4476
        %v4478 = vpop.f32.mrf.mxu0
        %v4479 = vadd.f32 0.0, %v4478
        %4480 = vdwg.mxu0
        %v4481 = vpack.c.bf16 %v4464, %v4462
        %v4482 = vpack.c.bf16 %v4469, %v4467
        %v4483 = vpack.c.bf16 %v4474, %v4472
        %v4484 = vpack.c.bf16 %v4479, %v4477
        %s4485 = scalar_lea.vmem %s2, 216
        %v4486 = vld [vmem:[%s4485] sm:$0xf]
        %v4487 = vld [vmem:[%s4485 + $0x4] sm:$0xf]
        %4488 = vmatpush.bf16.msra.mxu0 0
        %4489 = vmatpush.bf16.msra.mxu0 0
        %4490 = vmatpush.bf16.msra.mxu0 0
        %4491 = vmatpush.bf16.msra.mxu0 0
        %4492 = vmatpush.bf16.msra.mxu0 %v4451
        %4493 = vmatpush.bf16.msra.mxu0 %v4450
        %4494 = vmatpush.bf16.msra.mxu0 %v4449
        %4495 = vmatpush.bf16.msra.mxu0 %v4448
        %4496 = vmatmul.bf16.gmra.mxu0 %v1837
        %v4497 = vpop.f32.mrf.mxu0
        %v4498 = vadd.f32 0.0, %v4497
        %v4499 = vpop.f32.mrf.mxu0
        %v4500 = vadd.f32 0.0, %v4499
        %4501 = vmatmul.bf16.gmra.mxu0 %v1840
        %v4502 = vpop.f32.mrf.mxu0
        %v4503 = vadd.f32 0.0, %v4502
        %v4504 = vpop.f32.mrf.mxu0
        %v4505 = vadd.f32 0.0, %v4504
        %4506 = vmatmul.bf16.gmra.mxu0 %v1843
        %v4507 = vpop.f32.mrf.mxu0
        %v4508 = vadd.f32 0.0, %v4507
        %v4509 = vpop.f32.mrf.mxu0
        %v4510 = vadd.f32 0.0, %v4509
        %4511 = vmatmul.bf16.gmra.mxu0 %v1846
        %v4512 = vpop.f32.mrf.mxu0
        %v4513 = vadd.f32 0.0, %v4512
        %v4514 = vpop.f32.mrf.mxu0
        %v4515 = vadd.f32 0.0, %v4514
        %4516 = vdwg.mxu0
        %v4517 = vpack.c.bf16 %v4500, %v4498
        %v4518 = vpack.c.bf16 %v4505, %v4503
        %v4519 = vpack.c.bf16 %v4510, %v4508
        %v4520 = vpack.c.bf16 %v4515, %v4513
        %s4521 = scalar_lea.vmem %s2, 224
        %v4522 = vld [vmem:[%s4521] sm:$0xf]
        %v4523 = vld [vmem:[%s4521 + $0x4] sm:$0xf]
        %v4526 = vunpack.c.l.b16 %v4522
        %v4527 = vunpack.c.l.b16 %v4523
        %v4528 = vpack.c.b16 %v4527, %v4526
        %v4531 = vsel %vm1890, %v4517, 0
        %v4534 = vsel %vm1890, %v4518, 0
        %v4537 = vsel %vm1890, %v4519, 0
        %v4540 = vsel %vm1890, %v4520, 0
        %4542 = vmatpush.bf16.msra.mxu0 0
        %4543 = vmatpush.bf16.msra.mxu0 0
        %4544 = vmatpush.bf16.msra.mxu0 0
        %4545 = vmatpush.bf16.msra.mxu0 0
        %4546 = vmatpush.bf16.msra.mxu0 0
        %4547 = vmatpush.bf16.msra.mxu0 0
        %4548 = vmatpush.bf16.msra.mxu0 0
        %4549 = vmatpush.bf16.msra.mxu0 %v4528
        %4550 = vmatmul.bf16.gmra.mxu0 %v4531
        %v4551 = vpop.f32.mrf.mxu0
        %v4552 = vadd.f32 0.0, %v4551
        %v4553 = vpop.f32.mrf.mxu0
        %v4554 = vadd.f32 0.0, %v4553
        %4555 = vmatmul.bf16.gmra.mxu0 %v4534
        %v4556 = vpop.f32.mrf.mxu0
        %v4557 = vadd.f32 0.0, %v4556
        %v4558 = vpop.f32.mrf.mxu0
        %v4559 = vadd.f32 0.0, %v4558
        %4560 = vmatmul.bf16.gmra.mxu0 %v4537
        %v4561 = vpop.f32.mrf.mxu0
        %v4562 = vadd.f32 0.0, %v4561
        %v4563 = vpop.f32.mrf.mxu0
        %v4564 = vadd.f32 0.0, %v4563
        %4565 = vmatmul.bf16.gmra.mxu0 %v4540
        %v4566 = vpop.f32.mrf.mxu0
        %v4567 = vadd.f32 0.0, %v4566
        %v4568 = vpop.f32.mrf.mxu0
        %v4569 = vadd.f32 0.0, %v4568
        %4570 = vdwg.mxu0
        %v4573 = vunpack.c.l.b16 %v4486
        %v4574 = vunpack.c.l.b16 %v4487
        %v4575 = vpack.c.b16 %v4574, %v4573
        %v4578 = vsel %vm1890, %v4481, 0
        %v4581 = vsel %vm1890, %v4482, 0
        %v4584 = vsel %vm1890, %v4483, 0
        %v4587 = vsel %vm1890, %v4484, 0
        %4589 = vmatpush.bf16.msra.mxu0 0
        %4590 = vmatpush.bf16.msra.mxu0 0
        %4591 = vmatpush.bf16.msra.mxu0 0
        %4592 = vmatpush.bf16.msra.mxu0 0
        %4593 = vmatpush.bf16.msra.mxu0 0
        %4594 = vmatpush.bf16.msra.mxu0 0
        %4595 = vmatpush.bf16.msra.mxu0 0
        %4596 = vmatpush.bf16.msra.mxu0 %v4575
        %4597 = vmatmul.bf16.gmra.mxu0 %v4578
        %v4598 = vpop.f32.mrf.mxu0
        %v4599 = vadd.f32 %v4552, %v4598
        %v4600 = vpop.f32.mrf.mxu0
        %v4601 = vadd.f32 %v4554, %v4600
        %4602 = vmatmul.bf16.gmra.mxu0 %v4581
        %v4603 = vpop.f32.mrf.mxu0
        %v4604 = vadd.f32 %v4557, %v4603
        %v4605 = vpop.f32.mrf.mxu0
        %v4606 = vadd.f32 %v4559, %v4605
        %4607 = vmatmul.bf16.gmra.mxu0 %v4584
        %v4608 = vpop.f32.mrf.mxu0
        %v4609 = vadd.f32 %v4562, %v4608
        %v4610 = vpop.f32.mrf.mxu0
        %v4611 = vadd.f32 %v4564, %v4610
        %4612 = vmatmul.bf16.gmra.mxu0 %v4587
        %v4613 = vpop.f32.mrf.mxu0
        %v4614 = vadd.f32 %v4567, %v4613
        %v4615 = vpop.f32.mrf.mxu0
        %v4616 = vadd.f32 %v4569, %v4615
        %4617 = vdwg.mxu0
        %4618 = vmatpush.bf16.msra.mxu0 0
        %4619 = vmatpush.bf16.msra.mxu0 0
        %4620 = vmatpush.bf16.msra.mxu0 0
        %4621 = vmatpush.bf16.msra.mxu0 0
        %4622 = vmatpush.bf16.msra.mxu0 %v4451
        %4623 = vmatpush.bf16.msra.mxu0 %v4450
        %4624 = vmatpush.bf16.msra.mxu0 %v4449
        %4625 = vmatpush.bf16.msra.mxu0 %v4448
        %4626 = vmatmul.bf16.gmra.mxu0 %v2009
        %v4627 = vpop.f32.mrf.mxu0
        %v4628 = vadd.f32 0.0, %v4627
        %v4629 = vpop.f32.mrf.mxu0
        %v4630 = vadd.f32 0.0, %v4629
        %4631 = vmatmul.bf16.gmra.mxu0 %v2012
        %v4632 = vpop.f32.mrf.mxu0
        %v4633 = vadd.f32 0.0, %v4632
        %v4634 = vpop.f32.mrf.mxu0
        %v4635 = vadd.f32 0.0, %v4634
        %4636 = vmatmul.bf16.gmra.mxu0 %v2015
        %v4637 = vpop.f32.mrf.mxu0
        %v4638 = vadd.f32 0.0, %v4637
        %v4639 = vpop.f32.mrf.mxu0
        %v4640 = vadd.f32 0.0, %v4639
        %4641 = vmatmul.bf16.gmra.mxu0 %v2018
        %v4642 = vpop.f32.mrf.mxu0
        %v4643 = vadd.f32 0.0, %v4642
        %v4644 = vpop.f32.mrf.mxu0
        %v4645 = vadd.f32 0.0, %v4644
        %4646 = vdwg.mxu0
        %v4647 = vpack.c.bf16 %v4630, %v4628
        %v4648 = vpack.c.bf16 %v4635, %v4633
        %v4649 = vpack.c.bf16 %v4640, %v4638
        %v4650 = vpack.c.bf16 %v4645, %v4643
        %s4651 = scalar_lea.vmem %s2, 232
        %v4652 = vld [vmem:[%s4651] sm:$0xf]
        %v4653 = vld [vmem:[%s4651 + $0x4] sm:$0xf]
        %v4656 = vunpack.c.l.b16 %v4652
        %v4657 = vunpack.c.l.b16 %v4653
        %v4658 = vpack.c.b16 %v4657, %v4656
        %v4661 = vsel %vm1890, %v4647, 0
        %v4664 = vsel %vm1890, %v4648, 0
        %v4667 = vsel %vm1890, %v4649, 0
        %v4670 = vsel %vm1890, %v4650, 0
        %4672 = vmatpush.bf16.msra.mxu0 0
        %4673 = vmatpush.bf16.msra.mxu0 0
        %4674 = vmatpush.bf16.msra.mxu0 0
        %4675 = vmatpush.bf16.msra.mxu0 0
        %4676 = vmatpush.bf16.msra.mxu0 0
        %4677 = vmatpush.bf16.msra.mxu0 0
        %4678 = vmatpush.bf16.msra.mxu0 0
        %4679 = vmatpush.bf16.msra.mxu0 %v4658
        %4680 = vmatmul.bf16.gmra.mxu0 %v4661
        %v4681 = vpop.f32.mrf.mxu0
        %v4682 = vadd.f32 0.0, %v4681
        %v4683 = vpop.f32.mrf.mxu0
        %v4684 = vadd.f32 0.0, %v4683
        %4685 = vmatmul.bf16.gmra.mxu0 %v4664
        %v4686 = vpop.f32.mrf.mxu0
        %v4687 = vadd.f32 0.0, %v4686
        %v4688 = vpop.f32.mrf.mxu0
        %v4689 = vadd.f32 0.0, %v4688
        %4690 = vmatmul.bf16.gmra.mxu0 %v4667
        %v4691 = vpop.f32.mrf.mxu0
        %v4692 = vadd.f32 0.0, %v4691
        %v4693 = vpop.f32.mrf.mxu0
        %v4694 = vadd.f32 0.0, %v4693
        %4695 = vmatmul.bf16.gmra.mxu0 %v4670
        %v4696 = vpop.f32.mrf.mxu0
        %v4697 = vadd.f32 0.0, %v4696
        %v4698 = vpop.f32.mrf.mxu0
        %v4699 = vadd.f32 0.0, %v4698
        %4700 = vdwg.mxu0
        %v4701 = vadd.f32 %v4599, %v4682
        %v4702 = vadd.f32 %v4601, %v4684
        %v4703 = vadd.f32 %v4604, %v4687
        %v4704 = vadd.f32 %v4606, %v4689
        %v4705 = vadd.f32 %v4609, %v4692
        %v4706 = vadd.f32 %v4611, %v4694
        %v4707 = vadd.f32 %v4614, %v4697
        %v4708 = vadd.f32 %v4616, %v4699
        %4709 = vmatpush.bf16.msra.mxu0 0
        %4710 = vmatpush.bf16.msra.mxu0 0
        %4711 = vmatpush.bf16.msra.mxu0 0
        %4712 = vmatpush.bf16.msra.mxu0 0
        %4713 = vmatpush.bf16.msra.mxu0 %v4451
        %4714 = vmatpush.bf16.msra.mxu0 %v4450
        %4715 = vmatpush.bf16.msra.mxu0 %v4449
        %4716 = vmatpush.bf16.msra.mxu0 %v4448
        %4717 = vmatmul.bf16.gmra.mxu0 %v2141
        %v4718 = vpop.f32.mrf.mxu0
        %v4719 = vadd.f32 0.0, %v4718
        %v4720 = vpop.f32.mrf.mxu0
        %v4721 = vadd.f32 0.0, %v4720
        %4722 = vmatmul.bf16.gmra.mxu0 %v2144
        %v4723 = vpop.f32.mrf.mxu0
        %v4724 = vadd.f32 0.0, %v4723
        %v4725 = vpop.f32.mrf.mxu0
        %v4726 = vadd.f32 0.0, %v4725
        %4727 = vmatmul.bf16.gmra.mxu0 %v2147
        %v4728 = vpop.f32.mrf.mxu0
        %v4729 = vadd.f32 0.0, %v4728
        %v4730 = vpop.f32.mrf.mxu0
        %v4731 = vadd.f32 0.0, %v4730
        %4732 = vmatmul.bf16.gmra.mxu0 %v2150
        %v4733 = vpop.f32.mrf.mxu0
        %v4734 = vadd.f32 0.0, %v4733
        %v4735 = vpop.f32.mrf.mxu0
        %v4736 = vadd.f32 0.0, %v4735
        %4737 = vdwg.mxu0
        %v4738 = vpack.c.bf16 %v4721, %v4719
        %v4739 = vpack.c.bf16 %v4726, %v4724
        %v4740 = vpack.c.bf16 %v4731, %v4729
        %v4741 = vpack.c.bf16 %v4736, %v4734
        %s4742 = scalar_lea.vmem %s2, 240
        %v4743 = vld [vmem:[%s4742] sm:$0xf]
        %v4744 = vld [vmem:[%s4742 + $0x4] sm:$0xf]
        %v4747 = vunpack.c.l.b16 %v4743
        %v4748 = vunpack.c.l.b16 %v4744
        %v4749 = vpack.c.b16 %v4748, %v4747
        %v4752 = vsel %vm1890, %v4738, 0
        %v4755 = vsel %vm1890, %v4739, 0
        %v4758 = vsel %vm1890, %v4740, 0
        %v4761 = vsel %vm1890, %v4741, 0
        %4763 = vmatpush.bf16.msra.mxu0 0
        %4764 = vmatpush.bf16.msra.mxu0 0
        %4765 = vmatpush.bf16.msra.mxu0 0
        %4766 = vmatpush.bf16.msra.mxu0 0
        %4767 = vmatpush.bf16.msra.mxu0 0
        %4768 = vmatpush.bf16.msra.mxu0 0
        %4769 = vmatpush.bf16.msra.mxu0 0
        %4770 = vmatpush.bf16.msra.mxu0 %v4749
        %4771 = vmatmul.bf16.gmra.mxu0 %v4752
        %v4772 = vpop.f32.mrf.mxu0
        %v4773 = vadd.f32 0.0, %v4772
        %v4774 = vpop.f32.mrf.mxu0
        %v4775 = vadd.f32 0.0, %v4774
        %4776 = vmatmul.bf16.gmra.mxu0 %v4755
        %v4777 = vpop.f32.mrf.mxu0
        %v4778 = vadd.f32 0.0, %v4777
        %v4779 = vpop.f32.mrf.mxu0
        %v4780 = vadd.f32 0.0, %v4779
        %4781 = vmatmul.bf16.gmra.mxu0 %v4758
        %v4782 = vpop.f32.mrf.mxu0
        %v4783 = vadd.f32 0.0, %v4782
        %v4784 = vpop.f32.mrf.mxu0
        %v4785 = vadd.f32 0.0, %v4784
        %4786 = vmatmul.bf16.gmra.mxu0 %v4761
        %v4787 = vpop.f32.mrf.mxu0
        %v4788 = vadd.f32 0.0, %v4787
        %v4789 = vpop.f32.mrf.mxu0
        %v4790 = vadd.f32 0.0, %v4789
        %4791 = vdwg.mxu0
        %v4792 = vadd.f32 %v4701, %v4773
        %v4793 = vadd.f32 %v4702, %v4775
        %v4794 = vadd.f32 %v4703, %v4778
        %v4795 = vadd.f32 %v4704, %v4780
        %v4796 = vadd.f32 %v4705, %v4783
        %v4797 = vadd.f32 %v4706, %v4785
        %v4798 = vadd.f32 %v4707, %v4788
        %v4799 = vadd.f32 %v4708, %v4790
        %s4800 = scalar_lea.vmem %s2, 248
        %v4801 = vld [vmem:[%s4800] sm:$0xf]
        %v4802 = vld [vmem:[%s4800 + $0x4] sm:$0xf]
        %v4805 = vunpack.c.l.b16 %v4801
        %v4806 = vunpack.c.l.b16 %v4802
        %v4807 = vpack.c.b16 %v4806, %v4805
        %v4810 = vsel %vm1890, %v4448, 0
        %v4813 = vsel %vm1890, %v4449, 0
        %v4816 = vsel %vm1890, %v4450, 0
        %v4819 = vsel %vm1890, %v4451, 0
        %4821 = vmatpush.bf16.msra.mxu0 0
        %4822 = vmatpush.bf16.msra.mxu0 0
        %4823 = vmatpush.bf16.msra.mxu0 0
        %4824 = vmatpush.bf16.msra.mxu0 0
        %4825 = vmatpush.bf16.msra.mxu0 0
        %4826 = vmatpush.bf16.msra.mxu0 0
        %4827 = vmatpush.bf16.msra.mxu0 0
        %4828 = vmatpush.bf16.msra.mxu0 %v4807
        %4829 = vmatmul.bf16.gmra.mxu0 %v4810
        %v4830 = vpop.f32.mrf.mxu0
        %v4831 = vadd.f32 0.0, %v4830
        %v4832 = vpop.f32.mrf.mxu0
        %v4833 = vadd.f32 0.0, %v4832
        %4834 = vmatmul.bf16.gmra.mxu0 %v4813
        %v4835 = vpop.f32.mrf.mxu0
        %v4836 = vadd.f32 0.0, %v4835
        %v4837 = vpop.f32.mrf.mxu0
        %v4838 = vadd.f32 0.0, %v4837
        %4839 = vmatmul.bf16.gmra.mxu0 %v4816
        %v4840 = vpop.f32.mrf.mxu0
        %v4841 = vadd.f32 0.0, %v4840
        %v4842 = vpop.f32.mrf.mxu0
        %v4843 = vadd.f32 0.0, %v4842
        %4844 = vmatmul.bf16.gmra.mxu0 %v4819
        %v4845 = vpop.f32.mrf.mxu0
        %v4846 = vadd.f32 0.0, %v4845
        %v4847 = vpop.f32.mrf.mxu0
        %v4848 = vadd.f32 0.0, %v4847
        %4849 = vdwg.mxu0
        %v4850 = vadd.f32 %v4792, %v4831
        %v4851 = vadd.f32 %v4793, %v4833
        %v4852 = vadd.f32 %v4794, %v4836
        %v4853 = vadd.f32 %v4795, %v4838
        %v4854 = vadd.f32 %v4796, %v4841
        %v4855 = vadd.f32 %v4797, %v4843
        %v4856 = vadd.f32 %v4798, %v4846
        %v4857 = vadd.f32 %v4799, %v4848
        %4858 = vmatpush.bf16.msra.mxu0 0
        %4859 = vmatpush.bf16.msra.mxu0 0
        %4860 = vmatpush.bf16.msra.mxu0 0
        %4861 = vmatpush.bf16.msra.mxu0 0
        %4862 = vmatpush.bf16.msra.mxu0 %v4451
        %4863 = vmatpush.bf16.msra.mxu0 %v4450
        %4864 = vmatpush.bf16.msra.mxu0 %v4449
        %4865 = vmatpush.bf16.msra.mxu0 %v4448
        %4866 = vmatmul.bf16.gmra.mxu0 %v2331
        %v4867 = vpop.f32.mrf.mxu0
        %v4868 = vadd.f32 0.0, %v4867
        %v4869 = vpop.f32.mrf.mxu0
        %v4870 = vadd.f32 0.0, %v4869
        %4871 = vmatmul.bf16.gmra.mxu0 %v2334
        %v4872 = vpop.f32.mrf.mxu0
        %v4873 = vadd.f32 0.0, %v4872
        %v4874 = vpop.f32.mrf.mxu0
        %v4875 = vadd.f32 0.0, %v4874
        %4876 = vmatmul.bf16.gmra.mxu0 %v2337
        %v4877 = vpop.f32.mrf.mxu0
        %v4878 = vadd.f32 0.0, %v4877
        %v4879 = vpop.f32.mrf.mxu0
        %v4880 = vadd.f32 0.0, %v4879
        %4881 = vmatmul.bf16.gmra.mxu0 %v2340
        %v4882 = vpop.f32.mrf.mxu0
        %v4883 = vadd.f32 0.0, %v4882
        %v4884 = vpop.f32.mrf.mxu0
        %v4885 = vadd.f32 0.0, %v4884
        %4886 = vdwg.mxu0
        %v4887 = vpack.c.bf16 %v4870, %v4868
        %v4888 = vpack.c.bf16 %v4875, %v4873
        %v4889 = vpack.c.bf16 %v4880, %v4878
        %v4890 = vpack.c.bf16 %v4885, %v4883
        %s4891 = scalar_lea.vmem %s2, 256
        %v4892 = vld [vmem:[%s4891] sm:$0xf]
        %v4893 = vld [vmem:[%s4891 + $0x4] sm:$0xf]
        %v4896 = vunpack.c.l.b16 %v4892
        %v4897 = vunpack.c.l.b16 %v4893
        %v4898 = vpack.c.b16 %v4897, %v4896
        %v4901 = vsel %vm1890, %v4887, 0
        %v4904 = vsel %vm1890, %v4888, 0
        %v4907 = vsel %vm1890, %v4889, 0
        %v4910 = vsel %vm1890, %v4890, 0
        %4912 = vmatpush.bf16.msra.mxu0 0
        %4913 = vmatpush.bf16.msra.mxu0 0
        %4914 = vmatpush.bf16.msra.mxu0 0
        %4915 = vmatpush.bf16.msra.mxu0 0
        %4916 = vmatpush.bf16.msra.mxu0 0
        %4917 = vmatpush.bf16.msra.mxu0 0
        %4918 = vmatpush.bf16.msra.mxu0 0
        %4919 = vmatpush.bf16.msra.mxu0 %v4898
        %4920 = vmatmul.bf16.gmra.mxu0 %v4901
        %v4921 = vpop.f32.mrf.mxu0
        %v4922 = vadd.f32 0.0, %v4921
        %v4923 = vpop.f32.mrf.mxu0
        %v4924 = vadd.f32 0.0, %v4923
        %4925 = vmatmul.bf16.gmra.mxu0 %v4904
        %v4926 = vpop.f32.mrf.mxu0
        %v4927 = vadd.f32 0.0, %v4926
        %v4928 = vpop.f32.mrf.mxu0
        %v4929 = vadd.f32 0.0, %v4928
        %4930 = vmatmul.bf16.gmra.mxu0 %v4907
        %v4931 = vpop.f32.mrf.mxu0
        %v4932 = vadd.f32 0.0, %v4931
        %v4933 = vpop.f32.mrf.mxu0
        %v4934 = vadd.f32 0.0, %v4933
        %4935 = vmatmul.bf16.gmra.mxu0 %v4910
        %v4936 = vpop.f32.mrf.mxu0
        %v4937 = vadd.f32 0.0, %v4936
        %v4938 = vpop.f32.mrf.mxu0
        %v4939 = vadd.f32 0.0, %v4938
        %4940 = vdwg.mxu0
        %v4941 = vadd.f32 %v4850, %v4922
        %v4942 = vadd.f32 %v4851, %v4924
        %v4943 = vadd.f32 %v4852, %v4927
        %v4944 = vadd.f32 %v4853, %v4929
        %v4945 = vadd.f32 %v4854, %v4932
        %v4946 = vadd.f32 %v4855, %v4934
        %v4947 = vadd.f32 %v4856, %v4937
        %v4948 = vadd.f32 %v4857, %v4939
        %4949 = vmatpush.bf16.msra.mxu0 0
        %4950 = vmatpush.bf16.msra.mxu0 0
        %4951 = vmatpush.bf16.msra.mxu0 0
        %4952 = vmatpush.bf16.msra.mxu0 0
        %4953 = vmatpush.bf16.msra.mxu0 %v4451
        %4954 = vmatpush.bf16.msra.mxu0 %v4450
        %4955 = vmatpush.bf16.msra.mxu0 %v4449
        %4956 = vmatpush.bf16.msra.mxu0 %v4448
        %4957 = vmatmul.bf16.gmra.mxu0 %v2463
        %v4958 = vpop.f32.mrf.mxu0
        %v4959 = vadd.f32 0.0, %v4958
        %v4960 = vpop.f32.mrf.mxu0
        %v4961 = vadd.f32 0.0, %v4960
        %4962 = vmatmul.bf16.gmra.mxu0 %v2466
        %v4963 = vpop.f32.mrf.mxu0
        %v4964 = vadd.f32 0.0, %v4963
        %v4965 = vpop.f32.mrf.mxu0
        %v4966 = vadd.f32 0.0, %v4965
        %4967 = vmatmul.bf16.gmra.mxu0 %v2469
        %v4968 = vpop.f32.mrf.mxu0
        %v4969 = vadd.f32 0.0, %v4968
        %v4970 = vpop.f32.mrf.mxu0
        %v4971 = vadd.f32 0.0, %v4970
        %4972 = vmatmul.bf16.gmra.mxu0 %v2472
        %v4973 = vpop.f32.mrf.mxu0
        %v4974 = vadd.f32 0.0, %v4973
        %v4975 = vpop.f32.mrf.mxu0
        %v4976 = vadd.f32 0.0, %v4975
        %4977 = vdwg.mxu0
        %v4978 = vpack.c.bf16 %v4961, %v4959
        %v4979 = vpack.c.bf16 %v4966, %v4964
        %v4980 = vpack.c.bf16 %v4971, %v4969
        %v4981 = vpack.c.bf16 %v4976, %v4974
        %s4982 = scalar_lea.vmem %s2, 264
        %v4983 = vld [vmem:[%s4982] sm:$0xf]
        %v4984 = vld [vmem:[%s4982 + $0x4] sm:$0xf]
        %v4987 = vunpack.c.l.b16 %v4983
        %v4988 = vunpack.c.l.b16 %v4984
        %v4989 = vpack.c.b16 %v4988, %v4987
        %v4992 = vsel %vm1890, %v4978, 0
        %v4995 = vsel %vm1890, %v4979, 0
        %v4998 = vsel %vm1890, %v4980, 0
        %v5001 = vsel %vm1890, %v4981, 0
        %5003 = vmatpush.bf16.msra.mxu0 0
        %5004 = vmatpush.bf16.msra.mxu0 0
        %5005 = vmatpush.bf16.msra.mxu0 0
        %5006 = vmatpush.bf16.msra.mxu0 0
        %5007 = vmatpush.bf16.msra.mxu0 0
        %5008 = vmatpush.bf16.msra.mxu0 0
        %5009 = vmatpush.bf16.msra.mxu0 0
        %5010 = vmatpush.bf16.msra.mxu0 %v4989
        %5011 = vmatmul.bf16.gmra.mxu0 %v4992
        %v5012 = vpop.f32.mrf.mxu0
        %v5013 = vadd.f32 0.0, %v5012
        %v5014 = vpop.f32.mrf.mxu0
        %v5015 = vadd.f32 0.0, %v5014
        %5016 = vmatmul.bf16.gmra.mxu0 %v4995
        %v5017 = vpop.f32.mrf.mxu0
        %v5018 = vadd.f32 0.0, %v5017
        %v5019 = vpop.f32.mrf.mxu0
        %v5020 = vadd.f32 0.0, %v5019
        %5021 = vmatmul.bf16.gmra.mxu0 %v4998
        %v5022 = vpop.f32.mrf.mxu0
        %v5023 = vadd.f32 0.0, %v5022
        %v5024 = vpop.f32.mrf.mxu0
        %v5025 = vadd.f32 0.0, %v5024
        %5026 = vmatmul.bf16.gmra.mxu0 %v5001
        %v5027 = vpop.f32.mrf.mxu0
        %v5028 = vadd.f32 0.0, %v5027
        %v5029 = vpop.f32.mrf.mxu0
        %v5030 = vadd.f32 0.0, %v5029
        %5031 = vdwg.mxu0
        %v5032 = vadd.f32 %v4941, %v5013
        %v5033 = vadd.f32 %v4942, %v5015
        %v5034 = vadd.f32 %v4943, %v5018
        %v5035 = vadd.f32 %v4944, %v5020
        %v5036 = vadd.f32 %v4945, %v5023
        %v5037 = vadd.f32 %v4946, %v5025
        %v5038 = vadd.f32 %v4947, %v5028
        %v5039 = vadd.f32 %v4948, %v5030
        %5040 = vmatpush.bf16.msra.mxu0 0
        %5041 = vmatpush.bf16.msra.mxu0 0
        %5042 = vmatpush.bf16.msra.mxu0 0
        %5043 = vmatpush.bf16.msra.mxu0 0
        %5044 = vmatpush.bf16.msra.mxu0 %v4451
        %5045 = vmatpush.bf16.msra.mxu0 %v4450
        %5046 = vmatpush.bf16.msra.mxu0 %v4449
        %5047 = vmatpush.bf16.msra.mxu0 %v4448
        %5048 = vmatmul.bf16.gmra.mxu0 %v2595
        %v5049 = vpop.f32.mrf.mxu0
        %v5050 = vadd.f32 0.0, %v5049
        %v5051 = vpop.f32.mrf.mxu0
        %v5052 = vadd.f32 0.0, %v5051
        %5053 = vmatmul.bf16.gmra.mxu0 %v2598
        %v5054 = vpop.f32.mrf.mxu0
        %v5055 = vadd.f32 0.0, %v5054
        %v5056 = vpop.f32.mrf.mxu0
        %v5057 = vadd.f32 0.0, %v5056
        %5058 = vmatmul.bf16.gmra.mxu0 %v2601
        %v5059 = vpop.f32.mrf.mxu0
        %v5060 = vadd.f32 0.0, %v5059
        %v5061 = vpop.f32.mrf.mxu0
        %v5062 = vadd.f32 0.0, %v5061
        %5063 = vmatmul.bf16.gmra.mxu0 %v2604
        %v5064 = vpop.f32.mrf.mxu0
        %v5065 = vadd.f32 0.0, %v5064
        %v5066 = vpop.f32.mrf.mxu0
        %v5067 = vadd.f32 0.0, %v5066
        %5068 = vdwg.mxu0
        %v5069 = vpack.c.bf16 %v5052, %v5050
        %v5070 = vpack.c.bf16 %v5057, %v5055
        %v5071 = vpack.c.bf16 %v5062, %v5060
        %v5072 = vpack.c.bf16 %v5067, %v5065
        %s5073 = scalar_lea.vmem %s2, 272
        %v5074 = vld [vmem:[%s5073] sm:$0xf]
        %v5075 = vld [vmem:[%s5073 + $0x4] sm:$0xf]
        %v5078 = vunpack.c.l.b16 %v5074
        %v5079 = vunpack.c.l.b16 %v5075
        %v5080 = vpack.c.b16 %v5079, %v5078
        %v5083 = vsel %vm1890, %v5069, 0
        %v5086 = vsel %vm1890, %v5070, 0
        %v5089 = vsel %vm1890, %v5071, 0
        %v5092 = vsel %vm1890, %v5072, 0
        %5094 = vmatpush.bf16.msra.mxu0 0
        %5095 = vmatpush.bf16.msra.mxu0 0
        %5096 = vmatpush.bf16.msra.mxu0 0
        %5097 = vmatpush.bf16.msra.mxu0 0
        %5098 = vmatpush.bf16.msra.mxu0 0
        %5099 = vmatpush.bf16.msra.mxu0 0
        %5100 = vmatpush.bf16.msra.mxu0 0
        %5101 = vmatpush.bf16.msra.mxu0 %v5080
        %5102 = vmatmul.bf16.gmra.mxu0 %v5083
        %v5103 = vpop.f32.mrf.mxu0
        %v5104 = vadd.f32 0.0, %v5103
        %v5105 = vpop.f32.mrf.mxu0
        %v5106 = vadd.f32 0.0, %v5105
        %5107 = vmatmul.bf16.gmra.mxu0 %v5086
        %v5108 = vpop.f32.mrf.mxu0
        %v5109 = vadd.f32 0.0, %v5108
        %v5110 = vpop.f32.mrf.mxu0
        %v5111 = vadd.f32 0.0, %v5110
        %5112 = vmatmul.bf16.gmra.mxu0 %v5089
        %v5113 = vpop.f32.mrf.mxu0
        %v5114 = vadd.f32 0.0, %v5113
        %v5115 = vpop.f32.mrf.mxu0
        %v5116 = vadd.f32 0.0, %v5115
        %5117 = vmatmul.bf16.gmra.mxu0 %v5092
        %v5118 = vpop.f32.mrf.mxu0
        %v5119 = vadd.f32 0.0, %v5118
        %v5120 = vpop.f32.mrf.mxu0
        %v5121 = vadd.f32 0.0, %v5120
        %5122 = vdwg.mxu0
        %v5123 = vadd.f32 %v5032, %v5104
        %v5124 = vadd.f32 %v5033, %v5106
        %v5125 = vadd.f32 %v5034, %v5109
        %v5126 = vadd.f32 %v5035, %v5111
        %v5127 = vadd.f32 %v5036, %v5114
        %v5128 = vadd.f32 %v5037, %v5116
        %v5129 = vadd.f32 %v5038, %v5119
        %v5130 = vadd.f32 %v5039, %v5121
        %5131 = vmatpush.bf16.msra.mxu0 0
        %5132 = vmatpush.bf16.msra.mxu0 0
        %5133 = vmatpush.bf16.msra.mxu0 0
        %5134 = vmatpush.bf16.msra.mxu0 0
        %5135 = vmatpush.bf16.msra.mxu0 %v4451
        %5136 = vmatpush.bf16.msra.mxu0 %v4450
        %5137 = vmatpush.bf16.msra.mxu0 %v4449
        %5138 = vmatpush.bf16.msra.mxu0 %v4448
        %5139 = vmatmul.bf16.gmra.mxu0 %v2727
        %v5140 = vpop.f32.mrf.mxu0
        %v5141 = vadd.f32 0.0, %v5140
        %v5142 = vpop.f32.mrf.mxu0
        %v5143 = vadd.f32 0.0, %v5142
        %5144 = vmatmul.bf16.gmra.mxu0 %v2730
        %v5145 = vpop.f32.mrf.mxu0
        %v5146 = vadd.f32 0.0, %v5145
        %v5147 = vpop.f32.mrf.mxu0
        %v5148 = vadd.f32 0.0, %v5147
        %5149 = vmatmul.bf16.gmra.mxu0 %v2733
        %v5150 = vpop.f32.mrf.mxu0
        %v5151 = vadd.f32 0.0, %v5150
        %v5152 = vpop.f32.mrf.mxu0
        %v5153 = vadd.f32 0.0, %v5152
        %5154 = vmatmul.bf16.gmra.mxu0 %v2736
        %v5155 = vpop.f32.mrf.mxu0
        %v5156 = vadd.f32 0.0, %v5155
        %v5157 = vpop.f32.mrf.mxu0
        %v5158 = vadd.f32 0.0, %v5157
        %5159 = vdwg.mxu0
        %v5160 = vpack.c.bf16 %v5143, %v5141
        %v5161 = vpack.c.bf16 %v5148, %v5146
        %v5162 = vpack.c.bf16 %v5153, %v5151
        %v5163 = vpack.c.bf16 %v5158, %v5156
        %s5164 = scalar_lea.vmem %s2, 280
        %v5165 = vld [vmem:[%s5164] sm:$0xf]
        %v5166 = vld [vmem:[%s5164 + $0x4] sm:$0xf]
        %v5169 = vunpack.c.l.b16 %v5165
        %v5170 = vunpack.c.l.b16 %v5166
        %v5171 = vpack.c.b16 %v5170, %v5169
        %v5174 = vsel %vm1890, %v5160, 0
        %v5177 = vsel %vm1890, %v5161, 0
        %v5180 = vsel %vm1890, %v5162, 0
        %v5183 = vsel %vm1890, %v5163, 0
        %5185 = vmatpush.bf16.msra.mxu0 0
        %5186 = vmatpush.bf16.msra.mxu0 0
        %5187 = vmatpush.bf16.msra.mxu0 0
        %5188 = vmatpush.bf16.msra.mxu0 0
        %5189 = vmatpush.bf16.msra.mxu0 0
        %5190 = vmatpush.bf16.msra.mxu0 0
        %5191 = vmatpush.bf16.msra.mxu0 0
        %5192 = vmatpush.bf16.msra.mxu0 %v5171
        %5193 = vmatmul.bf16.gmra.mxu0 %v5174
        %v5194 = vpop.f32.mrf.mxu0
        %v5195 = vadd.f32 0.0, %v5194
        %v5196 = vpop.f32.mrf.mxu0
        %v5197 = vadd.f32 0.0, %v5196
        %5198 = vmatmul.bf16.gmra.mxu0 %v5177
        %v5199 = vpop.f32.mrf.mxu0
        %v5200 = vadd.f32 0.0, %v5199
        %v5201 = vpop.f32.mrf.mxu0
        %v5202 = vadd.f32 0.0, %v5201
        %5203 = vmatmul.bf16.gmra.mxu0 %v5180
        %v5204 = vpop.f32.mrf.mxu0
        %v5205 = vadd.f32 0.0, %v5204
        %v5206 = vpop.f32.mrf.mxu0
        %v5207 = vadd.f32 0.0, %v5206
        %5208 = vmatmul.bf16.gmra.mxu0 %v5183
        %v5209 = vpop.f32.mrf.mxu0
        %v5210 = vadd.f32 0.0, %v5209
        %v5211 = vpop.f32.mrf.mxu0
        %v5212 = vadd.f32 0.0, %v5211
        %5213 = vdwg.mxu0
        %v5214 = vadd.f32 %v5123, %v5195
        %v5215 = vadd.f32 %v5124, %v5197
        %v5216 = vadd.f32 %v5125, %v5200
        %v5217 = vadd.f32 %v5126, %v5202
        %v5218 = vadd.f32 %v5127, %v5205
        %v5219 = vadd.f32 %v5128, %v5207
        %v5220 = vadd.f32 %v5129, %v5210
        %v5221 = vadd.f32 %v5130, %v5212
        %s5222 = scalar_lea.vmem %s3, 4
        %v5223 = vld [vmem:[%s5222] sm:$0x1]
        %v5225 = vperm.slane %v5223, 0
        %v5227 = vadd.f32 %v5214, %v5225
        %v5228 = vadd.f32 %v5215, %v5225
        %v5229 = vadd.f32 %v5216, %v5225
        %v5230 = vadd.f32 %v5217, %v5225
        %v5231 = vadd.f32 %v5218, %v5225
        %v5232 = vadd.f32 %v5219, %v5225
        %v5233 = vadd.f32 %v5220, %v5225
        %v5234 = vadd.f32 %v5221, %v5225
        %v5235 = vadd.f32 %v5227, %v3645
        %v5236 = vadd.f32 %v5228, %v3646
        %v5237 = vadd.f32 %v5229, %v3647
        %v5238 = vadd.f32 %v5230, %v3648
        %v5239 = vadd.f32 %v5231, %v3649
        %v5240 = vadd.f32 %v5232, %v3650
        %v5241 = vadd.f32 %v5233, %v3651
        %v5242 = vadd.f32 %v5234, %v3652
        %v5243 = vmax.f32 %v5235, 0.0
        %v5244 = vmax.f32 %v5236, 0.0
        %v5245 = vmax.f32 %v5237, 0.0
        %v5246 = vmax.f32 %v5238, 0.0
        %v5247 = vmax.f32 %v5239, 0.0
        %v5248 = vmax.f32 %v5240, 0.0
        %v5249 = vmax.f32 %v5241, 0.0
        %v5250 = vmax.f32 %v5242, 0.0
        %5251 = vst.msk [vmem:[%s244] sm:$0xff] %vm1890, %v5243
        %5252 = vst.msk [vmem:[%s244 + $0x8] sm:$0xff] %vm1890, %v5244
        %5253 = vst.msk [vmem:[%s244 + $0x10] sm:$0xff] %vm1890, %v5245
        %5254 = vst.msk [vmem:[%s244 + $0x18] sm:$0xff] %vm1890, %v5246
        %5255 = vst.msk [vmem:[%s244 + $0x20] sm:$0xff] %vm1890, %v5247
        %5256 = vst.msk [vmem:[%s244 + $0x28] sm:$0xff] %vm1890, %v5248
        %5257 = vst.msk [vmem:[%s244 + $0x30] sm:$0xff] %vm1890, %v5249
        %5258 = vst.msk [vmem:[%s244 + $0x38] sm:$0xff] %vm1890, %v5250
        %s5259 = sand.u32 %s159, 1
        %s5260 = scalar_lea.sflag [#allocation3], %s5259
        %s5261 = sand.u32 %s159, 1
        %s5262 = smul.addr %s5261, 64
        %s5263 = scalar_lea.vmem [#allocation2], %s5262
        // Predicated region
        $region45: #{res_bottom_forward.1} parent=43 // pred_check
          %p5264 = pneg %p169
        $region46: #{res_bottom_forward.1} parent=43 // pred_check_branch
          %5266 = sbr.rel (%p5264) target = $region48
        $region47: #{res_bottom_forward.1} parent=43 // pred_region
          %5268 = vsyncadd %s5260, 0
          %s5269 = smul.addr %s20, 8
          %s5270 = smul.addr %s5269, 8
          %s5271 = scalar_lea.hbm %s6, %s5270
          %s5272 = sshll.u32 %s5263, 4
          %s5273 = int_to_ptr.vmem [resolvable:$true] %s5272
          %s5274 = sshll.u32 %s5271, 4
          %s5275 = int_to_ptr.hbm [resolvable:$true] %s5274
          %5280 = dma.vmem_to_hbm [thread:$0]  %s5273, 1024, %s5275, %s5260, 128, 128, 8
        $region48: #{res_bottom_forward.1} parent=43 // pred_fallthru
          _
      $region44: #{res_bottom_forward.1} parent=5 // pred_fallthru
        _
      %p5281 = scmp.le.s32.totalorder 2, %s15
      // Predicated region
      $region49: #{res_bottom_forward.1} parent=5 // pred_check
        %p5282 = pneg %p5281
      $region50: #{res_bottom_forward.1} parent=5 // pred_check_branch
        %5284 = sbr.rel (%p5282) target = $region52
      $region51: #{res_bottom_forward.1} parent=5 // pred_region
        %s5285 = ssub.s32 %s15, 2
        // Predicated region
        $region53: #{res_bottom_forward.1} parent=51 // pred_check
          %p5286 = pneg %p175
        $region54: #{res_bottom_forward.1} parent=51 // pred_check_branch
          %5288 = sbr.rel (%p5286) target = $region56
        $region55: #{res_bottom_forward.1} parent=51 // pred_region
          %s5289 = sand.u32 %s160, 1
          %s5290 = scalar_lea.sflag [#allocation3], %s5289
          %s5291 = sand.u32 %s160, 1
          %s5292 = smul.addr %s5291, 64
          %s5293 = scalar_lea.vmem [#allocation2], %s5292
          %5295 = dma.done %s5290, 1024
        $region56: #{res_bottom_forward.1} parent=51 // pred_fallthru
          _
      $region52: #{res_bottom_forward.1} parent=5 // pred_fallthru
        _
    $region6: #{res_bottom_forward.1} parent=1 // loop_footer
      %s19 = sadd.s32 1, %s15
    $region7: #{res_bottom_forward.1} parent=1 // loop_footer_branch
      %14 = sbr.rel target = $region3
    $region8: #{res_bottom_forward.1} parent=1 // loop_exit
      _
    %5296 = vsyncpa [#allocation3], 1
    %s5297 = scalar_lea.sflag [#allocation3], 1
    %5298 = vsyncpa %s5297, 1

</llo_original>
